<compile_context>
chip_gen: v7x
topology: tpu7x:2x2x1
jax: 0.10.0
libtpu: 0.0.40
codegen_flags: <defaults>
</compile_context>

<pallas_src>
import math
from functools import partial

import jax
import jax.numpy as jnp
from jax import lax
from jax.experimental import pallas as pl
from jax.experimental.pallas import tpu as pltpu  # noqa: F401  (TPU backend)

# ----- small synthetic config (BERT-like) -----
VOCAB = 100
HID = 32            # embedding_dim == hid_size of AdvNN
N_HEADS = 4
HEAD_DIM = HID // N_HEADS
INTER = 64
N_LAYERS = 2
MAX_POS = 16
PROT_OUT = 2        # prot_out_size
ATTACKER_HEADS = 2  # attacker_heads


# ---------------- fused forward kernel ----------------
def _attacker_fused_kernel(
    emb_ref, mask_ref, sel_ref,
    emb_ln_g, emb_ln_b,
    qkv_w, qkv_b, o_w, o_b, ln1_g, ln1_b,
    inter_w, inter_b, ffn_w, ffn_b, ln2_g, ln2_b,
    pool_w, pool_b, l1_w, l1_b, l2_w, l2_b,
    out_ref, *, batch, seq,
):
    f32 = jnp.float32
    scale = 1.0 / math.sqrt(HEAD_DIM)
    inv_sqrt2 = 1.0 / math.sqrt(2.0)

    def layer_norm(x, g, b):
        mu = jnp.mean(x, axis=-1, keepdims=True)
        xc = x - mu
        var = jnp.mean(xc * xc, axis=-1, keepdims=True)
        return xc * lax.rsqrt(var + 1e-12) * g + b

    # Embedding LayerNorm (embedding sum itself is XLA glue, passed in).
    x = layer_norm(emb_ref[...].astype(f32), emb_ln_g[...], emb_ln_b[...])   # [B*S, H]

    # Hoist the key-padding mask broadcast out of the layer/head loops.
    keep = jnp.broadcast_to(mask_ref[...] > 0.0, (batch, seq, seq))          # [B, S, S]

    for li in range(N_LAYERS):
        # --- fused QKV projection: one [B*S,H] x [H,3H] MXU op ---
        qkv = jnp.dot(x, qkv_w[li], preferred_element_type=f32) + qkv_b[li]  # [B*S, 3H]
        q = qkv[:, :HID].reshape(batch, seq, HID)
        k = qkv[:, HID:2 * HID].reshape(batch, seq, HID)
        v = qkv[:, 2 * HID:].reshape(batch, seq, HID)

        # --- all batches / all heads attention inside the kernel ---
        ctx_heads = []
        for h in range(N_HEADS):
            lo, hi = h * HEAD_DIM, (h + 1) * HEAD_DIM
            qh, kh, vh = q[:, :, lo:hi], k[:, :, lo:hi], v[:, :, lo:hi]      # [B, S, Dh]
            s = jnp.einsum("bqd,bkd->bqk", qh, kh,
                           preferred_element_type=f32) * scale              # [B, S, S]
            s = jnp.where(keep, s, -1e9)
            s = s - jnp.max(s, axis=-1, keepdims=True)
            p = jnp.exp(s)
            p = p * pl.reciprocal(jnp.sum(p, axis=-1, keepdims=True), approx=True)
            ctx_heads.append(jnp.einsum("bqk,bkd->bqd", p, vh,
                                        preferred_element_type=f32))        # [B, S, Dh]
        ctx = jnp.concatenate(ctx_heads, axis=-1).reshape(batch * seq, HID)  # [B*S, H]

        # --- attention output projection + residual + LN1 ---
        attn_out = jnp.dot(ctx, o_w[li], preferred_element_type=f32) + o_b[li]
        x = layer_norm(x + attn_out, ln1_g[li], ln1_b[li])

        # --- FFN: GELU(x W_i + b_i) W_o + b_o, residual + LN2 ---
        hdn = jnp.dot(x, inter_w[li], preferred_element_type=f32) + inter_b[li]
        hdn = 0.5 * hdn * (1.0 + lax.erf(hdn * inv_sqrt2))                   # exact GELU
        ffn = jnp.dot(hdn, ffn_w[li], preferred_element_type=f32) + ffn_b[li]
        x = layer_norm(x + ffn, ln2_g[li], ln2_b[li])

    # --- pooler on the [CLS] rows (one-hot selection matmul keeps it on MXU) ---
    cls = jnp.dot(sel_ref[...], x, preferred_element_type=f32)               # [B, H]
    pooled = jnp.tanh(jnp.dot(cls, pool_w[...], preferred_element_type=f32)
                      + pool_b[...])                                         # [B, H]

    # --- both attacker heads fused (concat l1, block-diagonal l2) ---
    # TODO(synk): nn.Dropout in AdvNN is inference-mode identity here (no RNG dropout).
    hid = jnp.tanh(jnp.dot(pooled, l1_w[...], preferred_element_type=f32) + l1_b[...])
    out = jnp.dot(hid, l2_w[...], preferred_element_type=f32) + l2_b[...]    # [B, A*PROT]
    out_ref[...] = out.astype(out_ref.dtype)


# ---------------- parameter construction (packed for the fused kernel) ----------------
def _dense(key, din, dout):
    w = jax.random.normal(key, (din, dout), jnp.float32) * 0.02
    b = jnp.zeros((dout,), jnp.float32)
    return w, b


def init_params(key):
    keys = jax.random.split(key, 8 + N_LAYERS)
    params = {
        "word_emb": jax.random.normal(keys[0], (VOCAB, HID), jnp.float32) * 0.02,
        "pos_emb": jax.random.normal(keys[1], (MAX_POS, HID), jnp.float32) * 0.02,
        "type_emb": jax.random.normal(keys[2], (2, HID), jnp.float32) * 0.02,
        "emb_ln_g": jnp.ones((1, HID), jnp.float32),
        "emb_ln_b": jnp.zeros((1, HID), jnp.float32),
    }

    qkv_w, qkv_b, o_w, o_b = [], [], [], []
    ln1_g, ln1_b, inter_w, inter_b = [], [], [], []
    ffn_w, ffn_b, ln2_g, ln2_b = [], [], [], []
    for li in range(N_LAYERS):
        lk = jax.random.split(keys[8 + li], 6)
        qw, qb = _dense(lk[0], HID, HID)
        kw, kb = _dense(lk[1], HID, HID)
        vw, vb = _dense(lk[2], HID, HID)
        ow, ob = _dense(lk[3], HID, HID)
        iw, ib = _dense(lk[4], HID, INTER)
        fw, fb = _dense(lk[5], INTER, HID)
        qkv_w.append(jnp.concatenate([qw, kw, vw], axis=1))            # [H, 3H]
        qkv_b.append(jnp.concatenate([qb, kb, vb]).reshape(1, 3 * HID))
        o_w.append(ow); o_b.append(ob.reshape(1, HID))
        ln1_g.append(jnp.ones((1, HID), jnp.float32))
        ln1_b.append(jnp.zeros((1, HID), jnp.float32))
        inter_w.append(iw); inter_b.append(ib.reshape(1, INTER))
        ffn_w.append(fw); ffn_b.append(fb.reshape(1, HID))
        ln2_g.append(jnp.ones((1, HID), jnp.float32))
        ln2_b.append(jnp.zeros((1, HID), jnp.float32))

    params.update({
        "qkv_w": jnp.stack(qkv_w), "qkv_b": jnp.stack(qkv_b),
        "o_w": jnp.stack(o_w), "o_b": jnp.stack(o_b),
        "ln1_g": jnp.stack(ln1_g), "ln1_b": jnp.stack(ln1_b),
        "inter_w": jnp.stack(inter_w), "inter_b": jnp.stack(inter_b),
        "ffn_w": jnp.stack(ffn_w), "ffn_b": jnp.stack(ffn_b),
        "ln2_g": jnp.stack(ln2_g), "ln2_b": jnp.stack(ln2_b),
    })

    pw, pb = _dense(keys[3], HID, HID)
    params["pool_w"] = pw
    params["pool_b"] = pb.reshape(1, HID)

    # Attacker heads (AdvNN, midlayer_size == -1 -> hid_size): Linear->Tanh->Linear.
    l1_w, l1_b, l2_blocks, l2_bias = [], [], [], []
    for hi in range(ATTACKER_HEADS):
        hk = jax.random.split(keys[4 + (hi % 4)], 2)
        w1, b1 = _dense(hk[0], HID, HID)
        w2, b2 = _dense(hk[1], HID, PROT_OUT)
        l1_w.append(w1); l1_b.append(b1)
        l2_blocks.append(w2); l2_bias.append(b2)
    params["l1_w"] = jnp.concatenate(l1_w, axis=1)                     # [H, A*H]
    params["l1_b"] = jnp.concatenate(l1_b).reshape(1, ATTACKER_HEADS * HID)
    l2 = jnp.zeros((ATTACKER_HEADS * HID, ATTACKER_HEADS * PROT_OUT), jnp.float32)
    for hi in range(ATTACKER_HEADS):                                   # block-diagonal l2
        l2 = l2.at[hi * HID:(hi + 1) * HID,
                   hi * PROT_OUT:(hi + 1) * PROT_OUT].set(l2_blocks[hi])
    params["l2_w"] = l2
    params["l2_b"] = jnp.concatenate(l2_bias).reshape(1, ATTACKER_HEADS * PROT_OUT)
    return params


# ---------------- forward pass (XLA glue + one fused pallas_call) ----------------
def attacker_forward(params, sent_id, mask):
    b, s = sent_id.shape
    # Embedding gather stays in XLA (table gather; only token-type 0 is used here).
    emb = (params["word_emb"][sent_id]
           + params["pos_emb"][:s][None, :, :]
           + params["type_emb"][0][None, None, :]).reshape(b * s, HID)
    mask_f = mask.astype(jnp.float32).reshape(b, 1, s)
    sel = jax.nn.one_hot(jnp.arange(b) * s, b * s, dtype=jnp.float32)  # [CLS] row selector

    out = pl.pallas_call(
        partial(_attacker_fused_kernel, batch=b, seq=s),
        out_shape=jax.ShapeDtypeStruct((b, ATTACKER_HEADS * PROT_OUT), jnp.float32),
    )(emb, mask_f, sel,
      params["emb_ln_g"], params["emb_ln_b"],
      params["qkv_w"], params["qkv_b"], params["o_w"], params["o_b"],
      params["ln1_g"], params["ln1_b"],
      params["inter_w"], params["inter_b"], params["ffn_w"], params["ffn_b"],
      params["ln2_g"], params["ln2_b"],
      params["pool_w"], params["pool_b"],
      params["l1_w"], params["l1_b"], params["l2_w"], params["l2_b"])

    # Match the module's return type: a list with one [B, prot_out_size] per adv head.
    return [out[:, hi * PROT_OUT:(hi + 1) * PROT_OUT] for hi in range(ATTACKER_HEADS)]


# ---------------- main ----------------
if __name__ == "__main__":
    key = jax.random.PRNGKey(0)
    pkey, ikey = jax.random.split(key)
    params = init_params(pkey)

    B, S = 2, 8
    sent_id = jax.random.randint(ikey, (B, S), 0, VOCAB, dtype=jnp.int32)
    mask = jnp.array([[1, 1, 1, 1, 1, 1, 1, 1],
                      [1, 1, 1, 1, 1, 0, 0, 0]], dtype=jnp.int32)

    fwd = jax.jit(attacker_forward)
    outs = fwd(params, sent_id, mask)
    outs = [jax.block_until_ready(o) for o in outs]

    assert len(outs) == ATTACKER_HEADS
    for o in outs:
        assert o.shape == (B, PROT_OUT)
        assert bool(jnp.all(jnp.isfinite(o)))
    print("KERNEL_OK")
</pallas_src>

<mosaic_0001>
module attributes {stable_mosaic.version = 11 : i64} {
  func.func @_attacker_fused_kernel(%arg0: memref<16x32xf32, #tpu.memory_space<vmem>>, %arg1: memref<2x1x8xf32, #tpu.memory_space<vmem>>, %arg2: memref<2x16xf32, #tpu.memory_space<vmem>>, %arg3: memref<1x32xf32, #tpu.memory_space<vmem>>, %arg4: memref<1x32xf32, #tpu.memory_space<vmem>>, %arg5: memref<2x32x96xf32, #tpu.memory_space<vmem>>, %arg6: memref<2x1x96xf32, #tpu.memory_space<vmem>>, %arg7: memref<2x32x32xf32, #tpu.memory_space<vmem>>, %arg8: memref<2x1x32xf32, #tpu.memory_space<vmem>>, %arg9: memref<2x1x32xf32, #tpu.memory_space<vmem>>, %arg10: memref<2x1x32xf32, #tpu.memory_space<vmem>>, %arg11: memref<2x32x64xf32, #tpu.memory_space<vmem>>, %arg12: memref<2x1x64xf32, #tpu.memory_space<vmem>>, %arg13: memref<2x64x32xf32, #tpu.memory_space<vmem>>, %arg14: memref<2x1x32xf32, #tpu.memory_space<vmem>>, %arg15: memref<2x1x32xf32, #tpu.memory_space<vmem>>, %arg16: memref<2x1x32xf32, #tpu.memory_space<vmem>>, %arg17: memref<32x32xf32, #tpu.memory_space<vmem>>, %arg18: memref<1x32xf32, #tpu.memory_space<vmem>>, %arg19: memref<32x64xf32, #tpu.memory_space<vmem>>, %arg20: memref<1x64xf32, #tpu.memory_space<vmem>>, %arg21: memref<64x4xf32, #tpu.memory_space<vmem>>, %arg22: memref<1x4xf32, #tpu.memory_space<vmem>>, %arg23: memref<2x4xf32, #tpu.memory_space<vmem>>) attributes {dimension_semantics = [], scalar_prefetch = 0 : i64, scratch_operands = 0 : i64, tpu.core_type = #tpu.core_type<tc>} {
    %c0 = arith.constant 0 : index
    %c0_0 = arith.constant 0 : index
    %0 = vector.load %arg0[%c0, %c0_0] : memref<16x32xf32, #tpu.memory_space<vmem>>, vector<16x32xf32>
    %c0_1 = arith.constant 0 : index
    %c0_2 = arith.constant 0 : index
    %1 = vector.load %arg3[%c0_1, %c0_2] : memref<1x32xf32, #tpu.memory_space<vmem>>, vector<1x32xf32>
    %c0_3 = arith.constant 0 : index
    %c0_4 = arith.constant 0 : index
    %2 = vector.load %arg4[%c0_3, %c0_4] : memref<1x32xf32, #tpu.memory_space<vmem>>, vector<1x32xf32>
    %cst = arith.constant dense<0.000000e+00> : vector<16xf32>
    %3 = vector.multi_reduction <add>, %0, %cst [1] : vector<16x32xf32> to vector<16xf32>
    %4 = vector.shape_cast %3 : vector<16xf32> to vector<16x1xf32>
    %cst_5 = arith.constant 3.200000e+01 : f32
    %5 = vector.broadcast %cst_5 : f32 to vector<16x1xf32>
    %6 = arith.divf %4, %5 : vector<16x1xf32>
    %7 = vector.broadcast %6 : vector<16x1xf32> to vector<16x32xf32>
    %8 = arith.subf %0, %7 : vector<16x32xf32>
    %9 = arith.mulf %8, %8 : vector<16x32xf32>
    %cst_6 = arith.constant dense<0.000000e+00> : vector<16xf32>
    %10 = vector.multi_reduction <add>, %9, %cst_6 [1] : vector<16x32xf32> to vector<16xf32>
    %11 = vector.shape_cast %10 : vector<16xf32> to vector<16x1xf32>
    %cst_7 = arith.constant 3.200000e+01 : f32
    %12 = vector.broadcast %cst_7 : f32 to vector<16x1xf32>
    %13 = arith.divf %11, %12 : vector<16x1xf32>
    %cst_8 = arith.constant 9.99999996E-13 : f32
    %14 = vector.broadcast %cst_8 : f32 to vector<16x1xf32>
    %15 = arith.addf %13, %14 : vector<16x1xf32>
    %16 = math.rsqrt %15 : vector<16x1xf32>
    %17 = vector.broadcast %16 : vector<16x1xf32> to vector<16x32xf32>
    %18 = arith.mulf %8, %17 : vector<16x32xf32>
    %19 = vector.broadcast %1 : vector<1x32xf32> to vector<16x32xf32>
    %20 = arith.mulf %18, %19 : vector<16x32xf32>
    %21 = vector.broadcast %2 : vector<1x32xf32> to vector<16x32xf32>
    %22 = arith.addf %20, %21 : vector<16x32xf32>
    %c0_9 = arith.constant 0 : index
    %c0_10 = arith.constant 0 : index
    %c0_11 = arith.constant 0 : index
    %23 = vector.load %arg1[%c0_9, %c0_10, %c0_11] : memref<2x1x8xf32, #tpu.memory_space<vmem>>, vector<2x1x8xf32>
    %cst_12 = arith.constant 0.000000e+00 : f32
    %24 = vector.broadcast %cst_12 : f32 to vector<2x1x8xf32>
    %25 = arith.cmpf ogt, %23, %24 : vector<2x1x8xf32>
    %26 = vector.shape_cast %25 : vector<2x1x8xi1> to vector<2x1x8xi1>
    %27 = vector.broadcast %26 : vector<2x1x8xi1> to vector<2x8x8xi1>
    %c0_13 = arith.constant 0 : index
    %c0_14 = arith.constant 0 : index
    %c0_15 = arith.constant 0 : index
    %28 = vector.load %arg5[%c0_13, %c0_14, %c0_15] : memref<2x32x96xf32, #tpu.memory_space<vmem>>, vector<1x32x96xf32>
    %29 = vector.shape_cast %28 : vector<1x32x96xf32> to vector<32x96xf32>
    %cst_16 = arith.constant dense<0.000000e+00> : vector<16x96xf32>
    %30 = tpu.matmul %22, %29, %cst_16 {dimension_numbers = #tpu.dot_dimension_numbers<[1], [0], [0], [1], [0, 0, 1, 1], [], []>} : vector<16x32xf32>, vector<32x96xf32>, vector<16x96xf32> -> vector<16x96xf32>
    %c0_17 = arith.constant 0 : index
    %c0_18 = arith.constant 0 : index
    %c0_19 = arith.constant 0 : index
    %31 = vector.load %arg6[%c0_17, %c0_18, %c0_19] : memref<2x1x96xf32, #tpu.memory_space<vmem>>, vector<1x1x96xf32>
    %32 = vector.shape_cast %31 : vector<1x1x96xf32> to vector<1x96xf32>
    %33 = vector.broadcast %32 : vector<1x96xf32> to vector<16x96xf32>
    %34 = arith.addf %30, %33 : vector<16x96xf32>
    %35 = vector.extract_strided_slice %34 {offsets = [0, 0], sizes = [16, 32], strides = [1, 1]} : vector<16x96xf32> to vector<16x32xf32>
    %36 = vector.shape_cast %35 : vector<16x32xf32> to vector<2x8x32xf32>
    %37 = vector.extract_strided_slice %34 {offsets = [0, 32], sizes = [16, 32], strides = [1, 1]} : vector<16x96xf32> to vector<16x32xf32>
    %38 = vector.shape_cast %37 : vector<16x32xf32> to vector<2x8x32xf32>
    %39 = vector.extract_strided_slice %34 {offsets = [0, 64], sizes = [16, 32], strides = [1, 1]} : vector<16x96xf32> to vector<16x32xf32>
    %40 = vector.shape_cast %39 : vector<16x32xf32> to vector<2x8x32xf32>
    %41 = vector.extract_strided_slice %36 {offsets = [0, 0, 0], sizes = [2, 8, 8], strides = [1, 1, 1]} : vector<2x8x32xf32> to vector<2x8x8xf32>
    %42 = vector.extract_strided_slice %38 {offsets = [0, 0, 0], sizes = [2, 8, 8], strides = [1, 1, 1]} : vector<2x8x32xf32> to vector<2x8x8xf32>
    %43 = vector.extract_strided_slice %40 {offsets = [0, 0, 0], sizes = [2, 8, 8], strides = [1, 1, 1]} : vector<2x8x32xf32> to vector<2x8x8xf32>
    "tpu.trace_start"() <{level = 10 : i32, message = "bqd,bkd->bqk"}> : () -> ()
    %cst_20 = arith.constant dense<0.000000e+00> : vector<2x8x8xf32>
    %44 = tpu.matmul %41, %42, %cst_20 {dimension_numbers = #tpu.dot_dimension_numbers<[2], [2], [1], [1], [0, 0, 0, 1, 1, 1], [0], [0]>} : vector<2x8x8xf32>, vector<2x8x8xf32>, vector<2x8x8xf32> -> vector<2x8x8xf32>
    "tpu.trace_stop"() : () -> ()
    %cst_21 = arith.constant 0.353553385 : f32
    %45 = vector.broadcast %cst_21 : f32 to vector<2x8x8xf32>
    %46 = arith.mulf %44, %45 : vector<2x8x8xf32>
    %cst_22 = arith.constant -1.000000e+09 : f32
    %47 = vector.broadcast %cst_22 : f32 to vector<2x8x8xf32>
    %48 = arith.select %27, %46, %47 : vector<2x8x8xi1>, vector<2x8x8xf32>
    %cst_23 = arith.constant dense<0xFF800000> : vector<2x8xf32>
    %49 = vector.multi_reduction <maximumf>, %48, %cst_23 [2] : vector<2x8x8xf32> to vector<2x8xf32>
    %50 = vector.shape_cast %49 : vector<2x8xf32> to vector<2x8x1xf32>
    %51 = vector.broadcast %50 : vector<2x8x1xf32> to vector<2x8x8xf32>
    %52 = arith.subf %48, %51 : vector<2x8x8xf32>
    %53 = math.exp %52 : vector<2x8x8xf32>
    %cst_24 = arith.constant dense<0.000000e+00> : vector<2x8xf32>
    %54 = vector.multi_reduction <add>, %53, %cst_24 [2] : vector<2x8x8xf32> to vector<2x8xf32>
    %55 = vector.shape_cast %54 : vector<2x8xf32> to vector<2x8x1xf32>
    %56 = tpu.reciprocal %55 {approx = true} : vector<2x8x1xf32> -> vector<2x8x1xf32>
    %57 = vector.broadcast %56 : vector<2x8x1xf32> to vector<2x8x8xf32>
    %58 = arith.mulf %53, %57 : vector<2x8x8xf32>
    "tpu.trace_start"() <{level = 10 : i32, message = "bqk,bkd->bqd"}> : () -> ()
    %cst_25 = arith.constant dense<0.000000e+00> : vector<2x8x8xf32>
    %59 = tpu.matmul %58, %43, %cst_25 {dimension_numbers = #tpu.dot_dimension_numbers<[2], [1], [1], [2], [0, 0, 0, 1, 1, 2], [0], [0]>} : vector<2x8x8xf32>, vector<2x8x8xf32>, vector<2x8x8xf32> -> vector<2x8x8xf32>
    "tpu.trace_stop"() : () -> ()
    %60 = vector.extract_strided_slice %36 {offsets = [0, 0, 8], sizes = [2, 8, 8], strides = [1, 1, 1]} : vector<2x8x32xf32> to vector<2x8x8xf32>
    %61 = vector.extract_strided_slice %38 {offsets = [0, 0, 8], sizes = [2, 8, 8], strides = [1, 1, 1]} : vector<2x8x32xf32> to vector<2x8x8xf32>
    %62 = vector.extract_strided_slice %40 {offsets = [0, 0, 8], sizes = [2, 8, 8], strides = [1, 1, 1]} : vector<2x8x32xf32> to vector<2x8x8xf32>
    "tpu.trace_start"() <{level = 10 : i32, message = "bqd,bkd->bqk"}> : () -> ()
    %cst_26 = arith.constant dense<0.000000e+00> : vector<2x8x8xf32>
    %63 = tpu.matmul %60, %61, %cst_26 {dimension_numbers = #tpu.dot_dimension_numbers<[2], [2], [1], [1], [0, 0, 0, 1, 1, 1], [0], [0]>} : vector<2x8x8xf32>, vector<2x8x8xf32>, vector<2x8x8xf32> -> vector<2x8x8xf32>
    "tpu.trace_stop"() : () -> ()
    %cst_27 = arith.constant 0.353553385 : f32
    %64 = vector.broadcast %cst_27 : f32 to vector<2x8x8xf32>
    %65 = arith.mulf %63, %64 : vector<2x8x8xf32>
    %cst_28 = arith.constant -1.000000e+09 : f32
    %66 = vector.broadcast %cst_28 : f32 to vector<2x8x8xf32>
    %67 = arith.select %27, %65, %66 : vector<2x8x8xi1>, vector<2x8x8xf32>
    %cst_29 = arith.constant dense<0xFF800000> : vector<2x8xf32>
    %68 = vector.multi_reduction <maximumf>, %67, %cst_29 [2] : vector<2x8x8xf32> to vector<2x8xf32>
    %69 = vector.shape_cast %68 : vector<2x8xf32> to vector<2x8x1xf32>
    %70 = vector.broadcast %69 : vector<2x8x1xf32> to vector<2x8x8xf32>
    %71 = arith.subf %67, %70 : vector<2x8x8xf32>
    %72 = math.exp %71 : vector<2x8x8xf32>
    %cst_30 = arith.constant dense<0.000000e+00> : vector<2x8xf32>
    %73 = vector.multi_reduction <add>, %72, %cst_30 [2] : vector<2x8x8xf32> to vector<2x8xf32>
    %74 = vector.shape_cast %73 : vector<2x8xf32> to vector<2x8x1xf32>
    %75 = tpu.reciprocal %74 {approx = true} : vector<2x8x1xf32> -> vector<2x8x1xf32>
    %76 = vector.broadcast %75 : vector<2x8x1xf32> to vector<2x8x8xf32>
    %77 = arith.mulf %72, %76 : vector<2x8x8xf32>
    "tpu.trace_start"() <{level = 10 : i32, message = "bqk,bkd->bqd"}> : () -> ()
    %cst_31 = arith.constant dense<0.000000e+00> : vector<2x8x8xf32>
    %78 = tpu.matmul %77, %62, %cst_31 {dimension_numbers = #tpu.dot_dimension_numbers<[2], [1], [1], [2], [0, 0, 0, 1, 1, 2], [0], [0]>} : vector<2x8x8xf32>, vector<2x8x8xf32>, vector<2x8x8xf32> -> vector<2x8x8xf32>
    "tpu.trace_stop"() : () -> ()
    %79 = vector.extract_strided_slice %36 {offsets = [0, 0, 16], sizes = [2, 8, 8], strides = [1, 1, 1]} : vector<2x8x32xf32> to vector<2x8x8xf32>
    %80 = vector.extract_strided_slice %38 {offsets = [0, 0, 16], sizes = [2, 8, 8], strides = [1, 1, 1]} : vector<2x8x32xf32> to vector<2x8x8xf32>
    %81 = vector.extract_strided_slice %40 {offsets = [0, 0, 16], sizes = [2, 8, 8], strides = [1, 1, 1]} : vector<2x8x32xf32> to vector<2x8x8xf32>
    "tpu.trace_start"() <{level = 10 : i32, message = "bqd,bkd->bqk"}> : () -> ()
    %cst_32 = arith.constant dense<0.000000e+00> : vector<2x8x8xf32>
    %82 = tpu.matmul %79, %80, %cst_32 {dimension_numbers = #tpu.dot_dimension_numbers<[2], [2], [1], [1], [0, 0, 0, 1, 1, 1], [0], [0]>} : vector<2x8x8xf32>, vector<2x8x8xf32>, vector<2x8x8xf32> -> vector<2x8x8xf32>
    "tpu.trace_stop"() : () -> ()
    %cst_33 = arith.constant 0.353553385 : f32
    %83 = vector.broadcast %cst_33 : f32 to vector<2x8x8xf32>
    %84 = arith.mulf %82, %83 : vector<2x8x8xf32>
    %cst_34 = arith.constant -1.000000e+09 : f32
    %85 = vector.broadcast %cst_34 : f32 to vector<2x8x8xf32>
    %86 = arith.select %27, %84, %85 : vector<2x8x8xi1>, vector<2x8x8xf32>
    %cst_35 = arith.constant dense<0xFF800000> : vector<2x8xf32>
    %87 = vector.multi_reduction <maximumf>, %86, %cst_35 [2] : vector<2x8x8xf32> to vector<2x8xf32>
    %88 = vector.shape_cast %87 : vector<2x8xf32> to vector<2x8x1xf32>
    %89 = vector.broadcast %88 : vector<2x8x1xf32> to vector<2x8x8xf32>
    %90 = arith.subf %86, %89 : vector<2x8x8xf32>
    %91 = math.exp %90 : vector<2x8x8xf32>
    %cst_36 = arith.constant dense<0.000000e+00> : vector<2x8xf32>
    %92 = vector.multi_reduction <add>, %91, %cst_36 [2] : vector<2x8x8xf32> to vector<2x8xf32>
    %93 = vector.shape_cast %92 : vector<2x8xf32> to vector<2x8x1xf32>
    %94 = tpu.reciprocal %93 {approx = true} : vector<2x8x1xf32> -> vector<2x8x1xf32>
    %95 = vector.broadcast %94 : vector<2x8x1xf32> to vector<2x8x8xf32>
    %96 = arith.mulf %91, %95 : vector<2x8x8xf32>
    "tpu.trace_start"() <{level = 10 : i32, message = "bqk,bkd->bqd"}> : () -> ()
    %cst_37 = arith.constant dense<0.000000e+00> : vector<2x8x8xf32>
    %97 = tpu.matmul %96, %81, %cst_37 {dimension_numbers = #tpu.dot_dimension_numbers<[2], [1], [1], [2], [0, 0, 0, 1, 1, 2], [0], [0]>} : vector<2x8x8xf32>, vector<2x8x8xf32>, vector<2x8x8xf32> -> vector<2x8x8xf32>
    "tpu.trace_stop"() : () -> ()
    %98 = vector.extract_strided_slice %36 {offsets = [0, 0, 24], sizes = [2, 8, 8], strides = [1, 1, 1]} : vector<2x8x32xf32> to vector<2x8x8xf32>
    %99 = vector.extract_strided_slice %38 {offsets = [0, 0, 24], sizes = [2, 8, 8], strides = [1, 1, 1]} : vector<2x8x32xf32> to vector<2x8x8xf32>
    %100 = vector.extract_strided_slice %40 {offsets = [0, 0, 24], sizes = [2, 8, 8], strides = [1, 1, 1]} : vector<2x8x32xf32> to vector<2x8x8xf32>
    "tpu.trace_start"() <{level = 10 : i32, message = "bqd,bkd->bqk"}> : () -> ()
    %cst_38 = arith.constant dense<0.000000e+00> : vector<2x8x8xf32>
    %101 = tpu.matmul %98, %99, %cst_38 {dimension_numbers = #tpu.dot_dimension_numbers<[2], [2], [1], [1], [0, 0, 0, 1, 1, 1], [0], [0]>} : vector<2x8x8xf32>, vector<2x8x8xf32>, vector<2x8x8xf32> -> vector<2x8x8xf32>
    "tpu.trace_stop"() : () -> ()
    %cst_39 = arith.constant 0.353553385 : f32
    %102 = vector.broadcast %cst_39 : f32 to vector<2x8x8xf32>
    %103 = arith.mulf %101, %102 : vector<2x8x8xf32>
    %cst_40 = arith.constant -1.000000e+09 : f32
    %104 = vector.broadcast %cst_40 : f32 to vector<2x8x8xf32>
    %105 = arith.select %27, %103, %104 : vector<2x8x8xi1>, vector<2x8x8xf32>
    %cst_41 = arith.constant dense<0xFF800000> : vector<2x8xf32>
    %106 = vector.multi_reduction <maximumf>, %105, %cst_41 [2] : vector<2x8x8xf32> to vector<2x8xf32>
    %107 = vector.shape_cast %106 : vector<2x8xf32> to vector<2x8x1xf32>
    %108 = vector.broadcast %107 : vector<2x8x1xf32> to vector<2x8x8xf32>
    %109 = arith.subf %105, %108 : vector<2x8x8xf32>
    %110 = math.exp %109 : vector<2x8x8xf32>
    %cst_42 = arith.constant dense<0.000000e+00> : vector<2x8xf32>
    %111 = vector.multi_reduction <add>, %110, %cst_42 [2] : vector<2x8x8xf32> to vector<2x8xf32>
    %112 = vector.shape_cast %111 : vector<2x8xf32> to vector<2x8x1xf32>
    %113 = tpu.reciprocal %112 {approx = true} : vector<2x8x1xf32> -> vector<2x8x1xf32>
    %114 = vector.broadcast %113 : vector<2x8x1xf32> to vector<2x8x8xf32>
    %115 = arith.mulf %110, %114 : vector<2x8x8xf32>
    "tpu.trace_start"() <{level = 10 : i32, message = "bqk,bkd->bqd"}> : () -> ()
    %cst_43 = arith.constant dense<0.000000e+00> : vector<2x8x8xf32>
    %116 = tpu.matmul %115, %100, %cst_43 {dimension_numbers = #tpu.dot_dimension_numbers<[2], [1], [1], [2], [0, 0, 0, 1, 1, 2], [0], [0]>} : vector<2x8x8xf32>, vector<2x8x8xf32>, vector<2x8x8xf32> -> vector<2x8x8xf32>
    "tpu.trace_stop"() : () -> ()
    %117 = tpu.concatenate %59, %78, %97, %116 in 2 : vector<2x8x8xf32>, vector<2x8x8xf32>, vector<2x8x8xf32>, vector<2x8x8xf32> -> vector<2x8x32xf32>
    %118 = vector.shape_cast %117 : vector<2x8x32xf32> to vector<16x32xf32>
    %c0_44 = arith.constant 0 : index
    %c0_45 = arith.constant 0 : index
    %c0_46 = arith.constant 0 : index
    %119 = vector.load %arg7[%c0_44, %c0_45, %c0_46] : memref<2x32x32xf32, #tpu.memory_space<vmem>>, vector<1x32x32xf32>
    %120 = vector.shape_cast %119 : vector<1x32x32xf32> to vector<32x32xf32>
    %cst_47 = arith.constant dense<0.000000e+00> : vector<16x32xf32>
    %121 = tpu.matmul %118, %120, %cst_47 {dimension_numbers = #tpu.dot_dimension_numbers<[1], [0], [0], [1], [0, 0, 1, 1], [], []>} : vector<16x32xf32>, vector<32x32xf32>, vector<16x32xf32> -> vector<16x32xf32>
    %c0_48 = arith.constant 0 : index
    %c0_49 = arith.constant 0 : index
    %c0_50 = arith.constant 0 : index
    %122 = vector.load %arg8[%c0_48, %c0_49, %c0_50] : memref<2x1x32xf32, #tpu.memory_space<vmem>>, vector<1x1x32xf32>
    %123 = vector.shape_cast %122 : vector<1x1x32xf32> to vector<1x32xf32>
    %124 = vector.broadcast %123 : vector<1x32xf32> to vector<16x32xf32>
    %125 = arith.addf %121, %124 : vector<16x32xf32>
    %126 = arith.addf %22, %125 : vector<16x32xf32>
    %c0_51 = arith.constant 0 : index
    %c0_52 = arith.constant 0 : index
    %c0_53 = arith.constant 0 : index
    %127 = vector.load %arg9[%c0_51, %c0_52, %c0_53] : memref<2x1x32xf32, #tpu.memory_space<vmem>>, vector<1x1x32xf32>
    %128 = vector.shape_cast %127 : vector<1x1x32xf32> to vector<1x32xf32>
    %c0_54 = arith.constant 0 : index
    %c0_55 = arith.constant 0 : index
    %c0_56 = arith.constant 0 : index
    %129 = vector.load %arg10[%c0_54, %c0_55, %c0_56] : memref<2x1x32xf32, #tpu.memory_space<vmem>>, vector<1x1x32xf32>
    %130 = vector.shape_cast %129 : vector<1x1x32xf32> to vector<1x32xf32>
    %cst_57 = arith.constant dense<0.000000e+00> : vector<16xf32>
    %131 = vector.multi_reduction <add>, %126, %cst_57 [1] : vector<16x32xf32> to vector<16xf32>
    %132 = vector.shape_cast %131 : vector<16xf32> to vector<16x1xf32>
    %cst_58 = arith.constant 3.200000e+01 : f32
    %133 = vector.broadcast %cst_58 : f32 to vector<16x1xf32>
    %134 = arith.divf %132, %133 : vector<16x1xf32>
    %135 = vector.broadcast %134 : vector<16x1xf32> to vector<16x32xf32>
    %136 = arith.subf %126, %135 : vector<16x32xf32>
    %137 = arith.mulf %136, %136 : vector<16x32xf32>
    %cst_59 = arith.constant dense<0.000000e+00> : vector<16xf32>
    %138 = vector.multi_reduction <add>, %137, %cst_59 [1] : vector<16x32xf32> to vector<16xf32>
    %139 = vector.shape_cast %138 : vector<16xf32> to vector<16x1xf32>
    %cst_60 = arith.constant 3.200000e+01 : f32
    %140 = vector.broadcast %cst_60 : f32 to vector<16x1xf32>
    %141 = arith.divf %139, %140 : vector<16x1xf32>
    %cst_61 = arith.constant 9.99999996E-13 : f32
    %142 = vector.broadcast %cst_61 : f32 to vector<16x1xf32>
    %143 = arith.addf %141, %142 : vector<16x1xf32>
    %144 = math.rsqrt %143 : vector<16x1xf32>
    %145 = vector.broadcast %144 : vector<16x1xf32> to vector<16x32xf32>
    %146 = arith.mulf %136, %145 : vector<16x32xf32>
    %147 = vector.broadcast %128 : vector<1x32xf32> to vector<16x32xf32>
    %148 = arith.mulf %146, %147 : vector<16x32xf32>
    %149 = vector.broadcast %130 : vector<1x32xf32> to vector<16x32xf32>
    %150 = arith.addf %148, %149 : vector<16x32xf32>
    %c0_62 = arith.constant 0 : index
    %c0_63 = arith.constant 0 : index
    %c0_64 = arith.constant 0 : index
    %151 = vector.load %arg11[%c0_62, %c0_63, %c0_64] : memref<2x32x64xf32, #tpu.memory_space<vmem>>, vector<1x32x64xf32>
    %152 = vector.shape_cast %151 : vector<1x32x64xf32> to vector<32x64xf32>
    %cst_65 = arith.constant dense<0.000000e+00> : vector<16x64xf32>
    %153 = tpu.matmul %150, %152, %cst_65 {dimension_numbers = #tpu.dot_dimension_numbers<[1], [0], [0], [1], [0, 0, 1, 1], [], []>} : vector<16x32xf32>, vector<32x64xf32>, vector<16x64xf32> -> vector<16x64xf32>
    %c0_66 = arith.constant 0 : index
    %c0_67 = arith.constant 0 : index
    %c0_68 = arith.constant 0 : index
    %154 = vector.load %arg12[%c0_66, %c0_67, %c0_68] : memref<2x1x64xf32, #tpu.memory_space<vmem>>, vector<1x1x64xf32>
    %155 = vector.shape_cast %154 : vector<1x1x64xf32> to vector<1x64xf32>
    %156 = vector.broadcast %155 : vector<1x64xf32> to vector<16x64xf32>
    %157 = arith.addf %153, %156 : vector<16x64xf32>
    %cst_69 = arith.constant 5.000000e-01 : f32
    %158 = vector.broadcast %cst_69 : f32 to vector<16x64xf32>
    %159 = arith.mulf %158, %157 : vector<16x64xf32>
    %cst_70 = arith.constant 0.707106769 : f32
    %160 = vector.broadcast %cst_70 : f32 to vector<16x64xf32>
    %161 = arith.mulf %157, %160 : vector<16x64xf32>
    %162 = math.erf %161 : vector<16x64xf32>
    %cst_71 = arith.constant 1.000000e+00 : f32
    %163 = vector.broadcast %cst_71 : f32 to vector<16x64xf32>
    %164 = arith.addf %163, %162 : vector<16x64xf32>
    %165 = arith.mulf %159, %164 : vector<16x64xf32>
    %c0_72 = arith.constant 0 : index
    %c0_73 = arith.constant 0 : index
    %c0_74 = arith.constant 0 : index
    %166 = vector.load %arg13[%c0_72, %c0_73, %c0_74] : memref<2x64x32xf32, #tpu.memory_space<vmem>>, vector<1x64x32xf32>
    %167 = vector.shape_cast %166 : vector<1x64x32xf32> to vector<64x32xf32>
    %cst_75 = arith.constant dense<0.000000e+00> : vector<16x32xf32>
    %168 = tpu.matmul %165, %167, %cst_75 {dimension_numbers = #tpu.dot_dimension_numbers<[1], [0], [0], [1], [0, 0, 1, 1], [], []>} : vector<16x64xf32>, vector<64x32xf32>, vector<16x32xf32> -> vector<16x32xf32>
    %c0_76 = arith.constant 0 : index
    %c0_77 = arith.constant 0 : index
    %c0_78 = arith.constant 0 : index
    %169 = vector.load %arg14[%c0_76, %c0_77, %c0_78] : memref<2x1x32xf32, #tpu.memory_space<vmem>>, vector<1x1x32xf32>
    %170 = vector.shape_cast %169 : vector<1x1x32xf32> to vector<1x32xf32>
    %171 = vector.broadcast %170 : vector<1x32xf32> to vector<16x32xf32>
    %172 = arith.addf %168, %171 : vector<16x32xf32>
    %173 = arith.addf %150, %172 : vector<16x32xf32>
    %c0_79 = arith.constant 0 : index
    %c0_80 = arith.constant 0 : index
    %c0_81 = arith.constant 0 : index
    %174 = vector.load %arg15[%c0_79, %c0_80, %c0_81] : memref<2x1x32xf32, #tpu.memory_space<vmem>>, vector<1x1x32xf32>
    %175 = vector.shape_cast %174 : vector<1x1x32xf32> to vector<1x32xf32>
    %c0_82 = arith.constant 0 : index
    %c0_83 = arith.constant 0 : index
    %c0_84 = arith.constant 0 : index
    %176 = vector.load %arg16[%c0_82, %c0_83, %c0_84] : memref<2x1x32xf32, #tpu.memory_space<vmem>>, vector<1x1x32xf32>
    %177 = vector.shape_cast %176 : vector<1x1x32xf32> to vector<1x32xf32>
    %cst_85 = arith.constant dense<0.000000e+00> : vector<16xf32>
    %178 = vector.multi_reduction <add>, %173, %cst_85 [1] : vector<16x32xf32> to vector<16xf32>
    %179 = vector.shape_cast %178 : vector<16xf32> to vector<16x1xf32>
    %cst_86 = arith.constant 3.200000e+01 : f32
    %180 = vector.broadcast %cst_86 : f32 to vector<16x1xf32>
    %181 = arith.divf %179, %180 : vector<16x1xf32>
    %182 = vector.broadcast %181 : vector<16x1xf32> to vector<16x32xf32>
    %183 = arith.subf %173, %182 : vector<16x32xf32>
    %184 = arith.mulf %183, %183 : vector<16x32xf32>
    %cst_87 = arith.constant dense<0.000000e+00> : vector<16xf32>
    %185 = vector.multi_reduction <add>, %184, %cst_87 [1] : vector<16x32xf32> to vector<16xf32>
    %186 = vector.shape_cast %185 : vector<16xf32> to vector<16x1xf32>
    %cst_88 = arith.constant 3.200000e+01 : f32
    %187 = vector.broadcast %cst_88 : f32 to vector<16x1xf32>
    %188 = arith.divf %186, %187 : vector<16x1xf32>
    %cst_89 = arith.constant 9.99999996E-13 : f32
    %189 = vector.broadcast %cst_89 : f32 to vector<16x1xf32>
    %190 = arith.addf %188, %189 : vector<16x1xf32>
    %191 = math.rsqrt %190 : vector<16x1xf32>
    %192 = vector.broadcast %191 : vector<16x1xf32> to vector<16x32xf32>
    %193 = arith.mulf %183, %192 : vector<16x32xf32>
    %194 = vector.broadcast %175 : vector<1x32xf32> to vector<16x32xf32>
    %195 = arith.mulf %193, %194 : vector<16x32xf32>
    %196 = vector.broadcast %177 : vector<1x32xf32> to vector<16x32xf32>
    %197 = arith.addf %195, %196 : vector<16x32xf32>
    %c1 = arith.constant 1 : index
    %c0_90 = arith.constant 0 : index
    %c0_91 = arith.constant 0 : index
    %198 = vector.load %arg5[%c1, %c0_90, %c0_91] : memref<2x32x96xf32, #tpu.memory_space<vmem>>, vector<1x32x96xf32>
    %199 = vector.shape_cast %198 : vector<1x32x96xf32> to vector<32x96xf32>
    %cst_92 = arith.constant dense<0.000000e+00> : vector<16x96xf32>
    %200 = tpu.matmul %197, %199, %cst_92 {dimension_numbers = #tpu.dot_dimension_numbers<[1], [0], [0], [1], [0, 0, 1, 1], [], []>} : vector<16x32xf32>, vector<32x96xf32>, vector<16x96xf32> -> vector<16x96xf32>
    %c1_93 = arith.constant 1 : index
    %c0_94 = arith.constant 0 : index
    %c0_95 = arith.constant 0 : index
    %201 = vector.load %arg6[%c1_93, %c0_94, %c0_95] : memref<2x1x96xf32, #tpu.memory_space<vmem>>, vector<1x1x96xf32>
    %202 = vector.shape_cast %201 : vector<1x1x96xf32> to vector<1x96xf32>
    %203 = vector.broadcast %202 : vector<1x96xf32> to vector<16x96xf32>
    %204 = arith.addf %200, %203 : vector<16x96xf32>
    %205 = vector.extract_strided_slice %204 {offsets = [0, 0], sizes = [16, 32], strides = [1, 1]} : vector<16x96xf32> to vector<16x32xf32>
    %206 = vector.shape_cast %205 : vector<16x32xf32> to vector<2x8x32xf32>
    %207 = vector.extract_strided_slice %204 {offsets = [0, 32], sizes = [16, 32], strides = [1, 1]} : vector<16x96xf32> to vector<16x32xf32>
    %208 = vector.shape_cast %207 : vector<16x32xf32> to vector<2x8x32xf32>
    %209 = vector.extract_strided_slice %204 {offsets = [0, 64], sizes = [16, 32], strides = [1, 1]} : vector<16x96xf32> to vector<16x32xf32>
    %210 = vector.shape_cast %209 : vector<16x32xf32> to vector<2x8x32xf32>
    %211 = vector.extract_strided_slice %206 {offsets = [0, 0, 0], sizes = [2, 8, 8], strides = [1, 1, 1]} : vector<2x8x32xf32> to vector<2x8x8xf32>
    %212 = vector.extract_strided_slice %208 {offsets = [0, 0, 0], sizes = [2, 8, 8], strides = [1, 1, 1]} : vector<2x8x32xf32> to vector<2x8x8xf32>
    %213 = vector.extract_strided_slice %210 {offsets = [0, 0, 0], sizes = [2, 8, 8], strides = [1, 1, 1]} : vector<2x8x32xf32> to vector<2x8x8xf32>
    "tpu.trace_start"() <{level = 10 : i32, message = "bqd,bkd->bqk"}> : () -> ()
    %cst_96 = arith.constant dense<0.000000e+00> : vector<2x8x8xf32>
    %214 = tpu.matmul %211, %212, %cst_96 {dimension_numbers = #tpu.dot_dimension_numbers<[2], [2], [1], [1], [0, 0, 0, 1, 1, 1], [0], [0]>} : vector<2x8x8xf32>, vector<2x8x8xf32>, vector<2x8x8xf32> -> vector<2x8x8xf32>
    "tpu.trace_stop"() : () -> ()
    %cst_97 = arith.constant 0.353553385 : f32
    %215 = vector.broadcast %cst_97 : f32 to vector<2x8x8xf32>
    %216 = arith.mulf %214, %215 : vector<2x8x8xf32>
    %cst_98 = arith.constant -1.000000e+09 : f32
    %217 = vector.broadcast %cst_98 : f32 to vector<2x8x8xf32>
    %218 = arith.select %27, %216, %217 : vector<2x8x8xi1>, vector<2x8x8xf32>
    %cst_99 = arith.constant dense<0xFF800000> : vector<2x8xf32>
    %219 = vector.multi_reduction <maximumf>, %218, %cst_99 [2] : vector<2x8x8xf32> to vector<2x8xf32>
    %220 = vector.shape_cast %219 : vector<2x8xf32> to vector<2x8x1xf32>
    %221 = vector.broadcast %220 : vector<2x8x1xf32> to vector<2x8x8xf32>
    %222 = arith.subf %218, %221 : vector<2x8x8xf32>
    %223 = math.exp %222 : vector<2x8x8xf32>
    %cst_100 = arith.constant dense<0.000000e+00> : vector<2x8xf32>
    %224 = vector.multi_reduction <add>, %223, %cst_100 [2] : vector<2x8x8xf32> to vector<2x8xf32>
    %225 = vector.shape_cast %224 : vector<2x8xf32> to vector<2x8x1xf32>
    %226 = tpu.reciprocal %225 {approx = true} : vector<2x8x1xf32> -> vector<2x8x1xf32>
    %227 = vector.broadcast %226 : vector<2x8x1xf32> to vector<2x8x8xf32>
    %228 = arith.mulf %223, %227 : vector<2x8x8xf32>
    "tpu.trace_start"() <{level = 10 : i32, message = "bqk,bkd->bqd"}> : () -> ()
    %cst_101 = arith.constant dense<0.000000e+00> : vector<2x8x8xf32>
    %229 = tpu.matmul %228, %213, %cst_101 {dimension_numbers = #tpu.dot_dimension_numbers<[2], [1], [1], [2], [0, 0, 0, 1, 1, 2], [0], [0]>} : vector<2x8x8xf32>, vector<2x8x8xf32>, vector<2x8x8xf32> -> vector<2x8x8xf32>
    "tpu.trace_stop"() : () -> ()
    %230 = vector.extract_strided_slice %206 {offsets = [0, 0, 8], sizes = [2, 8, 8], strides = [1, 1, 1]} : vector<2x8x32xf32> to vector<2x8x8xf32>
    %231 = vector.extract_strided_slice %208 {offsets = [0, 0, 8], sizes = [2, 8, 8], strides = [1, 1, 1]} : vector<2x8x32xf32> to vector<2x8x8xf32>
    %232 = vector.extract_strided_slice %210 {offsets = [0, 0, 8], sizes = [2, 8, 8], strides = [1, 1, 1]} : vector<2x8x32xf32> to vector<2x8x8xf32>
    "tpu.trace_start"() <{level = 10 : i32, message = "bqd,bkd->bqk"}> : () -> ()
    %cst_102 = arith.constant dense<0.000000e+00> : vector<2x8x8xf32>
    %233 = tpu.matmul %230, %231, %cst_102 {dimension_numbers = #tpu.dot_dimension_numbers<[2], [2], [1], [1], [0, 0, 0, 1, 1, 1], [0], [0]>} : vector<2x8x8xf32>, vector<2x8x8xf32>, vector<2x8x8xf32> -> vector<2x8x8xf32>
    "tpu.trace_stop"() : () -> ()
    %cst_103 = arith.constant 0.353553385 : f32
    %234 = vector.broadcast %cst_103 : f32 to vector<2x8x8xf32>
    %235 = arith.mulf %233, %234 : vector<2x8x8xf32>
    %cst_104 = arith.constant -1.000000e+09 : f32
    %236 = vector.broadcast %cst_104 : f32 to vector<2x8x8xf32>
    %237 = arith.select %27, %235, %236 : vector<2x8x8xi1>, vector<2x8x8xf32>
    %cst_105 = arith.constant dense<0xFF800000> : vector<2x8xf32>
    %238 = vector.multi_reduction <maximumf>, %237, %cst_105 [2] : vector<2x8x8xf32> to vector<2x8xf32>
    %239 = vector.shape_cast %238 : vector<2x8xf32> to vector<2x8x1xf32>
    %240 = vector.broadcast %239 : vector<2x8x1xf32> to vector<2x8x8xf32>
    %241 = arith.subf %237, %240 : vector<2x8x8xf32>
    %242 = math.exp %241 : vector<2x8x8xf32>
    %cst_106 = arith.constant dense<0.000000e+00> : vector<2x8xf32>
    %243 = vector.multi_reduction <add>, %242, %cst_106 [2] : vector<2x8x8xf32> to vector<2x8xf32>
    %244 = vector.shape_cast %243 : vector<2x8xf32> to vector<2x8x1xf32>
    %245 = tpu.reciprocal %244 {approx = true} : vector<2x8x1xf32> -> vector<2x8x1xf32>
    %246 = vector.broadcast %245 : vector<2x8x1xf32> to vector<2x8x8xf32>
    %247 = arith.mulf %242, %246 : vector<2x8x8xf32>
    "tpu.trace_start"() <{level = 10 : i32, message = "bqk,bkd->bqd"}> : () -> ()
    %cst_107 = arith.constant dense<0.000000e+00> : vector<2x8x8xf32>
    %248 = tpu.matmul %247, %232, %cst_107 {dimension_numbers = #tpu.dot_dimension_numbers<[2], [1], [1], [2], [0, 0, 0, 1, 1, 2], [0], [0]>} : vector<2x8x8xf32>, vector<2x8x8xf32>, vector<2x8x8xf32> -> vector<2x8x8xf32>
    "tpu.trace_stop"() : () -> ()
    %249 = vector.extract_strided_slice %206 {offsets = [0, 0, 16], sizes = [2, 8, 8], strides = [1, 1, 1]} : vector<2x8x32xf32> to vector<2x8x8xf32>
    %250 = vector.extract_strided_slice %208 {offsets = [0, 0, 16], sizes = [2, 8, 8], strides = [1, 1, 1]} : vector<2x8x32xf32> to vector<2x8x8xf32>
    %251 = vector.extract_strided_slice %210 {offsets = [0, 0, 16], sizes = [2, 8, 8], strides = [1, 1, 1]} : vector<2x8x32xf32> to vector<2x8x8xf32>
    "tpu.trace_start"() <{level = 10 : i32, message = "bqd,bkd->bqk"}> : () -> ()
    %cst_108 = arith.constant dense<0.000000e+00> : vector<2x8x8xf32>
    %252 = tpu.matmul %249, %250, %cst_108 {dimension_numbers = #tpu.dot_dimension_numbers<[2], [2], [1], [1], [0, 0, 0, 1, 1, 1], [0], [0]>} : vector<2x8x8xf32>, vector<2x8x8xf32>, vector<2x8x8xf32> -> vector<2x8x8xf32>
    "tpu.trace_stop"() : () -> ()
    %cst_109 = arith.constant 0.353553385 : f32
    %253 = vector.broadcast %cst_109 : f32 to vector<2x8x8xf32>
    %254 = arith.mulf %252, %253 : vector<2x8x8xf32>
    %cst_110 = arith.constant -1.000000e+09 : f32
    %255 = vector.broadcast %cst_110 : f32 to vector<2x8x8xf32>
    %256 = arith.select %27, %254, %255 : vector<2x8x8xi1>, vector<2x8x8xf32>
    %cst_111 = arith.constant dense<0xFF800000> : vector<2x8xf32>
    %257 = vector.multi_reduction <maximumf>, %256, %cst_111 [2] : vector<2x8x8xf32> to vector<2x8xf32>
    %258 = vector.shape_cast %257 : vector<2x8xf32> to vector<2x8x1xf32>
    %259 = vector.broadcast %258 : vector<2x8x1xf32> to vector<2x8x8xf32>
    %260 = arith.subf %256, %259 : vector<2x8x8xf32>
    %261 = math.exp %260 : vector<2x8x8xf32>
    %cst_112 = arith.constant dense<0.000000e+00> : vector<2x8xf32>
    %262 = vector.multi_reduction <add>, %261, %cst_112 [2] : vector<2x8x8xf32> to vector<2x8xf32>
    %263 = vector.shape_cast %262 : vector<2x8xf32> to vector<2x8x1xf32>
    %264 = tpu.reciprocal %263 {approx = true} : vector<2x8x1xf32> -> vector<2x8x1xf32>
    %265 = vector.broadcast %264 : vector<2x8x1xf32> to vector<2x8x8xf32>
    %266 = arith.mulf %261, %265 : vector<2x8x8xf32>
    "tpu.trace_start"() <{level = 10 : i32, message = "bqk,bkd->bqd"}> : () -> ()
    %cst_113 = arith.constant dense<0.000000e+00> : vector<2x8x8xf32>
    %267 = tpu.matmul %266, %251, %cst_113 {dimension_numbers = #tpu.dot_dimension_numbers<[2], [1], [1], [2], [0, 0, 0, 1, 1, 2], [0], [0]>} : vector<2x8x8xf32>, vector<2x8x8xf32>, vector<2x8x8xf32> -> vector<2x8x8xf32>
    "tpu.trace_stop"() : () -> ()
    %268 = vector.extract_strided_slice %206 {offsets = [0, 0, 24], sizes = [2, 8, 8], strides = [1, 1, 1]} : vector<2x8x32xf32> to vector<2x8x8xf32>
    %269 = vector.extract_strided_slice %208 {offsets = [0, 0, 24], sizes = [2, 8, 8], strides = [1, 1, 1]} : vector<2x8x32xf32> to vector<2x8x8xf32>
    %270 = vector.extract_strided_slice %210 {offsets = [0, 0, 24], sizes = [2, 8, 8], strides = [1, 1, 1]} : vector<2x8x32xf32> to vector<2x8x8xf32>
    "tpu.trace_start"() <{level = 10 : i32, message = "bqd,bkd->bqk"}> : () -> ()
    %cst_114 = arith.constant dense<0.000000e+00> : vector<2x8x8xf32>
    %271 = tpu.matmul %268, %269, %cst_114 {dimension_numbers = #tpu.dot_dimension_numbers<[2], [2], [1], [1], [0, 0, 0, 1, 1, 1], [0], [0]>} : vector<2x8x8xf32>, vector<2x8x8xf32>, vector<2x8x8xf32> -> vector<2x8x8xf32>
    "tpu.trace_stop"() : () -> ()
    %cst_115 = arith.constant 0.353553385 : f32
    %272 = vector.broadcast %cst_115 : f32 to vector<2x8x8xf32>
    %273 = arith.mulf %271, %272 : vector<2x8x8xf32>
    %cst_116 = arith.constant -1.000000e+09 : f32
    %274 = vector.broadcast %cst_116 : f32 to vector<2x8x8xf32>
    %275 = arith.select %27, %273, %274 : vector<2x8x8xi1>, vector<2x8x8xf32>
    %cst_117 = arith.constant dense<0xFF800000> : vector<2x8xf32>
    %276 = vector.multi_reduction <maximumf>, %275, %cst_117 [2] : vector<2x8x8xf32> to vector<2x8xf32>
    %277 = vector.shape_cast %276 : vector<2x8xf32> to vector<2x8x1xf32>
    %278 = vector.broadcast %277 : vector<2x8x1xf32> to vector<2x8x8xf32>
    %279 = arith.subf %275, %278 : vector<2x8x8xf32>
    %280 = math.exp %279 : vector<2x8x8xf32>
    %cst_118 = arith.constant dense<0.000000e+00> : vector<2x8xf32>
    %281 = vector.multi_reduction <add>, %280, %cst_118 [2] : vector<2x8x8xf32> to vector<2x8xf32>
    %282 = vector.shape_cast %281 : vector<2x8xf32> to vector<2x8x1xf32>
    %283 = tpu.reciprocal %282 {approx = true} : vector<2x8x1xf32> -> vector<2x8x1xf32>
    %284 = vector.broadcast %283 : vector<2x8x1xf32> to vector<2x8x8xf32>
    %285 = arith.mulf %280, %284 : vector<2x8x8xf32>
    "tpu.trace_start"() <{level = 10 : i32, message = "bqk,bkd->bqd"}> : () -> ()
    %cst_119 = arith.constant dense<0.000000e+00> : vector<2x8x8xf32>
    %286 = tpu.matmul %285, %270, %cst_119 {dimension_numbers = #tpu.dot_dimension_numbers<[2], [1], [1], [2], [0, 0, 0, 1, 1, 2], [0], [0]>} : vector<2x8x8xf32>, vector<2x8x8xf32>, vector<2x8x8xf32> -> vector<2x8x8xf32>
    "tpu.trace_stop"() : () -> ()
    %287 = tpu.concatenate %229, %248, %267, %286 in 2 : vector<2x8x8xf32>, vector<2x8x8xf32>, vector<2x8x8xf32>, vector<2x8x8xf32> -> vector<2x8x32xf32>
    %288 = vector.shape_cast %287 : vector<2x8x32xf32> to vector<16x32xf32>
    %c1_120 = arith.constant 1 : index
    %c0_121 = arith.constant 0 : index
    %c0_122 = arith.constant 0 : index
    %289 = vector.load %arg7[%c1_120, %c0_121, %c0_122] : memref<2x32x32xf32, #tpu.memory_space<vmem>>, vector<1x32x32xf32>
    %290 = vector.shape_cast %289 : vector<1x32x32xf32> to vector<32x32xf32>
    %cst_123 = arith.constant dense<0.000000e+00> : vector<16x32xf32>
    %291 = tpu.matmul %288, %290, %cst_123 {dimension_numbers = #tpu.dot_dimension_numbers<[1], [0], [0], [1], [0, 0, 1, 1], [], []>} : vector<16x32xf32>, vector<32x32xf32>, vector<16x32xf32> -> vector<16x32xf32>
    %c1_124 = arith.constant 1 : index
    %c0_125 = arith.constant 0 : index
    %c0_126 = arith.constant 0 : index
    %292 = vector.load %arg8[%c1_124, %c0_125, %c0_126] : memref<2x1x32xf32, #tpu.memory_space<vmem>>, vector<1x1x32xf32>
    %293 = vector.shape_cast %292 : vector<1x1x32xf32> to vector<1x32xf32>
    %294 = vector.broadcast %293 : vector<1x32xf32> to vector<16x32xf32>
    %295 = arith.addf %291, %294 : vector<16x32xf32>
    %296 = arith.addf %197, %295 : vector<16x32xf32>
    %c1_127 = arith.constant 1 : index
    %c0_128 = arith.constant 0 : index
    %c0_129 = arith.constant 0 : index
    %297 = vector.load %arg9[%c1_127, %c0_128, %c0_129] : memref<2x1x32xf32, #tpu.memory_space<vmem>>, vector<1x1x32xf32>
    %298 = vector.shape_cast %297 : vector<1x1x32xf32> to vector<1x32xf32>
    %c1_130 = arith.constant 1 : index
    %c0_131 = arith.constant 0 : index
    %c0_132 = arith.constant 0 : index
    %299 = vector.load %arg10[%c1_130, %c0_131, %c0_132] : memref<2x1x32xf32, #tpu.memory_space<vmem>>, vector<1x1x32xf32>
    %300 = vector.shape_cast %299 : vector<1x1x32xf32> to vector<1x32xf32>
    %cst_133 = arith.constant dense<0.000000e+00> : vector<16xf32>
    %301 = vector.multi_reduction <add>, %296, %cst_133 [1] : vector<16x32xf32> to vector<16xf32>
    %302 = vector.shape_cast %301 : vector<16xf32> to vector<16x1xf32>
    %cst_134 = arith.constant 3.200000e+01 : f32
    %303 = vector.broadcast %cst_134 : f32 to vector<16x1xf32>
    %304 = arith.divf %302, %303 : vector<16x1xf32>
    %305 = vector.broadcast %304 : vector<16x1xf32> to vector<16x32xf32>
    %306 = arith.subf %296, %305 : vector<16x32xf32>
    %307 = arith.mulf %306, %306 : vector<16x32xf32>
    %cst_135 = arith.constant dense<0.000000e+00> : vector<16xf32>
    %308 = vector.multi_reduction <add>, %307, %cst_135 [1] : vector<16x32xf32> to vector<16xf32>
    %309 = vector.shape_cast %308 : vector<16xf32> to vector<16x1xf32>
    %cst_136 = arith.constant 3.200000e+01 : f32
    %310 = vector.broadcast %cst_136 : f32 to vector<16x1xf32>
    %311 = arith.divf %309, %310 : vector<16x1xf32>
    %cst_137 = arith.constant 9.99999996E-13 : f32
    %312 = vector.broadcast %cst_137 : f32 to vector<16x1xf32>
    %313 = arith.addf %311, %312 : vector<16x1xf32>
    %314 = math.rsqrt %313 : vector<16x1xf32>
    %315 = vector.broadcast %314 : vector<16x1xf32> to vector<16x32xf32>
    %316 = arith.mulf %306, %315 : vector<16x32xf32>
    %317 = vector.broadcast %298 : vector<1x32xf32> to vector<16x32xf32>
    %318 = arith.mulf %316, %317 : vector<16x32xf32>
    %319 = vector.broadcast %300 : vector<1x32xf32> to vector<16x32xf32>
    %320 = arith.addf %318, %319 : vector<16x32xf32>
    %c1_138 = arith.constant 1 : index
    %c0_139 = arith.constant 0 : index
    %c0_140 = arith.constant 0 : index
    %321 = vector.load %arg11[%c1_138, %c0_139, %c0_140] : memref<2x32x64xf32, #tpu.memory_space<vmem>>, vector<1x32x64xf32>
    %322 = vector.shape_cast %321 : vector<1x32x64xf32> to vector<32x64xf32>
    %cst_141 = arith.constant dense<0.000000e+00> : vector<16x64xf32>
    %323 = tpu.matmul %320, %322, %cst_141 {dimension_numbers = #tpu.dot_dimension_numbers<[1], [0], [0], [1], [0, 0, 1, 1], [], []>} : vector<16x32xf32>, vector<32x64xf32>, vector<16x64xf32> -> vector<16x64xf32>
    %c1_142 = arith.constant 1 : index
    %c0_143 = arith.constant 0 : index
    %c0_144 = arith.constant 0 : index
    %324 = vector.load %arg12[%c1_142, %c0_143, %c0_144] : memref<2x1x64xf32, #tpu.memory_space<vmem>>, vector<1x1x64xf32>
    %325 = vector.shape_cast %324 : vector<1x1x64xf32> to vector<1x64xf32>
    %326 = vector.broadcast %325 : vector<1x64xf32> to vector<16x64xf32>
    %327 = arith.addf %323, %326 : vector<16x64xf32>
    %cst_145 = arith.constant 5.000000e-01 : f32
    %328 = vector.broadcast %cst_145 : f32 to vector<16x64xf32>
    %329 = arith.mulf %328, %327 : vector<16x64xf32>
    %cst_146 = arith.constant 0.707106769 : f32
    %330 = vector.broadcast %cst_146 : f32 to vector<16x64xf32>
    %331 = arith.mulf %327, %330 : vector<16x64xf32>
    %332 = math.erf %331 : vector<16x64xf32>
    %cst_147 = arith.constant 1.000000e+00 : f32
    %333 = vector.broadcast %cst_147 : f32 to vector<16x64xf32>
    %334 = arith.addf %333, %332 : vector<16x64xf32>
    %335 = arith.mulf %329, %334 : vector<16x64xf32>
    %c1_148 = arith.constant 1 : index
    %c0_149 = arith.constant 0 : index
    %c0_150 = arith.constant 0 : index
    %336 = vector.load %arg13[%c1_148, %c0_149, %c0_150] : memref<2x64x32xf32, #tpu.memory_space<vmem>>, vector<1x64x32xf32>
    %337 = vector.shape_cast %336 : vector<1x64x32xf32> to vector<64x32xf32>
    %cst_151 = arith.constant dense<0.000000e+00> : vector<16x32xf32>
    %338 = tpu.matmul %335, %337, %cst_151 {dimension_numbers = #tpu.dot_dimension_numbers<[1], [0], [0], [1], [0, 0, 1, 1], [], []>} : vector<16x64xf32>, vector<64x32xf32>, vector<16x32xf32> -> vector<16x32xf32>
    %c1_152 = arith.constant 1 : index
    %c0_153 = arith.constant 0 : index
    %c0_154 = arith.constant 0 : index
    %339 = vector.load %arg14[%c1_152, %c0_153, %c0_154] : memref<2x1x32xf32, #tpu.memory_space<vmem>>, vector<1x1x32xf32>
    %340 = vector.shape_cast %339 : vector<1x1x32xf32> to vector<1x32xf32>
    %341 = vector.broadcast %340 : vector<1x32xf32> to vector<16x32xf32>
    %342 = arith.addf %338, %341 : vector<16x32xf32>
    %343 = arith.addf %320, %342 : vector<16x32xf32>
    %c1_155 = arith.constant 1 : index
    %c0_156 = arith.constant 0 : index
    %c0_157 = arith.constant 0 : index
    %344 = vector.load %arg15[%c1_155, %c0_156, %c0_157] : memref<2x1x32xf32, #tpu.memory_space<vmem>>, vector<1x1x32xf32>
    %345 = vector.shape_cast %344 : vector<1x1x32xf32> to vector<1x32xf32>
    %c1_158 = arith.constant 1 : index
    %c0_159 = arith.constant 0 : index
    %c0_160 = arith.constant 0 : index
    %346 = vector.load %arg16[%c1_158, %c0_159, %c0_160] : memref<2x1x32xf32, #tpu.memory_space<vmem>>, vector<1x1x32xf32>
    %347 = vector.shape_cast %346 : vector<1x1x32xf32> to vector<1x32xf32>
    %cst_161 = arith.constant dense<0.000000e+00> : vector<16xf32>
    %348 = vector.multi_reduction <add>, %343, %cst_161 [1] : vector<16x32xf32> to vector<16xf32>
    %349 = vector.shape_cast %348 : vector<16xf32> to vector<16x1xf32>
    %cst_162 = arith.constant 3.200000e+01 : f32
    %350 = vector.broadcast %cst_162 : f32 to vector<16x1xf32>
    %351 = arith.divf %349, %350 : vector<16x1xf32>
    %352 = vector.broadcast %351 : vector<16x1xf32> to vector<16x32xf32>
    %353 = arith.subf %343, %352 : vector<16x32xf32>
    %354 = arith.mulf %353, %353 : vector<16x32xf32>
    %cst_163 = arith.constant dense<0.000000e+00> : vector<16xf32>
    %355 = vector.multi_reduction <add>, %354, %cst_163 [1] : vector<16x32xf32> to vector<16xf32>
    %356 = vector.shape_cast %355 : vector<16xf32> to vector<16x1xf32>
    %cst_164 = arith.constant 3.200000e+01 : f32
    %357 = vector.broadcast %cst_164 : f32 to vector<16x1xf32>
    %358 = arith.divf %356, %357 : vector<16x1xf32>
    %cst_165 = arith.constant 9.99999996E-13 : f32
    %359 = vector.broadcast %cst_165 : f32 to vector<16x1xf32>
    %360 = arith.addf %358, %359 : vector<16x1xf32>
    %361 = math.rsqrt %360 : vector<16x1xf32>
    %362 = vector.broadcast %361 : vector<16x1xf32> to vector<16x32xf32>
    %363 = arith.mulf %353, %362 : vector<16x32xf32>
    %364 = vector.broadcast %345 : vector<1x32xf32> to vector<16x32xf32>
    %365 = arith.mulf %363, %364 : vector<16x32xf32>
    %366 = vector.broadcast %347 : vector<1x32xf32> to vector<16x32xf32>
    %367 = arith.addf %365, %366 : vector<16x32xf32>
    %c0_166 = arith.constant 0 : index
    %c0_167 = arith.constant 0 : index
    %368 = vector.load %arg2[%c0_166, %c0_167] : memref<2x16xf32, #tpu.memory_space<vmem>>, vector<2x16xf32>
    %cst_168 = arith.constant dense<0.000000e+00> : vector<2x32xf32>
    %369 = tpu.matmul %368, %367, %cst_168 {dimension_numbers = #tpu.dot_dimension_numbers<[1], [0], [0], [1], [0, 0, 1, 1], [], []>} : vector<2x16xf32>, vector<16x32xf32>, vector<2x32xf32> -> vector<2x32xf32>
    %c0_169 = arith.constant 0 : index
    %c0_170 = arith.constant 0 : index
    %370 = vector.load %arg17[%c0_169, %c0_170] : memref<32x32xf32, #tpu.memory_space<vmem>>, vector<32x32xf32>
    %cst_171 = arith.constant dense<0.000000e+00> : vector<2x32xf32>
    %371 = tpu.matmul %369, %370, %cst_171 {dimension_numbers = #tpu.dot_dimension_numbers<[1], [0], [0], [1], [0, 0, 1, 1], [], []>} : vector<2x32xf32>, vector<32x32xf32>, vector<2x32xf32> -> vector<2x32xf32>
    %c0_172 = arith.constant 0 : index
    %c0_173 = arith.constant 0 : index
    %372 = vector.load %arg18[%c0_172, %c0_173] : memref<1x32xf32, #tpu.memory_space<vmem>>, vector<1x32xf32>
    %373 = vector.broadcast %372 : vector<1x32xf32> to vector<2x32xf32>
    %374 = arith.addf %371, %373 : vector<2x32xf32>
    %375 = math.tanh %374 : vector<2x32xf32>
    %c0_174 = arith.constant 0 : index
    %c0_175 = arith.constant 0 : index
    %376 = vector.load %arg19[%c0_174, %c0_175] : memref<32x64xf32, #tpu.memory_space<vmem>>, vector<32x64xf32>
    %cst_176 = arith.constant dense<0.000000e+00> : vector<2x64xf32>
    %377 = tpu.matmul %375, %376, %cst_176 {dimension_numbers = #tpu.dot_dimension_numbers<[1], [0], [0], [1], [0, 0, 1, 1], [], []>} : vector<2x32xf32>, vector<32x64xf32>, vector<2x64xf32> -> vector<2x64xf32>
    %c0_177 = arith.constant 0 : index
    %c0_178 = arith.constant 0 : index
    %378 = vector.load %arg20[%c0_177, %c0_178] : memref<1x64xf32, #tpu.memory_space<vmem>>, vector<1x64xf32>
    %379 = vector.broadcast %378 : vector<1x64xf32> to vector<2x64xf32>
    %380 = arith.addf %377, %379 : vector<2x64xf32>
    %381 = math.tanh %380 : vector<2x64xf32>
    %c0_179 = arith.constant 0 : index
    %c0_180 = arith.constant 0 : index
    %382 = vector.load %arg21[%c0_179, %c0_180] : memref<64x4xf32, #tpu.memory_space<vmem>>, vector<64x4xf32>
    %cst_181 = arith.constant dense<0.000000e+00> : vector<2x4xf32>
    %383 = tpu.matmul %381, %382, %cst_181 {dimension_numbers = #tpu.dot_dimension_numbers<[1], [0], [0], [1], [0, 0, 1, 1], [], []>} : vector<2x64xf32>, vector<64x4xf32>, vector<2x4xf32> -> vector<2x4xf32>
    %c0_182 = arith.constant 0 : index
    %c0_183 = arith.constant 0 : index
    %384 = vector.load %arg22[%c0_182, %c0_183] : memref<1x4xf32, #tpu.memory_space<vmem>>, vector<1x4xf32>
    %385 = vector.broadcast %384 : vector<1x4xf32> to vector<2x4xf32>
    %386 = arith.addf %383, %385 : vector<2x4xf32>
    %c0_184 = arith.constant 0 : index
    %c0_185 = arith.constant 0 : index
    %387 = vector.load %arg23[%c0_184, %c0_185] : memref<2x4xf32, #tpu.memory_space<vmem>>, vector<2x4xf32>
    tpu.vector_store %arg23[%c0_184, %c0_185], %386 {strides = array<i32>} : memref<2x4xf32, #tpu.memory_space<vmem>>, vector<2x4xf32>,
    return
  }
}

</mosaic_0001>

<llo_original>
// kernel: attacker_forward.1
$region0: #{attacker_forward.1}
  #allocation0 [shape = 'u32[]', space=smem, size = 0x4, offset = 0x4, fixed_abs, tag = 'smem constant byte address 0x4 - core index']
  #allocation1 [shape = 'u32[144,128]{1,0:T(1,128)}', space=vmem, size = 0x12000, scoped, tag = 'internal scratch']
  %s0 = inlined_call_operand.vmem [shape: f32[16,32], index: 0, kind: input, shape index: {}]
  %s1 = inlined_call_operand.vmem [shape: f32[2,1,8], index: 1, kind: input, shape index: {}]
  %s2 = inlined_call_operand.vmem [shape: f32[2,16], index: 2, kind: input, shape index: {}]
  %s3 = inlined_call_operand.vmem [shape: f32[1,32], index: 3, kind: input, shape index: {}]
  %s4 = inlined_call_operand.vmem [shape: f32[1,32], index: 4, kind: input, shape index: {}]
  %s5 = inlined_call_operand.vmem [shape: f32[2,32,96], index: 5, kind: input, shape index: {}]
  %s6 = inlined_call_operand.vmem [shape: f32[2,1,96], index: 6, kind: input, shape index: {}]
  %s7 = inlined_call_operand.vmem [shape: f32[2,32,32], index: 7, kind: input, shape index: {}]
  %s8 = inlined_call_operand.vmem [shape: f32[2,1,32], index: 8, kind: input, shape index: {}]
  %s9 = inlined_call_operand.vmem [shape: f32[2,1,32], index: 9, kind: input, shape index: {}]
  %s10 = inlined_call_operand.vmem [shape: f32[2,1,32], index: 10, kind: input, shape index: {}]
  %s11 = inlined_call_operand.vmem [shape: f32[2,32,64], index: 11, kind: input, shape index: {}]
  %s12 = inlined_call_operand.vmem [shape: f32[2,1,64], index: 12, kind: input, shape index: {}]
  %s13 = inlined_call_operand.vmem [shape: f32[2,64,32], index: 13, kind: input, shape index: {}]
  %s14 = inlined_call_operand.vmem [shape: f32[2,1,32], index: 14, kind: input, shape index: {}]
  %s15 = inlined_call_operand.vmem [shape: f32[2,1,32], index: 15, kind: input, shape index: {}]
  %s16 = inlined_call_operand.vmem [shape: f32[2,1,32], index: 16, kind: input, shape index: {}]
  %s17 = inlined_call_operand.vmem [shape: f32[32,32], index: 17, kind: input, shape index: {}]
  %s18 = inlined_call_operand.vmem [shape: f32[1,32], index: 18, kind: input, shape index: {}]
  %s19 = inlined_call_operand.vmem [shape: f32[32,64], index: 19, kind: input, shape index: {}]
  %s20 = inlined_call_operand.vmem [shape: f32[1,64], index: 20, kind: input, shape index: {}]
  %s21 = inlined_call_operand.vmem [shape: f32[64,4], index: 21, kind: input, shape index: {}]
  %s22 = inlined_call_operand.vmem [shape: f32[1,4], index: 22, kind: input, shape index: {}]
  %s23 = inlined_call_operand.vmem [shape: f32[2,4], index: 23, kind: output, shape index: {}]
  %s24 = sld [smem:[#allocation0]]
  $region102: #{attacker_forward.1} parent=0
    _
  %s26 = ssub.s32 1, %s24
  %s27 = scalar_select 0, %s26, %s24
  // Predicated region
  $region2: #{attacker_forward.1} parent=0 // pred_check
    _
  $region3: #{attacker_forward.1} parent=0 // pred_check_branch
    %29 = sbr.rel (0) target = $region5
  $region4: #{attacker_forward.1} parent=0 // pred_region
    _
  $region5: #{attacker_forward.1} parent=0 // pred_fallthru
    _
  // Predicated region
  $region6: #{attacker_forward.1} parent=0 // pred_check
    _
  $region7: #{attacker_forward.1} parent=0 // pred_check_branch
    %31 = sbr.rel (0) target = $region9
  $region8: #{attacker_forward.1} parent=0 // pred_region
    _
  $region9: #{attacker_forward.1} parent=0 // pred_fallthru
    _
  // Predicated region
  $region10: #{attacker_forward.1} parent=0 // pred_check
    _
  $region11: #{attacker_forward.1} parent=0 // pred_check_branch
    %33 = sbr.rel (0) target = $region13
  $region12: #{attacker_forward.1} parent=0 // pred_region
    _
  $region13: #{attacker_forward.1} parent=0 // pred_fallthru
    _
  // Predicated region
  $region14: #{attacker_forward.1} parent=0 // pred_check
    _
  $region15: #{attacker_forward.1} parent=0 // pred_check_branch
    %35 = sbr.rel (0) target = $region17
  $region16: #{attacker_forward.1} parent=0 // pred_region
    _
  $region17: #{attacker_forward.1} parent=0 // pred_fallthru
    _
  // Predicated region
  $region18: #{attacker_forward.1} parent=0 // pred_check
    _
  $region19: #{attacker_forward.1} parent=0 // pred_check_branch
    %37 = sbr.rel (0) target = $region21
  $region20: #{attacker_forward.1} parent=0 // pred_region
    _
  $region21: #{attacker_forward.1} parent=0 // pred_fallthru
    _
  // Predicated region
  $region22: #{attacker_forward.1} parent=0 // pred_check
    _
  $region23: #{attacker_forward.1} parent=0 // pred_check_branch
    %39 = sbr.rel (0) target = $region25
  $region24: #{attacker_forward.1} parent=0 // pred_region
    _
  $region25: #{attacker_forward.1} parent=0 // pred_fallthru
    _
  // Predicated region
  $region26: #{attacker_forward.1} parent=0 // pred_check
    _
  $region27: #{attacker_forward.1} parent=0 // pred_check_branch
    %41 = sbr.rel (0) target = $region29
  $region28: #{attacker_forward.1} parent=0 // pred_region
    _
  $region29: #{attacker_forward.1} parent=0 // pred_fallthru
    _
  // Predicated region
  $region30: #{attacker_forward.1} parent=0 // pred_check
    _
  $region31: #{attacker_forward.1} parent=0 // pred_check_branch
    %43 = sbr.rel (0) target = $region33
  $region32: #{attacker_forward.1} parent=0 // pred_region
    _
  $region33: #{attacker_forward.1} parent=0 // pred_fallthru
    _
  // Predicated region
  $region34: #{attacker_forward.1} parent=0 // pred_check
    _
  $region35: #{attacker_forward.1} parent=0 // pred_check_branch
    %45 = sbr.rel (0) target = $region37
  $region36: #{attacker_forward.1} parent=0 // pred_region
    _
  $region37: #{attacker_forward.1} parent=0 // pred_fallthru
    _
  // Predicated region
  $region38: #{attacker_forward.1} parent=0 // pred_check
    _
  $region39: #{attacker_forward.1} parent=0 // pred_check_branch
    %47 = sbr.rel (0) target = $region41
  $region40: #{attacker_forward.1} parent=0 // pred_region
    _
  $region41: #{attacker_forward.1} parent=0 // pred_fallthru
    _
  // Predicated region
  $region42: #{attacker_forward.1} parent=0 // pred_check
    _
  $region43: #{attacker_forward.1} parent=0 // pred_check_branch
    %49 = sbr.rel (0) target = $region45
  $region44: #{attacker_forward.1} parent=0 // pred_region
    _
  $region45: #{attacker_forward.1} parent=0 // pred_fallthru
    _
  // Predicated region
  $region46: #{attacker_forward.1} parent=0 // pred_check
    _
  $region47: #{attacker_forward.1} parent=0 // pred_check_branch
    %51 = sbr.rel (0) target = $region49
  $region48: #{attacker_forward.1} parent=0 // pred_region
    _
  $region49: #{attacker_forward.1} parent=0 // pred_fallthru
    _
  // Predicated region
  $region50: #{attacker_forward.1} parent=0 // pred_check
    _
  $region51: #{attacker_forward.1} parent=0 // pred_check_branch
    %53 = sbr.rel (0) target = $region53
  $region52: #{attacker_forward.1} parent=0 // pred_region
    _
  $region53: #{attacker_forward.1} parent=0 // pred_fallthru
    _
  // Predicated region
  $region54: #{attacker_forward.1} parent=0 // pred_check
    _
  $region55: #{attacker_forward.1} parent=0 // pred_check_branch
    %55 = sbr.rel (0) target = $region57
  $region56: #{attacker_forward.1} parent=0 // pred_region
    _
  $region57: #{attacker_forward.1} parent=0 // pred_fallthru
    _
  // Predicated region
  $region58: #{attacker_forward.1} parent=0 // pred_check
    _
  $region59: #{attacker_forward.1} parent=0 // pred_check_branch
    %57 = sbr.rel (0) target = $region61
  $region60: #{attacker_forward.1} parent=0 // pred_region
    _
  $region61: #{attacker_forward.1} parent=0 // pred_fallthru
    _
  // Predicated region
  $region62: #{attacker_forward.1} parent=0 // pred_check
    _
  $region63: #{attacker_forward.1} parent=0 // pred_check_branch
    %59 = sbr.rel (0) target = $region65
  $region64: #{attacker_forward.1} parent=0 // pred_region
    _
  $region65: #{attacker_forward.1} parent=0 // pred_fallthru
    _
  // Predicated region
  $region66: #{attacker_forward.1} parent=0 // pred_check
    _
  $region67: #{attacker_forward.1} parent=0 // pred_check_branch
    %61 = sbr.rel (0) target = $region69
  $region68: #{attacker_forward.1} parent=0 // pred_region
    _
  $region69: #{attacker_forward.1} parent=0 // pred_fallthru
    _
  // Predicated region
  $region70: #{attacker_forward.1} parent=0 // pred_check
    _
  $region71: #{attacker_forward.1} parent=0 // pred_check_branch
    %63 = sbr.rel (0) target = $region73
  $region72: #{attacker_forward.1} parent=0 // pred_region
    _
  $region73: #{attacker_forward.1} parent=0 // pred_fallthru
    _
  // Predicated region
  $region74: #{attacker_forward.1} parent=0 // pred_check
    _
  $region75: #{attacker_forward.1} parent=0 // pred_check_branch
    %65 = sbr.rel (0) target = $region77
  $region76: #{attacker_forward.1} parent=0 // pred_region
    _
  $region77: #{attacker_forward.1} parent=0 // pred_fallthru
    _
  // Predicated region
  $region78: #{attacker_forward.1} parent=0 // pred_check
    _
  $region79: #{attacker_forward.1} parent=0 // pred_check_branch
    %67 = sbr.rel (0) target = $region81
  $region80: #{attacker_forward.1} parent=0 // pred_region
    _
  $region81: #{attacker_forward.1} parent=0 // pred_fallthru
    _
  // Predicated region
  $region82: #{attacker_forward.1} parent=0 // pred_check
    _
  $region83: #{attacker_forward.1} parent=0 // pred_check_branch
    %69 = sbr.rel (0) target = $region85
  $region84: #{attacker_forward.1} parent=0 // pred_region
    _
  $region85: #{attacker_forward.1} parent=0 // pred_fallthru
    _
  // Predicated region
  $region86: #{attacker_forward.1} parent=0 // pred_check
    _
  $region87: #{attacker_forward.1} parent=0 // pred_check_branch
    %71 = sbr.rel (0) target = $region89
  $region88: #{attacker_forward.1} parent=0 // pred_region
    _
  $region89: #{attacker_forward.1} parent=0 // pred_fallthru
    _
  // Predicated region
  $region90: #{attacker_forward.1} parent=0 // pred_check
    _
  $region91: #{attacker_forward.1} parent=0 // pred_check_branch
    %73 = sbr.rel (0) target = $region93
  $region92: #{attacker_forward.1} parent=0 // pred_region
    _
  $region93: #{attacker_forward.1} parent=0 // pred_fallthru
    _
  %v74 = vld [vmem:[%s0] sm:$0xff]
  %v75 = vld [vmem:[%s0 + $0x8] sm:$0xff]
  %v76 = vld [vmem:[%s3] sm:$0x1]
  %v77 = vld [vmem:[%s4] sm:$0x1]
  %vm78 = vcmask 261120
  %v79 = vsel %vm78, %v74, 0.0
  %80 = vadd.xlane.f32.xlu0 %v79
  %v81 = vpop.xlane.xlu0 %80
  %v82 = vsel %vm78, %v75, 0.0
  %83 = vadd.xlane.f32.xlu0 %v82
  %v84 = vpop.xlane.xlu0 %83
  %v85 = vrcp.pop 32.0
  %v86 = vmul.f32 %v81, %v85
  %v87 = vmul.f32 %v84, %v85
  %v88 = vsub.f32 %v74, %v86
  %v89 = vsub.f32 %v75, %v87
  %v90 = vmul.f32 %v88, %v88
  %v91 = vmul.f32 %v89, %v89
  %v92 = vsel %vm78, %v90, 0.0
  %93 = vadd.xlane.f32.xlu0 %v92
  %v94 = vpop.xlane.xlu0 %93
  %v95 = vsel %vm78, %v91, 0.0
  %96 = vadd.xlane.f32.xlu0 %v95
  %v97 = vpop.xlane.xlu0 %96
  %v98 = vmul.f32 %v94, %v85
  %v99 = vmul.f32 %v97, %v85
  %v100 = vadd.f32 %v98, 1e-12
  %v101 = vadd.f32 %v99, 1e-12
  %v102 = vrsqrt.pop %v100
  %v103 = vrsqrt.pop %v101
  %v104 = vmul.f32 %v88, %v102
  %v105 = vmul.f32 %v89, %v103
  %v107 = vlaneseq
  %v108 = vshrl.u32 %v107, 7
  %v109 = vsub.s32 0, %v108
  %v110 = vrot.slane %v76, %v109
  %v112 = vmul.f32 %v104, %v110
  %v113 = vmul.f32 %v105, %v110
  %v115 = vlaneseq
  %v116 = vshrl.u32 %v115, 7
  %v117 = vsub.s32 0, %v116
  %v118 = vrot.slane %v77, %v117
  %v120 = vadd.f32 %v112, %v118
  %v121 = vadd.f32 %v113, %v118
  %v122 = vld [vmem:[%s1] sm:$0x1]
  %v123 = vld [vmem:[%s1 + $0x1] sm:$0x1]
  %vm124 = vcmp.gt.f32.partialorder %v122, 0.0
  %vm125 = vcmp.gt.f32.partialorder %v123, 0.0
  %v126 = vsel %vm124, 1, 0
  %v127 = vsel %vm125, 1, 0
  %v128 = vlaneseq
  %v129 = vshrl.u32 %v128, 7
  %v130 = vsub.s32 0, %v129
  %v131 = vrot.slane %v126, %v130
  %v132 = vlaneseq
  %v133 = vshrl.u32 %v132, 7
  %v134 = vsub.s32 0, %v133
  %v135 = vrot.slane %v127, %v134
  %vm136 = vcmp.eq.s32.totalorder %v131, 1
  %vm137 = vcmp.eq.s32.totalorder %v135, 1
  %v138 = vld [vmem:[%s5] sm:$0xff]
  %v139 = vld [vmem:[%s5 + $0x8] sm:$0xff]
  %v140 = vld [vmem:[%s5 + $0x10] sm:$0xff]
  %v141 = vld [vmem:[%s5 + $0x18] sm:$0xff]
  %v142 = vld [vmem:[%s6] sm:$0x1]
  %v144 = vlaneseq
  %v145 = vshrl.u32 %v144, 7
  %v146 = vsub.s32 0, %v145
  %v147 = vrot.slane %v142, %v146
  %v150 = vsel %vm78, %v120, 0
  %v153 = vsel %vm78, %v121, 0
  %155 = vmatprep.subr.mxu0 0.0
  %156 = vmatpush1.msra.mxu0 %v138
  %157 = vmatprep.subr.mxu0 0.0
  %158 = vmatpush1.msra.mxu0 %v139
  %159 = vmatprep.subr.mxu0 0.0
  %160 = vmatpush1.msra.mxu0 %v140
  %161 = vmatprep.subr.mxu0 0.0
  %162 = vmatpush1.msra.mxu0 %v141
  %163 = vmatprep.subr.mxu0 0.0
  %164 = vmatpush1.msra.mxu0 0.0
  %165 = vmatprep.subr.mxu0 0.0
  %166 = vmatpush1.msra.mxu0 0.0
  %167 = vmatprep.subr.mxu0 0.0
  %168 = vmatpush1.msra.mxu0 0.0
  %169 = vmatprep.subr.mxu0 0.0
  %170 = vmatpush1.msra.mxu0 0.0
  %171 = vmatprep.subr.mxu0 0.0
  %172 = vmatpush1.msra.mxu0 0.0
  %173 = vmatprep.subr.mxu0 0.0
  %174 = vmatpush1.msra.mxu0 0.0
  %175 = vmatprep.subr.mxu0 0.0
  %176 = vmatpush1.msra.mxu0 0.0
  %177 = vmatprep.subr.mxu0 0.0
  %178 = vmatpush1.msra.mxu0 0.0
  %179 = vmatprep.subr.mxu0 0.0
  %180 = vmatpush1.msra.mxu0 0.0
  %181 = vmatprep.subr.mxu0 0.0
  %182 = vmatpush1.msra.mxu0 0.0
  %183 = vmatprep.subr.mxu0 0.0
  %184 = vmatpush1.msra.mxu0 0.0
  %185 = vmatprep.subr.mxu0 0.0
  %186 = vmatpush1.msra.mxu0 0.0
  %187 = vmatprep.subr.mxu0 0.0
  %188 = vmatpush1.msra.mxu0 0.0
  %189 = vmatprep.subr.mxu0 0.0
  %190 = vmatpush1.msra.mxu0 0.0
  %191 = vmatprep.subr.mxu0 0.0
  %192 = vmatpush1.msra.mxu0 0.0
  %193 = vmatprep.subr.mxu0 0.0
  %194 = vmatpush1.msra.mxu0 0.0
  %195 = vmatprep.subr.mxu0 0.0
  %196 = vmatpush1.msra.mxu0 0.0
  %197 = vmatprep.subr.mxu0 0.0
  %198 = vmatpush1.msra.mxu0 0.0
  %199 = vmatprep.subr.mxu0 0.0
  %200 = vmatpush1.msra.mxu0 0.0
  %201 = vmatprep.subr.mxu0 0.0
  %202 = vmatpush1.msra.mxu0 0.0
  %203 = vmatprep.subr.mxu0 0.0
  %204 = vmatpush1.msra.mxu0 0.0
  %205 = vmatprep.subr.mxu0 0.0
  %206 = vmatpush1.msra.mxu0 0.0
  %207 = vmatprep.subr.mxu0 0.0
  %208 = vmatpush1.msra.mxu0 0.0
  %209 = vmatprep.subr.mxu0 0.0
  %210 = vmatpush1.msra.mxu0 0.0
  %211 = vmatprep.subr.mxu0 0.0
  %212 = vmatpush1.msra.mxu0 0.0
  %213 = vmatprep.subr.mxu0 0.0
  %214 = vmatpush1.msra.mxu0 0.0
  %215 = vmatprep.subr.mxu0 0.0
  %216 = vmatpush1.msra.mxu0 0.0
  %217 = vmatprep.subr.mxu0 0.0
  %218 = vmatpush1.msra.mxu0 0.0
  %219 = vmatprep.mubr.f32.mxu0 0.0
  %220 = vmatmul.mubr.f32.gmra.mrb[0].mxu0 %v150
  %v221 = vpop.f32.mrb[0].mxu0
  %v222 = vadd.f32 %v147, %v221
  %v223 = vpop.f32.mrb[0].mxu0
  %224 = vmatprep.mubr.f32.mxu0 0.0
  %225 = vmatmul.mubr.f32.gmra.mrb[0].mxu0 %v153
  %v226 = vpop.f32.mrb[0].mxu0
  %v227 = vadd.f32 %v147, %v226
  %v228 = vpop.f32.mrb[0].mxu0
  %229 = vdwg.mxu0
  %231 = vrot.lane.b32.xlu0 %v222, 96
  %v232 = vpop.permute.xlu0 %231
  %vm233 = vcmask 64512
  %v234 = vsel %vm233, %v222, 0
  %v236 = vsel %vm233, %v232, 0
  %238 = vmatprep.subr.mxu0 0.0
  %239 = vmatpush1.xpose.msra.mxu0 %v236
  %240 = vmatprep.subr.mxu0 0.0
  %241 = vmatpush1.xpose.msra.mxu0 0.0
  %242 = vmatprep.subr.mxu0 0.0
  %243 = vmatpush1.xpose.msra.mxu0 0.0
  %244 = vmatprep.subr.mxu0 0.0
  %245 = vmatpush1.xpose.msra.mxu0 0.0
  %246 = vmatprep.subr.mxu0 0.0
  %247 = vmatpush1.xpose.msra.mxu0 0.0
  %248 = vmatprep.subr.mxu0 0.0
  %249 = vmatpush1.xpose.msra.mxu0 0.0
  %250 = vmatprep.subr.mxu0 0.0
  %251 = vmatpush1.xpose.msra.mxu0 0.0
  %252 = vmatprep.subr.mxu0 0.0
  %253 = vmatpush1.xpose.msra.mxu0 0.0
  %254 = vmatprep.subr.mxu0 0.0
  %255 = vmatpush1.xpose.msra.mxu0 0.0
  %256 = vmatprep.subr.mxu0 0.0
  %257 = vmatpush1.xpose.msra.mxu0 0.0
  %258 = vmatprep.subr.mxu0 0.0
  %259 = vmatpush1.xpose.msra.mxu0 0.0
  %260 = vmatprep.subr.mxu0 0.0
  %261 = vmatpush1.xpose.msra.mxu0 0.0
  %262 = vmatprep.subr.mxu0 0.0
  %263 = vmatpush1.xpose.msra.mxu0 0.0
  %264 = vmatprep.subr.mxu0 0.0
  %265 = vmatpush1.xpose.msra.mxu0 0.0
  %266 = vmatprep.subr.mxu0 0.0
  %267 = vmatpush1.xpose.msra.mxu0 0.0
  %268 = vmatprep.subr.mxu0 0.0
  %269 = vmatpush1.xpose.msra.mxu0 0.0
  %270 = vmatprep.subr.mxu0 0.0
  %271 = vmatpush1.xpose.msra.mxu0 0.0
  %272 = vmatprep.subr.mxu0 0.0
  %273 = vmatpush1.xpose.msra.mxu0 0.0
  %274 = vmatprep.subr.mxu0 0.0
  %275 = vmatpush1.xpose.msra.mxu0 0.0
  %276 = vmatprep.subr.mxu0 0.0
  %277 = vmatpush1.xpose.msra.mxu0 0.0
  %278 = vmatprep.subr.mxu0 0.0
  %279 = vmatpush1.xpose.msra.mxu0 0.0
  %280 = vmatprep.subr.mxu0 0.0
  %281 = vmatpush1.xpose.msra.mxu0 0.0
  %282 = vmatprep.subr.mxu0 0.0
  %283 = vmatpush1.xpose.msra.mxu0 0.0
  %284 = vmatprep.subr.mxu0 0.0
  %285 = vmatpush1.xpose.msra.mxu0 0.0
  %286 = vmatprep.subr.mxu0 0.0
  %287 = vmatpush1.xpose.msra.mxu0 0.0
  %288 = vmatprep.subr.mxu0 0.0
  %289 = vmatpush1.xpose.msra.mxu0 0.0
  %290 = vmatprep.subr.mxu0 0.0
  %291 = vmatpush1.xpose.msra.mxu0 0.0
  %292 = vmatprep.subr.mxu0 0.0
  %293 = vmatpush1.xpose.msra.mxu0 0.0
  %294 = vmatprep.subr.mxu0 0.0
  %295 = vmatpush1.xpose.msra.mxu0 0.0
  %296 = vmatprep.subr.mxu0 0.0
  %297 = vmatpush1.xpose.msra.mxu0 0.0
  %298 = vmatprep.subr.mxu0 0.0
  %299 = vmatpush1.xpose.msra.mxu0 0.0
  %300 = vmatprep.subr.mxu0 0.0
  %301 = vmatpush1.xpose.msra.mxu0 0.0
  %302 = vmatprep.mubr.f32.mxu0 0.0
  %303 = vmatmul.mubr.f32.gmra.mrb[0].mxu0 %v234
  %v304 = vpop.f32.mrb[0].mxu0
  %v305 = vadd.f32 0.0, %v304
  %v306 = vpop.f32.mrb[0].mxu0
  %307 = vdwg.mxu0
  %309 = vrot.lane.b32.xlu0 %v227, 96
  %v310 = vpop.permute.xlu0 %309
  %v311 = vsel %vm233, %v227, 0
  %v313 = vsel %vm233, %v310, 0
  %315 = vmatprep.subr.mxu0 0.0
  %316 = vmatpush1.xpose.msra.mxu0 %v313
  %317 = vmatprep.subr.mxu0 0.0
  %318 = vmatpush1.xpose.msra.mxu0 0.0
  %319 = vmatprep.subr.mxu0 0.0
  %320 = vmatpush1.xpose.msra.mxu0 0.0
  %321 = vmatprep.subr.mxu0 0.0
  %322 = vmatpush1.xpose.msra.mxu0 0.0
  %323 = vmatprep.subr.mxu0 0.0
  %324 = vmatpush1.xpose.msra.mxu0 0.0
  %325 = vmatprep.subr.mxu0 0.0
  %326 = vmatpush1.xpose.msra.mxu0 0.0
  %327 = vmatprep.subr.mxu0 0.0
  %328 = vmatpush1.xpose.msra.mxu0 0.0
  %329 = vmatprep.subr.mxu0 0.0
  %330 = vmatpush1.xpose.msra.mxu0 0.0
  %331 = vmatprep.subr.mxu0 0.0
  %332 = vmatpush1.xpose.msra.mxu0 0.0
  %333 = vmatprep.subr.mxu0 0.0
  %334 = vmatpush1.xpose.msra.mxu0 0.0
  %335 = vmatprep.subr.mxu0 0.0
  %336 = vmatpush1.xpose.msra.mxu0 0.0
  %337 = vmatprep.subr.mxu0 0.0
  %338 = vmatpush1.xpose.msra.mxu0 0.0
  %339 = vmatprep.subr.mxu0 0.0
  %340 = vmatpush1.xpose.msra.mxu0 0.0
  %341 = vmatprep.subr.mxu0 0.0
  %342 = vmatpush1.xpose.msra.mxu0 0.0
  %343 = vmatprep.subr.mxu0 0.0
  %344 = vmatpush1.xpose.msra.mxu0 0.0
  %345 = vmatprep.subr.mxu0 0.0
  %346 = vmatpush1.xpose.msra.mxu0 0.0
  %347 = vmatprep.subr.mxu0 0.0
  %348 = vmatpush1.xpose.msra.mxu0 0.0
  %349 = vmatprep.subr.mxu0 0.0
  %350 = vmatpush1.xpose.msra.mxu0 0.0
  %351 = vmatprep.subr.mxu0 0.0
  %352 = vmatpush1.xpose.msra.mxu0 0.0
  %353 = vmatprep.subr.mxu0 0.0
  %354 = vmatpush1.xpose.msra.mxu0 0.0
  %355 = vmatprep.subr.mxu0 0.0
  %356 = vmatpush1.xpose.msra.mxu0 0.0
  %357 = vmatprep.subr.mxu0 0.0
  %358 = vmatpush1.xpose.msra.mxu0 0.0
  %359 = vmatprep.subr.mxu0 0.0
  %360 = vmatpush1.xpose.msra.mxu0 0.0
  %361 = vmatprep.subr.mxu0 0.0
  %362 = vmatpush1.xpose.msra.mxu0 0.0
  %363 = vmatprep.subr.mxu0 0.0
  %364 = vmatpush1.xpose.msra.mxu0 0.0
  %365 = vmatprep.subr.mxu0 0.0
  %366 = vmatpush1.xpose.msra.mxu0 0.0
  %367 = vmatprep.subr.mxu0 0.0
  %368 = vmatpush1.xpose.msra.mxu0 0.0
  %369 = vmatprep.subr.mxu0 0.0
  %370 = vmatpush1.xpose.msra.mxu0 0.0
  %371 = vmatprep.subr.mxu0 0.0
  %372 = vmatpush1.xpose.msra.mxu0 0.0
  %373 = vmatprep.subr.mxu0 0.0
  %374 = vmatpush1.xpose.msra.mxu0 0.0
  %375 = vmatprep.subr.mxu0 0.0
  %376 = vmatpush1.xpose.msra.mxu0 0.0
  %377 = vmatprep.subr.mxu0 0.0
  %378 = vmatpush1.xpose.msra.mxu0 0.0
  %379 = vmatprep.mubr.f32.mxu0 0.0
  %380 = vmatmul.mubr.f32.gmra.mrb[0].mxu0 %v311
  %v381 = vpop.f32.mrb[0].mxu0
  %v382 = vadd.f32 0.0, %v381
  %v383 = vpop.f32.mrb[0].mxu0
  %384 = vdwg.mxu0
  %v385 = vmul.f32 %v305, 0.35355338
  %v386 = vmul.f32 %v382, 0.35355338
  %v387 = vsel %vm136, %v385, -1e+09
  %v388 = vsel %vm137, %v386, -1e+09
  %v389 = vsel %vm233, %v387, -inf
  %390 = vmax.xlane.f32.xlu0 %v389
  %v391 = vpop.xlane.xlu0 %390
  %v392 = vsel %vm233, %v388, -inf
  %393 = vmax.xlane.f32.xlu0 %v392
  %v394 = vpop.xlane.xlu0 %393
  %v395 = vsub.f32 %v387, %v391
  %v396 = vsub.f32 %v388, %v394
  %v397 = vmul.f32 %v395, 1.442695
  %v398 = vpow.pop %v397
  %v399 = vmul.f32 %v396, 1.442695
  %v400 = vpow.pop %v399
  %v401 = vsel %vm233, %v398, 0.0
  %402 = vadd.xlane.f32.xlu0 %v401
  %v403 = vpop.xlane.xlu0 %402
  %v404 = vsel %vm233, %v400, 0.0
  %405 = vadd.xlane.f32.xlu0 %v404
  %v406 = vpop.xlane.xlu0 %405
  %v407 = vrcp.pop %v403
  %v408 = vrcp.pop %v406
  %v409 = vmul.f32 %v398, %v407
  %v410 = vmul.f32 %v400, %v408
  %411 = vrot.lane.b32.xlu0 %v222, 64
  %v412 = vpop.permute.xlu0 %411
  %v415 = vsel %vm233, %v409, 0
  %417 = vmatprep.subr.mxu0 0.0
  %418 = vmatpush1.msra.mxu0 %v412
  %419 = vmatprep.subr.mxu0 0.0
  %420 = vmatpush1.msra.mxu0 0.0
  %421 = vmatprep.subr.mxu0 0.0
  %422 = vmatpush1.msra.mxu0 0.0
  %423 = vmatprep.subr.mxu0 0.0
  %424 = vmatpush1.msra.mxu0 0.0
  %425 = vmatprep.subr.mxu0 0.0
  %426 = vmatpush1.msra.mxu0 0.0
  %427 = vmatprep.subr.mxu0 0.0
  %428 = vmatpush1.msra.mxu0 0.0
  %429 = vmatprep.subr.mxu0 0.0
  %430 = vmatpush1.msra.mxu0 0.0
  %431 = vmatprep.subr.mxu0 0.0
  %432 = vmatpush1.msra.mxu0 0.0
  %433 = vmatprep.subr.mxu0 0.0
  %434 = vmatpush1.msra.mxu0 0.0
  %435 = vmatprep.subr.mxu0 0.0
  %436 = vmatpush1.msra.mxu0 0.0
  %437 = vmatprep.subr.mxu0 0.0
  %438 = vmatpush1.msra.mxu0 0.0
  %439 = vmatprep.subr.mxu0 0.0
  %440 = vmatpush1.msra.mxu0 0.0
  %441 = vmatprep.subr.mxu0 0.0
  %442 = vmatpush1.msra.mxu0 0.0
  %443 = vmatprep.subr.mxu0 0.0
  %444 = vmatpush1.msra.mxu0 0.0
  %445 = vmatprep.subr.mxu0 0.0
  %446 = vmatpush1.msra.mxu0 0.0
  %447 = vmatprep.subr.mxu0 0.0
  %448 = vmatpush1.msra.mxu0 0.0
  %449 = vmatprep.subr.mxu0 0.0
  %450 = vmatpush1.msra.mxu0 0.0
  %451 = vmatprep.subr.mxu0 0.0
  %452 = vmatpush1.msra.mxu0 0.0
  %453 = vmatprep.subr.mxu0 0.0
  %454 = vmatpush1.msra.mxu0 0.0
  %455 = vmatprep.subr.mxu0 0.0
  %456 = vmatpush1.msra.mxu0 0.0
  %457 = vmatprep.subr.mxu0 0.0
  %458 = vmatpush1.msra.mxu0 0.0
  %459 = vmatprep.subr.mxu0 0.0
  %460 = vmatpush1.msra.mxu0 0.0
  %461 = vmatprep.subr.mxu0 0.0
  %462 = vmatpush1.msra.mxu0 0.0
  %463 = vmatprep.subr.mxu0 0.0
  %464 = vmatpush1.msra.mxu0 0.0
  %465 = vmatprep.subr.mxu0 0.0
  %466 = vmatpush1.msra.mxu0 0.0
  %467 = vmatprep.subr.mxu0 0.0
  %468 = vmatpush1.msra.mxu0 0.0
  %469 = vmatprep.subr.mxu0 0.0
  %470 = vmatpush1.msra.mxu0 0.0
  %471 = vmatprep.subr.mxu0 0.0
  %472 = vmatpush1.msra.mxu0 0.0
  %473 = vmatprep.subr.mxu0 0.0
  %474 = vmatpush1.msra.mxu0 0.0
  %475 = vmatprep.subr.mxu0 0.0
  %476 = vmatpush1.msra.mxu0 0.0
  %477 = vmatprep.subr.mxu0 0.0
  %478 = vmatpush1.msra.mxu0 0.0
  %479 = vmatprep.subr.mxu0 0.0
  %480 = vmatpush1.msra.mxu0 0.0
  %481 = vmatprep.mubr.f32.mxu0 0.0
  %482 = vmatmul.mubr.f32.gmra.mrb[0].mxu0 %v415
  %v483 = vpop.f32.mrb[0].mxu0
  %v484 = vadd.f32 0.0, %v483
  %v485 = vpop.f32.mrb[0].mxu0
  %486 = vdwg.mxu0
  %487 = vrot.lane.b32.xlu0 %v227, 64
  %v488 = vpop.permute.xlu0 %487
  %v491 = vsel %vm233, %v410, 0
  %493 = vmatprep.subr.mxu0 0.0
  %494 = vmatpush1.msra.mxu0 %v488
  %495 = vmatprep.subr.mxu0 0.0
  %496 = vmatpush1.msra.mxu0 0.0
  %497 = vmatprep.subr.mxu0 0.0
  %498 = vmatpush1.msra.mxu0 0.0
  %499 = vmatprep.subr.mxu0 0.0
  %500 = vmatpush1.msra.mxu0 0.0
  %501 = vmatprep.subr.mxu0 0.0
  %502 = vmatpush1.msra.mxu0 0.0
  %503 = vmatprep.subr.mxu0 0.0
  %504 = vmatpush1.msra.mxu0 0.0
  %505 = vmatprep.subr.mxu0 0.0
  %506 = vmatpush1.msra.mxu0 0.0
  %507 = vmatprep.subr.mxu0 0.0
  %508 = vmatpush1.msra.mxu0 0.0
  %509 = vmatprep.subr.mxu0 0.0
  %510 = vmatpush1.msra.mxu0 0.0
  %511 = vmatprep.subr.mxu0 0.0
  %512 = vmatpush1.msra.mxu0 0.0
  %513 = vmatprep.subr.mxu0 0.0
  %514 = vmatpush1.msra.mxu0 0.0
  %515 = vmatprep.subr.mxu0 0.0
  %516 = vmatpush1.msra.mxu0 0.0
  %517 = vmatprep.subr.mxu0 0.0
  %518 = vmatpush1.msra.mxu0 0.0
  %519 = vmatprep.subr.mxu0 0.0
  %520 = vmatpush1.msra.mxu0 0.0
  %521 = vmatprep.subr.mxu0 0.0
  %522 = vmatpush1.msra.mxu0 0.0
  %523 = vmatprep.subr.mxu0 0.0
  %524 = vmatpush1.msra.mxu0 0.0
  %525 = vmatprep.subr.mxu0 0.0
  %526 = vmatpush1.msra.mxu0 0.0
  %527 = vmatprep.subr.mxu0 0.0
  %528 = vmatpush1.msra.mxu0 0.0
  %529 = vmatprep.subr.mxu0 0.0
  %530 = vmatpush1.msra.mxu0 0.0
  %531 = vmatprep.subr.mxu0 0.0
  %532 = vmatpush1.msra.mxu0 0.0
  %533 = vmatprep.subr.mxu0 0.0
  %534 = vmatpush1.msra.mxu0 0.0
  %535 = vmatprep.subr.mxu0 0.0
  %536 = vmatpush1.msra.mxu0 0.0
  %537 = vmatprep.subr.mxu0 0.0
  %538 = vmatpush1.msra.mxu0 0.0
  %539 = vmatprep.subr.mxu0 0.0
  %540 = vmatpush1.msra.mxu0 0.0
  %541 = vmatprep.subr.mxu0 0.0
  %542 = vmatpush1.msra.mxu0 0.0
  %543 = vmatprep.subr.mxu0 0.0
  %544 = vmatpush1.msra.mxu0 0.0
  %545 = vmatprep.subr.mxu0 0.0
  %546 = vmatpush1.msra.mxu0 0.0
  %547 = vmatprep.subr.mxu0 0.0
  %548 = vmatpush1.msra.mxu0 0.0
  %549 = vmatprep.subr.mxu0 0.0
  %550 = vmatpush1.msra.mxu0 0.0
  %551 = vmatprep.subr.mxu0 0.0
  %552 = vmatpush1.msra.mxu0 0.0
  %553 = vmatprep.subr.mxu0 0.0
  %554 = vmatpush1.msra.mxu0 0.0
  %555 = vmatprep.subr.mxu0 0.0
  %556 = vmatpush1.msra.mxu0 0.0
  %557 = vmatprep.mubr.f32.mxu0 0.0
  %558 = vmatmul.mubr.f32.gmra.mrb[0].mxu0 %v491
  %v559 = vpop.f32.mrb[0].mxu0
  %v560 = vadd.f32 0.0, %v559
  %v561 = vpop.f32.mrb[0].mxu0
  %562 = vdwg.mxu0
  %563 = vrot.lane.b32.xlu0 %v222, 120
  %v564 = vpop.permute.xlu0 %563
  %565 = vrot.lane.b32.xlu0 %v222, 88
  %v566 = vpop.permute.xlu0 %565
  %v567 = vsel %vm233, %v564, 0
  %v569 = vsel %vm233, %v566, 0
  %571 = vmatprep.subr.mxu0 0.0
  %572 = vmatpush1.xpose.msra.mxu0 %v569
  %573 = vmatprep.subr.mxu0 0.0
  %574 = vmatpush1.xpose.msra.mxu0 0.0
  %575 = vmatprep.subr.mxu0 0.0
  %576 = vmatpush1.xpose.msra.mxu0 0.0
  %577 = vmatprep.subr.mxu0 0.0
  %578 = vmatpush1.xpose.msra.mxu0 0.0
  %579 = vmatprep.subr.mxu0 0.0
  %580 = vmatpush1.xpose.msra.mxu0 0.0
  %581 = vmatprep.subr.mxu0 0.0
  %582 = vmatpush1.xpose.msra.mxu0 0.0
  %583 = vmatprep.subr.mxu0 0.0
  %584 = vmatpush1.xpose.msra.mxu0 0.0
  %585 = vmatprep.subr.mxu0 0.0
  %586 = vmatpush1.xpose.msra.mxu0 0.0
  %587 = vmatprep.subr.mxu0 0.0
  %588 = vmatpush1.xpose.msra.mxu0 0.0
  %589 = vmatprep.subr.mxu0 0.0
  %590 = vmatpush1.xpose.msra.mxu0 0.0
  %591 = vmatprep.subr.mxu0 0.0
  %592 = vmatpush1.xpose.msra.mxu0 0.0
  %593 = vmatprep.subr.mxu0 0.0
  %594 = vmatpush1.xpose.msra.mxu0 0.0
  %595 = vmatprep.subr.mxu0 0.0
  %596 = vmatpush1.xpose.msra.mxu0 0.0
  %597 = vmatprep.subr.mxu0 0.0
  %598 = vmatpush1.xpose.msra.mxu0 0.0
  %599 = vmatprep.subr.mxu0 0.0
  %600 = vmatpush1.xpose.msra.mxu0 0.0
  %601 = vmatprep.subr.mxu0 0.0
  %602 = vmatpush1.xpose.msra.mxu0 0.0
  %603 = vmatprep.subr.mxu0 0.0
  %604 = vmatpush1.xpose.msra.mxu0 0.0
  %605 = vmatprep.subr.mxu0 0.0
  %606 = vmatpush1.xpose.msra.mxu0 0.0
  %607 = vmatprep.subr.mxu0 0.0
  %608 = vmatpush1.xpose.msra.mxu0 0.0
  %609 = vmatprep.subr.mxu0 0.0
  %610 = vmatpush1.xpose.msra.mxu0 0.0
  %611 = vmatprep.subr.mxu0 0.0
  %612 = vmatpush1.xpose.msra.mxu0 0.0
  %613 = vmatprep.subr.mxu0 0.0
  %614 = vmatpush1.xpose.msra.mxu0 0.0
  %615 = vmatprep.subr.mxu0 0.0
  %616 = vmatpush1.xpose.msra.mxu0 0.0
  %617 = vmatprep.subr.mxu0 0.0
  %618 = vmatpush1.xpose.msra.mxu0 0.0
  %619 = vmatprep.subr.mxu0 0.0
  %620 = vmatpush1.xpose.msra.mxu0 0.0
  %621 = vmatprep.subr.mxu0 0.0
  %622 = vmatpush1.xpose.msra.mxu0 0.0
  %623 = vmatprep.subr.mxu0 0.0
  %624 = vmatpush1.xpose.msra.mxu0 0.0
  %625 = vmatprep.subr.mxu0 0.0
  %626 = vmatpush1.xpose.msra.mxu0 0.0
  %627 = vmatprep.subr.mxu0 0.0
  %628 = vmatpush1.xpose.msra.mxu0 0.0
  %629 = vmatprep.subr.mxu0 0.0
  %630 = vmatpush1.xpose.msra.mxu0 0.0
  %631 = vmatprep.subr.mxu0 0.0
  %632 = vmatpush1.xpose.msra.mxu0 0.0
  %633 = vmatprep.subr.mxu0 0.0
  %634 = vmatpush1.xpose.msra.mxu0 0.0
  %635 = vmatprep.mubr.f32.mxu0 0.0
  %636 = vmatmul.mubr.f32.gmra.mrb[0].mxu0 %v567
  %v637 = vpop.f32.mrb[0].mxu0
  %v638 = vadd.f32 0.0, %v637
  %v639 = vpop.f32.mrb[0].mxu0
  %640 = vdwg.mxu0
  %641 = vrot.lane.b32.xlu0 %v227, 120
  %v642 = vpop.permute.xlu0 %641
  %643 = vrot.lane.b32.xlu0 %v227, 88
  %v644 = vpop.permute.xlu0 %643
  %v645 = vsel %vm233, %v642, 0
  %v647 = vsel %vm233, %v644, 0
  %649 = vmatprep.subr.mxu0 0.0
  %650 = vmatpush1.xpose.msra.mxu0 %v647
  %651 = vmatprep.subr.mxu0 0.0
  %652 = vmatpush1.xpose.msra.mxu0 0.0
  %653 = vmatprep.subr.mxu0 0.0
  %654 = vmatpush1.xpose.msra.mxu0 0.0
  %655 = vmatprep.subr.mxu0 0.0
  %656 = vmatpush1.xpose.msra.mxu0 0.0
  %657 = vmatprep.subr.mxu0 0.0
  %658 = vmatpush1.xpose.msra.mxu0 0.0
  %659 = vmatprep.subr.mxu0 0.0
  %660 = vmatpush1.xpose.msra.mxu0 0.0
  %661 = vmatprep.subr.mxu0 0.0
  %662 = vmatpush1.xpose.msra.mxu0 0.0
  %663 = vmatprep.subr.mxu0 0.0
  %664 = vmatpush1.xpose.msra.mxu0 0.0
  %665 = vmatprep.subr.mxu0 0.0
  %666 = vmatpush1.xpose.msra.mxu0 0.0
  %667 = vmatprep.subr.mxu0 0.0
  %668 = vmatpush1.xpose.msra.mxu0 0.0
  %669 = vmatprep.subr.mxu0 0.0
  %670 = vmatpush1.xpose.msra.mxu0 0.0
  %671 = vmatprep.subr.mxu0 0.0
  %672 = vmatpush1.xpose.msra.mxu0 0.0
  %673 = vmatprep.subr.mxu0 0.0
  %674 = vmatpush1.xpose.msra.mxu0 0.0
  %675 = vmatprep.subr.mxu0 0.0
  %676 = vmatpush1.xpose.msra.mxu0 0.0
  %677 = vmatprep.subr.mxu0 0.0
  %678 = vmatpush1.xpose.msra.mxu0 0.0
  %679 = vmatprep.subr.mxu0 0.0
  %680 = vmatpush1.xpose.msra.mxu0 0.0
  %681 = vmatprep.subr.mxu0 0.0
  %682 = vmatpush1.xpose.msra.mxu0 0.0
  %683 = vmatprep.subr.mxu0 0.0
  %684 = vmatpush1.xpose.msra.mxu0 0.0
  %685 = vmatprep.subr.mxu0 0.0
  %686 = vmatpush1.xpose.msra.mxu0 0.0
  %687 = vmatprep.subr.mxu0 0.0
  %688 = vmatpush1.xpose.msra.mxu0 0.0
  %689 = vmatprep.subr.mxu0 0.0
  %690 = vmatpush1.xpose.msra.mxu0 0.0
  %691 = vmatprep.subr.mxu0 0.0
  %692 = vmatpush1.xpose.msra.mxu0 0.0
  %693 = vmatprep.subr.mxu0 0.0
  %694 = vmatpush1.xpose.msra.mxu0 0.0
  %695 = vmatprep.subr.mxu0 0.0
  %696 = vmatpush1.xpose.msra.mxu0 0.0
  %697 = vmatprep.subr.mxu0 0.0
  %698 = vmatpush1.xpose.msra.mxu0 0.0
  %699 = vmatprep.subr.mxu0 0.0
  %700 = vmatpush1.xpose.msra.mxu0 0.0
  %701 = vmatprep.subr.mxu0 0.0
  %702 = vmatpush1.xpose.msra.mxu0 0.0
  %703 = vmatprep.subr.mxu0 0.0
  %704 = vmatpush1.xpose.msra.mxu0 0.0
  %705 = vmatprep.subr.mxu0 0.0
  %706 = vmatpush1.xpose.msra.mxu0 0.0
  %707 = vmatprep.subr.mxu0 0.0
  %708 = vmatpush1.xpose.msra.mxu0 0.0
  %709 = vmatprep.subr.mxu0 0.0
  %710 = vmatpush1.xpose.msra.mxu0 0.0
  %711 = vmatprep.subr.mxu0 0.0
  %712 = vmatpush1.xpose.msra.mxu0 0.0
  %713 = vmatprep.mubr.f32.mxu0 0.0
  %714 = vmatmul.mubr.f32.gmra.mrb[0].mxu0 %v645
  %v715 = vpop.f32.mrb[0].mxu0
  %v716 = vadd.f32 0.0, %v715
  %v717 = vpop.f32.mrb[0].mxu0
  %718 = vdwg.mxu0
  %v719 = vmul.f32 %v638, 0.35355338
  %v720 = vmul.f32 %v716, 0.35355338
  %v721 = vsel %vm136, %v719, -1e+09
  %v722 = vsel %vm137, %v720, -1e+09
  %v723 = vsel %vm233, %v721, -inf
  %724 = vmax.xlane.f32.xlu0 %v723
  %v725 = vpop.xlane.xlu0 %724
  %v726 = vsel %vm233, %v722, -inf
  %727 = vmax.xlane.f32.xlu0 %v726
  %v728 = vpop.xlane.xlu0 %727
  %v729 = vsub.f32 %v721, %v725
  %v730 = vsub.f32 %v722, %v728
  %v731 = vmul.f32 %v729, 1.442695
  %v732 = vpow.pop %v731
  %v733 = vmul.f32 %v730, 1.442695
  %v734 = vpow.pop %v733
  %v735 = vsel %vm233, %v732, 0.0
  %736 = vadd.xlane.f32.xlu0 %v735
  %v737 = vpop.xlane.xlu0 %736
  %v738 = vsel %vm233, %v734, 0.0
  %739 = vadd.xlane.f32.xlu0 %v738
  %v740 = vpop.xlane.xlu0 %739
  %v741 = vrcp.pop %v737
  %v742 = vrcp.pop %v740
  %v743 = vmul.f32 %v732, %v741
  %v744 = vmul.f32 %v734, %v742
  %745 = vrot.lane.b32.xlu0 %v222, 56
  %v746 = vpop.permute.xlu0 %745
  %v749 = vsel %vm233, %v743, 0
  %751 = vmatprep.subr.mxu0 0.0
  %752 = vmatpush1.msra.mxu0 %v746
  %753 = vmatprep.subr.mxu0 0.0
  %754 = vmatpush1.msra.mxu0 0.0
  %755 = vmatprep.subr.mxu0 0.0
  %756 = vmatpush1.msra.mxu0 0.0
  %757 = vmatprep.subr.mxu0 0.0
  %758 = vmatpush1.msra.mxu0 0.0
  %759 = vmatprep.subr.mxu0 0.0
  %760 = vmatpush1.msra.mxu0 0.0
  %761 = vmatprep.subr.mxu0 0.0
  %762 = vmatpush1.msra.mxu0 0.0
  %763 = vmatprep.subr.mxu0 0.0
  %764 = vmatpush1.msra.mxu0 0.0
  %765 = vmatprep.subr.mxu0 0.0
  %766 = vmatpush1.msra.mxu0 0.0
  %767 = vmatprep.subr.mxu0 0.0
  %768 = vmatpush1.msra.mxu0 0.0
  %769 = vmatprep.subr.mxu0 0.0
  %770 = vmatpush1.msra.mxu0 0.0
  %771 = vmatprep.subr.mxu0 0.0
  %772 = vmatpush1.msra.mxu0 0.0
  %773 = vmatprep.subr.mxu0 0.0
  %774 = vmatpush1.msra.mxu0 0.0
  %775 = vmatprep.subr.mxu0 0.0
  %776 = vmatpush1.msra.mxu0 0.0
  %777 = vmatprep.subr.mxu0 0.0
  %778 = vmatpush1.msra.mxu0 0.0
  %779 = vmatprep.subr.mxu0 0.0
  %780 = vmatpush1.msra.mxu0 0.0
  %781 = vmatprep.subr.mxu0 0.0
  %782 = vmatpush1.msra.mxu0 0.0
  %783 = vmatprep.subr.mxu0 0.0
  %784 = vmatpush1.msra.mxu0 0.0
  %785 = vmatprep.subr.mxu0 0.0
  %786 = vmatpush1.msra.mxu0 0.0
  %787 = vmatprep.subr.mxu0 0.0
  %788 = vmatpush1.msra.mxu0 0.0
  %789 = vmatprep.subr.mxu0 0.0
  %790 = vmatpush1.msra.mxu0 0.0
  %791 = vmatprep.subr.mxu0 0.0
  %792 = vmatpush1.msra.mxu0 0.0
  %793 = vmatprep.subr.mxu0 0.0
  %794 = vmatpush1.msra.mxu0 0.0
  %795 = vmatprep.subr.mxu0 0.0
  %796 = vmatpush1.msra.mxu0 0.0
  %797 = vmatprep.subr.mxu0 0.0
  %798 = vmatpush1.msra.mxu0 0.0
  %799 = vmatprep.subr.mxu0 0.0
  %800 = vmatpush1.msra.mxu0 0.0
  %801 = vmatprep.subr.mxu0 0.0
  %802 = vmatpush1.msra.mxu0 0.0
  %803 = vmatprep.subr.mxu0 0.0
  %804 = vmatpush1.msra.mxu0 0.0
  %805 = vmatprep.subr.mxu0 0.0
  %806 = vmatpush1.msra.mxu0 0.0
  %807 = vmatprep.subr.mxu0 0.0
  %808 = vmatpush1.msra.mxu0 0.0
  %809 = vmatprep.subr.mxu0 0.0
  %810 = vmatpush1.msra.mxu0 0.0
  %811 = vmatprep.subr.mxu0 0.0
  %812 = vmatpush1.msra.mxu0 0.0
  %813 = vmatprep.subr.mxu0 0.0
  %814 = vmatpush1.msra.mxu0 0.0
  %815 = vmatprep.mubr.f32.mxu0 0.0
  %816 = vmatmul.mubr.f32.gmra.mrb[0].mxu0 %v749
  %v817 = vpop.f32.mrb[0].mxu0
  %v818 = vadd.f32 0.0, %v817
  %v819 = vpop.f32.mrb[0].mxu0
  %820 = vdwg.mxu0
  %821 = vrot.lane.b32.xlu0 %v227, 56
  %v822 = vpop.permute.xlu0 %821
  %v825 = vsel %vm233, %v744, 0
  %827 = vmatprep.subr.mxu0 0.0
  %828 = vmatpush1.msra.mxu0 %v822
  %829 = vmatprep.subr.mxu0 0.0
  %830 = vmatpush1.msra.mxu0 0.0
  %831 = vmatprep.subr.mxu0 0.0
  %832 = vmatpush1.msra.mxu0 0.0
  %833 = vmatprep.subr.mxu0 0.0
  %834 = vmatpush1.msra.mxu0 0.0
  %835 = vmatprep.subr.mxu0 0.0
  %836 = vmatpush1.msra.mxu0 0.0
  %837 = vmatprep.subr.mxu0 0.0
  %838 = vmatpush1.msra.mxu0 0.0
  %839 = vmatprep.subr.mxu0 0.0
  %840 = vmatpush1.msra.mxu0 0.0
  %841 = vmatprep.subr.mxu0 0.0
  %842 = vmatpush1.msra.mxu0 0.0
  %843 = vmatprep.subr.mxu0 0.0
  %844 = vmatpush1.msra.mxu0 0.0
  %845 = vmatprep.subr.mxu0 0.0
  %846 = vmatpush1.msra.mxu0 0.0
  %847 = vmatprep.subr.mxu0 0.0
  %848 = vmatpush1.msra.mxu0 0.0
  %849 = vmatprep.subr.mxu0 0.0
  %850 = vmatpush1.msra.mxu0 0.0
  %851 = vmatprep.subr.mxu0 0.0
  %852 = vmatpush1.msra.mxu0 0.0
  %853 = vmatprep.subr.mxu0 0.0
  %854 = vmatpush1.msra.mxu0 0.0
  %855 = vmatprep.subr.mxu0 0.0
  %856 = vmatpush1.msra.mxu0 0.0
  %857 = vmatprep.subr.mxu0 0.0
  %858 = vmatpush1.msra.mxu0 0.0
  %859 = vmatprep.subr.mxu0 0.0
  %860 = vmatpush1.msra.mxu0 0.0
  %861 = vmatprep.subr.mxu0 0.0
  %862 = vmatpush1.msra.mxu0 0.0
  %863 = vmatprep.subr.mxu0 0.0
  %864 = vmatpush1.msra.mxu0 0.0
  %865 = vmatprep.subr.mxu0 0.0
  %866 = vmatpush1.msra.mxu0 0.0
  %867 = vmatprep.subr.mxu0 0.0
  %868 = vmatpush1.msra.mxu0 0.0
  %869 = vmatprep.subr.mxu0 0.0
  %870 = vmatpush1.msra.mxu0 0.0
  %871 = vmatprep.subr.mxu0 0.0
  %872 = vmatpush1.msra.mxu0 0.0
  %873 = vmatprep.subr.mxu0 0.0
  %874 = vmatpush1.msra.mxu0 0.0
  %875 = vmatprep.subr.mxu0 0.0
  %876 = vmatpush1.msra.mxu0 0.0
  %877 = vmatprep.subr.mxu0 0.0
  %878 = vmatpush1.msra.mxu0 0.0
  %879 = vmatprep.subr.mxu0 0.0
  %880 = vmatpush1.msra.mxu0 0.0
  %881 = vmatprep.subr.mxu0 0.0
  %882 = vmatpush1.msra.mxu0 0.0
  %883 = vmatprep.subr.mxu0 0.0
  %884 = vmatpush1.msra.mxu0 0.0
  %885 = vmatprep.subr.mxu0 0.0
  %886 = vmatpush1.msra.mxu0 0.0
  %887 = vmatprep.subr.mxu0 0.0
  %888 = vmatpush1.msra.mxu0 0.0
  %889 = vmatprep.subr.mxu0 0.0
  %890 = vmatpush1.msra.mxu0 0.0
  %891 = vmatprep.mubr.f32.mxu0 0.0
  %892 = vmatmul.mubr.f32.gmra.mrb[0].mxu0 %v825
  %v893 = vpop.f32.mrb[0].mxu0
  %v894 = vadd.f32 0.0, %v893
  %v895 = vpop.f32.mrb[0].mxu0
  %896 = vdwg.mxu0
  %897 = vrot.lane.b32.xlu0 %v222, 112
  %v898 = vpop.permute.xlu0 %897
  %899 = vrot.lane.b32.xlu0 %v222, 80
  %v900 = vpop.permute.xlu0 %899
  %v901 = vsel %vm233, %v898, 0
  %v903 = vsel %vm233, %v900, 0
  %905 = vmatprep.subr.mxu0 0.0
  %906 = vmatpush1.xpose.msra.mxu0 %v903
  %907 = vmatprep.subr.mxu0 0.0
  %908 = vmatpush1.xpose.msra.mxu0 0.0
  %909 = vmatprep.subr.mxu0 0.0
  %910 = vmatpush1.xpose.msra.mxu0 0.0
  %911 = vmatprep.subr.mxu0 0.0
  %912 = vmatpush1.xpose.msra.mxu0 0.0
  %913 = vmatprep.subr.mxu0 0.0
  %914 = vmatpush1.xpose.msra.mxu0 0.0
  %915 = vmatprep.subr.mxu0 0.0
  %916 = vmatpush1.xpose.msra.mxu0 0.0
  %917 = vmatprep.subr.mxu0 0.0
  %918 = vmatpush1.xpose.msra.mxu0 0.0
  %919 = vmatprep.subr.mxu0 0.0
  %920 = vmatpush1.xpose.msra.mxu0 0.0
  %921 = vmatprep.subr.mxu0 0.0
  %922 = vmatpush1.xpose.msra.mxu0 0.0
  %923 = vmatprep.subr.mxu0 0.0
  %924 = vmatpush1.xpose.msra.mxu0 0.0
  %925 = vmatprep.subr.mxu0 0.0
  %926 = vmatpush1.xpose.msra.mxu0 0.0
  %927 = vmatprep.subr.mxu0 0.0
  %928 = vmatpush1.xpose.msra.mxu0 0.0
  %929 = vmatprep.subr.mxu0 0.0
  %930 = vmatpush1.xpose.msra.mxu0 0.0
  %931 = vmatprep.subr.mxu0 0.0
  %932 = vmatpush1.xpose.msra.mxu0 0.0
  %933 = vmatprep.subr.mxu0 0.0
  %934 = vmatpush1.xpose.msra.mxu0 0.0
  %935 = vmatprep.subr.mxu0 0.0
  %936 = vmatpush1.xpose.msra.mxu0 0.0
  %937 = vmatprep.subr.mxu0 0.0
  %938 = vmatpush1.xpose.msra.mxu0 0.0
  %939 = vmatprep.subr.mxu0 0.0
  %940 = vmatpush1.xpose.msra.mxu0 0.0
  %941 = vmatprep.subr.mxu0 0.0
  %942 = vmatpush1.xpose.msra.mxu0 0.0
  %943 = vmatprep.subr.mxu0 0.0
  %944 = vmatpush1.xpose.msra.mxu0 0.0
  %945 = vmatprep.subr.mxu0 0.0
  %946 = vmatpush1.xpose.msra.mxu0 0.0
  %947 = vmatprep.subr.mxu0 0.0
  %948 = vmatpush1.xpose.msra.mxu0 0.0
  %949 = vmatprep.subr.mxu0 0.0
  %950 = vmatpush1.xpose.msra.mxu0 0.0
  %951 = vmatprep.subr.mxu0 0.0
  %952 = vmatpush1.xpose.msra.mxu0 0.0
  %953 = vmatprep.subr.mxu0 0.0
  %954 = vmatpush1.xpose.msra.mxu0 0.0
  %955 = vmatprep.subr.mxu0 0.0
  %956 = vmatpush1.xpose.msra.mxu0 0.0
  %957 = vmatprep.subr.mxu0 0.0
  %958 = vmatpush1.xpose.msra.mxu0 0.0
  %959 = vmatprep.subr.mxu0 0.0
  %960 = vmatpush1.xpose.msra.mxu0 0.0
  %961 = vmatprep.subr.mxu0 0.0
  %962 = vmatpush1.xpose.msra.mxu0 0.0
  %963 = vmatprep.subr.mxu0 0.0
  %964 = vmatpush1.xpose.msra.mxu0 0.0
  %965 = vmatprep.subr.mxu0 0.0
  %966 = vmatpush1.xpose.msra.mxu0 0.0
  %967 = vmatprep.subr.mxu0 0.0
  %968 = vmatpush1.xpose.msra.mxu0 0.0
  %969 = vmatprep.mubr.f32.mxu0 0.0
  %970 = vmatmul.mubr.f32.gmra.mrb[0].mxu0 %v901
  %v971 = vpop.f32.mrb[0].mxu0
  %v972 = vadd.f32 0.0, %v971
  %v973 = vpop.f32.mrb[0].mxu0
  %974 = vdwg.mxu0
  %975 = vrot.lane.b32.xlu0 %v227, 112
  %v976 = vpop.permute.xlu0 %975
  %977 = vrot.lane.b32.xlu0 %v227, 80
  %v978 = vpop.permute.xlu0 %977
  %v979 = vsel %vm233, %v976, 0
  %v981 = vsel %vm233, %v978, 0
  %983 = vmatprep.subr.mxu0 0.0
  %984 = vmatpush1.xpose.msra.mxu0 %v981
  %985 = vmatprep.subr.mxu0 0.0
  %986 = vmatpush1.xpose.msra.mxu0 0.0
  %987 = vmatprep.subr.mxu0 0.0
  %988 = vmatpush1.xpose.msra.mxu0 0.0
  %989 = vmatprep.subr.mxu0 0.0
  %990 = vmatpush1.xpose.msra.mxu0 0.0
  %991 = vmatprep.subr.mxu0 0.0
  %992 = vmatpush1.xpose.msra.mxu0 0.0
  %993 = vmatprep.subr.mxu0 0.0
  %994 = vmatpush1.xpose.msra.mxu0 0.0
  %995 = vmatprep.subr.mxu0 0.0
  %996 = vmatpush1.xpose.msra.mxu0 0.0
  %997 = vmatprep.subr.mxu0 0.0
  %998 = vmatpush1.xpose.msra.mxu0 0.0
  %999 = vmatprep.subr.mxu0 0.0
  %1000 = vmatpush1.xpose.msra.mxu0 0.0
  %1001 = vmatprep.subr.mxu0 0.0
  %1002 = vmatpush1.xpose.msra.mxu0 0.0
  %1003 = vmatprep.subr.mxu0 0.0
  %1004 = vmatpush1.xpose.msra.mxu0 0.0
  %1005 = vmatprep.subr.mxu0 0.0
  %1006 = vmatpush1.xpose.msra.mxu0 0.0
  %1007 = vmatprep.subr.mxu0 0.0
  %1008 = vmatpush1.xpose.msra.mxu0 0.0
  %1009 = vmatprep.subr.mxu0 0.0
  %1010 = vmatpush1.xpose.msra.mxu0 0.0
  %1011 = vmatprep.subr.mxu0 0.0
  %1012 = vmatpush1.xpose.msra.mxu0 0.0
  %1013 = vmatprep.subr.mxu0 0.0
  %1014 = vmatpush1.xpose.msra.mxu0 0.0
  %1015 = vmatprep.subr.mxu0 0.0
  %1016 = vmatpush1.xpose.msra.mxu0 0.0
  %1017 = vmatprep.subr.mxu0 0.0
  %1018 = vmatpush1.xpose.msra.mxu0 0.0
  %1019 = vmatprep.subr.mxu0 0.0
  %1020 = vmatpush1.xpose.msra.mxu0 0.0
  %1021 = vmatprep.subr.mxu0 0.0
  %1022 = vmatpush1.xpose.msra.mxu0 0.0
  %1023 = vmatprep.subr.mxu0 0.0
  %1024 = vmatpush1.xpose.msra.mxu0 0.0
  %1025 = vmatprep.subr.mxu0 0.0
  %1026 = vmatpush1.xpose.msra.mxu0 0.0
  %1027 = vmatprep.subr.mxu0 0.0
  %1028 = vmatpush1.xpose.msra.mxu0 0.0
  %1029 = vmatprep.subr.mxu0 0.0
  %1030 = vmatpush1.xpose.msra.mxu0 0.0
  %1031 = vmatprep.subr.mxu0 0.0
  %1032 = vmatpush1.xpose.msra.mxu0 0.0
  %1033 = vmatprep.subr.mxu0 0.0
  %1034 = vmatpush1.xpose.msra.mxu0 0.0
  %1035 = vmatprep.subr.mxu0 0.0
  %1036 = vmatpush1.xpose.msra.mxu0 0.0
  %1037 = vmatprep.subr.mxu0 0.0
  %1038 = vmatpush1.xpose.msra.mxu0 0.0
  %1039 = vmatprep.subr.mxu0 0.0
  %1040 = vmatpush1.xpose.msra.mxu0 0.0
  %1041 = vmatprep.subr.mxu0 0.0
  %1042 = vmatpush1.xpose.msra.mxu0 0.0
  %1043 = vmatprep.subr.mxu0 0.0
  %1044 = vmatpush1.xpose.msra.mxu0 0.0
  %1045 = vmatprep.subr.mxu0 0.0
  %1046 = vmatpush1.xpose.msra.mxu0 0.0
  %1047 = vmatprep.mubr.f32.mxu0 0.0
  %1048 = vmatmul.mubr.f32.gmra.mrb[0].mxu0 %v979
  %v1049 = vpop.f32.mrb[0].mxu0
  %v1050 = vadd.f32 0.0, %v1049
  %v1051 = vpop.f32.mrb[0].mxu0
  %1052 = vdwg.mxu0
  %v1053 = vmul.f32 %v972, 0.35355338
  %v1054 = vmul.f32 %v1050, 0.35355338
  %v1055 = vsel %vm136, %v1053, -1e+09
  %v1056 = vsel %vm137, %v1054, -1e+09
  %v1057 = vsel %vm233, %v1055, -inf
  %1058 = vmax.xlane.f32.xlu0 %v1057
  %v1059 = vpop.xlane.xlu0 %1058
  %v1060 = vsel %vm233, %v1056, -inf
  %1061 = vmax.xlane.f32.xlu0 %v1060
  %v1062 = vpop.xlane.xlu0 %1061
  %v1063 = vsub.f32 %v1055, %v1059
  %v1064 = vsub.f32 %v1056, %v1062
  %v1065 = vmul.f32 %v1063, 1.442695
  %v1066 = vpow.pop %v1065
  %v1067 = vmul.f32 %v1064, 1.442695
  %v1068 = vpow.pop %v1067
  %v1069 = vsel %vm233, %v1066, 0.0
  %1070 = vadd.xlane.f32.xlu0 %v1069
  %v1071 = vpop.xlane.xlu0 %1070
  %v1072 = vsel %vm233, %v1068, 0.0
  %1073 = vadd.xlane.f32.xlu0 %v1072
  %v1074 = vpop.xlane.xlu0 %1073
  %v1075 = vrcp.pop %v1071
  %v1076 = vrcp.pop %v1074
  %v1077 = vmul.f32 %v1066, %v1075
  %v1078 = vmul.f32 %v1068, %v1076
  %1079 = vrot.lane.b32.xlu0 %v222, 48
  %v1080 = vpop.permute.xlu0 %1079
  %v1083 = vsel %vm233, %v1077, 0
  %1085 = vmatprep.subr.mxu0 0.0
  %1086 = vmatpush1.msra.mxu0 %v1080
  %1087 = vmatprep.subr.mxu0 0.0
  %1088 = vmatpush1.msra.mxu0 0.0
  %1089 = vmatprep.subr.mxu0 0.0
  %1090 = vmatpush1.msra.mxu0 0.0
  %1091 = vmatprep.subr.mxu0 0.0
  %1092 = vmatpush1.msra.mxu0 0.0
  %1093 = vmatprep.subr.mxu0 0.0
  %1094 = vmatpush1.msra.mxu0 0.0
  %1095 = vmatprep.subr.mxu0 0.0
  %1096 = vmatpush1.msra.mxu0 0.0
  %1097 = vmatprep.subr.mxu0 0.0
  %1098 = vmatpush1.msra.mxu0 0.0
  %1099 = vmatprep.subr.mxu0 0.0
  %1100 = vmatpush1.msra.mxu0 0.0
  %1101 = vmatprep.subr.mxu0 0.0
  %1102 = vmatpush1.msra.mxu0 0.0
  %1103 = vmatprep.subr.mxu0 0.0
  %1104 = vmatpush1.msra.mxu0 0.0
  %1105 = vmatprep.subr.mxu0 0.0
  %1106 = vmatpush1.msra.mxu0 0.0
  %1107 = vmatprep.subr.mxu0 0.0
  %1108 = vmatpush1.msra.mxu0 0.0
  %1109 = vmatprep.subr.mxu0 0.0
  %1110 = vmatpush1.msra.mxu0 0.0
  %1111 = vmatprep.subr.mxu0 0.0
  %1112 = vmatpush1.msra.mxu0 0.0
  %1113 = vmatprep.subr.mxu0 0.0
  %1114 = vmatpush1.msra.mxu0 0.0
  %1115 = vmatprep.subr.mxu0 0.0
  %1116 = vmatpush1.msra.mxu0 0.0
  %1117 = vmatprep.subr.mxu0 0.0
  %1118 = vmatpush1.msra.mxu0 0.0
  %1119 = vmatprep.subr.mxu0 0.0
  %1120 = vmatpush1.msra.mxu0 0.0
  %1121 = vmatprep.subr.mxu0 0.0
  %1122 = vmatpush1.msra.mxu0 0.0
  %1123 = vmatprep.subr.mxu0 0.0
  %1124 = vmatpush1.msra.mxu0 0.0
  %1125 = vmatprep.subr.mxu0 0.0
  %1126 = vmatpush1.msra.mxu0 0.0
  %1127 = vmatprep.subr.mxu0 0.0
  %1128 = vmatpush1.msra.mxu0 0.0
  %1129 = vmatprep.subr.mxu0 0.0
  %1130 = vmatpush1.msra.mxu0 0.0
  %1131 = vmatprep.subr.mxu0 0.0
  %1132 = vmatpush1.msra.mxu0 0.0
  %1133 = vmatprep.subr.mxu0 0.0
  %1134 = vmatpush1.msra.mxu0 0.0
  %1135 = vmatprep.subr.mxu0 0.0
  %1136 = vmatpush1.msra.mxu0 0.0
  %1137 = vmatprep.subr.mxu0 0.0
  %1138 = vmatpush1.msra.mxu0 0.0
  %1139 = vmatprep.subr.mxu0 0.0
  %1140 = vmatpush1.msra.mxu0 0.0
  %1141 = vmatprep.subr.mxu0 0.0
  %1142 = vmatpush1.msra.mxu0 0.0
  %1143 = vmatprep.subr.mxu0 0.0
  %1144 = vmatpush1.msra.mxu0 0.0
  %1145 = vmatprep.subr.mxu0 0.0
  %1146 = vmatpush1.msra.mxu0 0.0
  %1147 = vmatprep.subr.mxu0 0.0
  %1148 = vmatpush1.msra.mxu0 0.0
  %1149 = vmatprep.mubr.f32.mxu0 0.0
  %1150 = vmatmul.mubr.f32.gmra.mrb[0].mxu0 %v1083
  %v1151 = vpop.f32.mrb[0].mxu0
  %v1152 = vadd.f32 0.0, %v1151
  %v1153 = vpop.f32.mrb[0].mxu0
  %1154 = vdwg.mxu0
  %1155 = vrot.lane.b32.xlu0 %v227, 48
  %v1156 = vpop.permute.xlu0 %1155
  %v1159 = vsel %vm233, %v1078, 0
  %1161 = vmatprep.subr.mxu0 0.0
  %1162 = vmatpush1.msra.mxu0 %v1156
  %1163 = vmatprep.subr.mxu0 0.0
  %1164 = vmatpush1.msra.mxu0 0.0
  %1165 = vmatprep.subr.mxu0 0.0
  %1166 = vmatpush1.msra.mxu0 0.0
  %1167 = vmatprep.subr.mxu0 0.0
  %1168 = vmatpush1.msra.mxu0 0.0
  %1169 = vmatprep.subr.mxu0 0.0
  %1170 = vmatpush1.msra.mxu0 0.0
  %1171 = vmatprep.subr.mxu0 0.0
  %1172 = vmatpush1.msra.mxu0 0.0
  %1173 = vmatprep.subr.mxu0 0.0
  %1174 = vmatpush1.msra.mxu0 0.0
  %1175 = vmatprep.subr.mxu0 0.0
  %1176 = vmatpush1.msra.mxu0 0.0
  %1177 = vmatprep.subr.mxu0 0.0
  %1178 = vmatpush1.msra.mxu0 0.0
  %1179 = vmatprep.subr.mxu0 0.0
  %1180 = vmatpush1.msra.mxu0 0.0
  %1181 = vmatprep.subr.mxu0 0.0
  %1182 = vmatpush1.msra.mxu0 0.0
  %1183 = vmatprep.subr.mxu0 0.0
  %1184 = vmatpush1.msra.mxu0 0.0
  %1185 = vmatprep.subr.mxu0 0.0
  %1186 = vmatpush1.msra.mxu0 0.0
  %1187 = vmatprep.subr.mxu0 0.0
  %1188 = vmatpush1.msra.mxu0 0.0
  %1189 = vmatprep.subr.mxu0 0.0
  %1190 = vmatpush1.msra.mxu0 0.0
  %1191 = vmatprep.subr.mxu0 0.0
  %1192 = vmatpush1.msra.mxu0 0.0
  %1193 = vmatprep.subr.mxu0 0.0
  %1194 = vmatpush1.msra.mxu0 0.0
  %1195 = vmatprep.subr.mxu0 0.0
  %1196 = vmatpush1.msra.mxu0 0.0
  %1197 = vmatprep.subr.mxu0 0.0
  %1198 = vmatpush1.msra.mxu0 0.0
  %1199 = vmatprep.subr.mxu0 0.0
  %1200 = vmatpush1.msra.mxu0 0.0
  %1201 = vmatprep.subr.mxu0 0.0
  %1202 = vmatpush1.msra.mxu0 0.0
  %1203 = vmatprep.subr.mxu0 0.0
  %1204 = vmatpush1.msra.mxu0 0.0
  %1205 = vmatprep.subr.mxu0 0.0
  %1206 = vmatpush1.msra.mxu0 0.0
  %1207 = vmatprep.subr.mxu0 0.0
  %1208 = vmatpush1.msra.mxu0 0.0
  %1209 = vmatprep.subr.mxu0 0.0
  %1210 = vmatpush1.msra.mxu0 0.0
  %1211 = vmatprep.subr.mxu0 0.0
  %1212 = vmatpush1.msra.mxu0 0.0
  %1213 = vmatprep.subr.mxu0 0.0
  %1214 = vmatpush1.msra.mxu0 0.0
  %1215 = vmatprep.subr.mxu0 0.0
  %1216 = vmatpush1.msra.mxu0 0.0
  %1217 = vmatprep.subr.mxu0 0.0
  %1218 = vmatpush1.msra.mxu0 0.0
  %1219 = vmatprep.subr.mxu0 0.0
  %1220 = vmatpush1.msra.mxu0 0.0
  %1221 = vmatprep.subr.mxu0 0.0
  %1222 = vmatpush1.msra.mxu0 0.0
  %1223 = vmatprep.subr.mxu0 0.0
  %1224 = vmatpush1.msra.mxu0 0.0
  %1225 = vmatprep.mubr.f32.mxu0 0.0
  %1226 = vmatmul.mubr.f32.gmra.mrb[0].mxu0 %v1159
  %v1227 = vpop.f32.mrb[0].mxu0
  %v1228 = vadd.f32 0.0, %v1227
  %v1229 = vpop.f32.mrb[0].mxu0
  %1230 = vdwg.mxu0
  %1231 = vrot.lane.b32.xlu0 %v222, 104
  %v1232 = vpop.permute.xlu0 %1231
  %1233 = vrot.lane.b32.xlu0 %v222, 72
  %v1234 = vpop.permute.xlu0 %1233
  %v1235 = vsel %vm233, %v1232, 0
  %v1237 = vsel %vm233, %v1234, 0
  %1239 = vmatprep.subr.mxu0 0.0
  %1240 = vmatpush1.xpose.msra.mxu0 %v1237
  %1241 = vmatprep.subr.mxu0 0.0
  %1242 = vmatpush1.xpose.msra.mxu0 0.0
  %1243 = vmatprep.subr.mxu0 0.0
  %1244 = vmatpush1.xpose.msra.mxu0 0.0
  %1245 = vmatprep.subr.mxu0 0.0
  %1246 = vmatpush1.xpose.msra.mxu0 0.0
  %1247 = vmatprep.subr.mxu0 0.0
  %1248 = vmatpush1.xpose.msra.mxu0 0.0
  %1249 = vmatprep.subr.mxu0 0.0
  %1250 = vmatpush1.xpose.msra.mxu0 0.0
  %1251 = vmatprep.subr.mxu0 0.0
  %1252 = vmatpush1.xpose.msra.mxu0 0.0
  %1253 = vmatprep.subr.mxu0 0.0
  %1254 = vmatpush1.xpose.msra.mxu0 0.0
  %1255 = vmatprep.subr.mxu0 0.0
  %1256 = vmatpush1.xpose.msra.mxu0 0.0
  %1257 = vmatprep.subr.mxu0 0.0
  %1258 = vmatpush1.xpose.msra.mxu0 0.0
  %1259 = vmatprep.subr.mxu0 0.0
  %1260 = vmatpush1.xpose.msra.mxu0 0.0
  %1261 = vmatprep.subr.mxu0 0.0
  %1262 = vmatpush1.xpose.msra.mxu0 0.0
  %1263 = vmatprep.subr.mxu0 0.0
  %1264 = vmatpush1.xpose.msra.mxu0 0.0
  %1265 = vmatprep.subr.mxu0 0.0
  %1266 = vmatpush1.xpose.msra.mxu0 0.0
  %1267 = vmatprep.subr.mxu0 0.0
  %1268 = vmatpush1.xpose.msra.mxu0 0.0
  %1269 = vmatprep.subr.mxu0 0.0
  %1270 = vmatpush1.xpose.msra.mxu0 0.0
  %1271 = vmatprep.subr.mxu0 0.0
  %1272 = vmatpush1.xpose.msra.mxu0 0.0
  %1273 = vmatprep.subr.mxu0 0.0
  %1274 = vmatpush1.xpose.msra.mxu0 0.0
  %1275 = vmatprep.subr.mxu0 0.0
  %1276 = vmatpush1.xpose.msra.mxu0 0.0
  %1277 = vmatprep.subr.mxu0 0.0
  %1278 = vmatpush1.xpose.msra.mxu0 0.0
  %1279 = vmatprep.subr.mxu0 0.0
  %1280 = vmatpush1.xpose.msra.mxu0 0.0
  %1281 = vmatprep.subr.mxu0 0.0
  %1282 = vmatpush1.xpose.msra.mxu0 0.0
  %1283 = vmatprep.subr.mxu0 0.0
  %1284 = vmatpush1.xpose.msra.mxu0 0.0
  %1285 = vmatprep.subr.mxu0 0.0
  %1286 = vmatpush1.xpose.msra.mxu0 0.0
  %1287 = vmatprep.subr.mxu0 0.0
  %1288 = vmatpush1.xpose.msra.mxu0 0.0
  %1289 = vmatprep.subr.mxu0 0.0
  %1290 = vmatpush1.xpose.msra.mxu0 0.0
  %1291 = vmatprep.subr.mxu0 0.0
  %1292 = vmatpush1.xpose.msra.mxu0 0.0
  %1293 = vmatprep.subr.mxu0 0.0
  %1294 = vmatpush1.xpose.msra.mxu0 0.0
  %1295 = vmatprep.subr.mxu0 0.0
  %1296 = vmatpush1.xpose.msra.mxu0 0.0
  %1297 = vmatprep.subr.mxu0 0.0
  %1298 = vmatpush1.xpose.msra.mxu0 0.0
  %1299 = vmatprep.subr.mxu0 0.0
  %1300 = vmatpush1.xpose.msra.mxu0 0.0
  %1301 = vmatprep.subr.mxu0 0.0
  %1302 = vmatpush1.xpose.msra.mxu0 0.0
  %1303 = vmatprep.mubr.f32.mxu0 0.0
  %1304 = vmatmul.mubr.f32.gmra.mrb[0].mxu0 %v1235
  %v1305 = vpop.f32.mrb[0].mxu0
  %v1306 = vadd.f32 0.0, %v1305
  %v1307 = vpop.f32.mrb[0].mxu0
  %1308 = vdwg.mxu0
  %1309 = vrot.lane.b32.xlu0 %v227, 104
  %v1310 = vpop.permute.xlu0 %1309
  %1311 = vrot.lane.b32.xlu0 %v227, 72
  %v1312 = vpop.permute.xlu0 %1311
  %v1313 = vsel %vm233, %v1310, 0
  %v1315 = vsel %vm233, %v1312, 0
  %1317 = vmatprep.subr.mxu0 0.0
  %1318 = vmatpush1.xpose.msra.mxu0 %v1315
  %1319 = vmatprep.subr.mxu0 0.0
  %1320 = vmatpush1.xpose.msra.mxu0 0.0
  %1321 = vmatprep.subr.mxu0 0.0
  %1322 = vmatpush1.xpose.msra.mxu0 0.0
  %1323 = vmatprep.subr.mxu0 0.0
  %1324 = vmatpush1.xpose.msra.mxu0 0.0
  %1325 = vmatprep.subr.mxu0 0.0
  %1326 = vmatpush1.xpose.msra.mxu0 0.0
  %1327 = vmatprep.subr.mxu0 0.0
  %1328 = vmatpush1.xpose.msra.mxu0 0.0
  %1329 = vmatprep.subr.mxu0 0.0
  %1330 = vmatpush1.xpose.msra.mxu0 0.0
  %1331 = vmatprep.subr.mxu0 0.0
  %1332 = vmatpush1.xpose.msra.mxu0 0.0
  %1333 = vmatprep.subr.mxu0 0.0
  %1334 = vmatpush1.xpose.msra.mxu0 0.0
  %1335 = vmatprep.subr.mxu0 0.0
  %1336 = vmatpush1.xpose.msra.mxu0 0.0
  %1337 = vmatprep.subr.mxu0 0.0
  %1338 = vmatpush1.xpose.msra.mxu0 0.0
  %1339 = vmatprep.subr.mxu0 0.0
  %1340 = vmatpush1.xpose.msra.mxu0 0.0
  %1341 = vmatprep.subr.mxu0 0.0
  %1342 = vmatpush1.xpose.msra.mxu0 0.0
  %1343 = vmatprep.subr.mxu0 0.0
  %1344 = vmatpush1.xpose.msra.mxu0 0.0
  %1345 = vmatprep.subr.mxu0 0.0
  %1346 = vmatpush1.xpose.msra.mxu0 0.0
  %1347 = vmatprep.subr.mxu0 0.0
  %1348 = vmatpush1.xpose.msra.mxu0 0.0
  %1349 = vmatprep.subr.mxu0 0.0
  %1350 = vmatpush1.xpose.msra.mxu0 0.0
  %1351 = vmatprep.subr.mxu0 0.0
  %1352 = vmatpush1.xpose.msra.mxu0 0.0
  %1353 = vmatprep.subr.mxu0 0.0
  %1354 = vmatpush1.xpose.msra.mxu0 0.0
  %1355 = vmatprep.subr.mxu0 0.0
  %1356 = vmatpush1.xpose.msra.mxu0 0.0
  %1357 = vmatprep.subr.mxu0 0.0
  %1358 = vmatpush1.xpose.msra.mxu0 0.0
  %1359 = vmatprep.subr.mxu0 0.0
  %1360 = vmatpush1.xpose.msra.mxu0 0.0
  %1361 = vmatprep.subr.mxu0 0.0
  %1362 = vmatpush1.xpose.msra.mxu0 0.0
  %1363 = vmatprep.subr.mxu0 0.0
  %1364 = vmatpush1.xpose.msra.mxu0 0.0
  %1365 = vmatprep.subr.mxu0 0.0
  %1366 = vmatpush1.xpose.msra.mxu0 0.0
  %1367 = vmatprep.subr.mxu0 0.0
  %1368 = vmatpush1.xpose.msra.mxu0 0.0
  %1369 = vmatprep.subr.mxu0 0.0
  %1370 = vmatpush1.xpose.msra.mxu0 0.0
  %1371 = vmatprep.subr.mxu0 0.0
  %1372 = vmatpush1.xpose.msra.mxu0 0.0
  %1373 = vmatprep.subr.mxu0 0.0
  %1374 = vmatpush1.xpose.msra.mxu0 0.0
  %1375 = vmatprep.subr.mxu0 0.0
  %1376 = vmatpush1.xpose.msra.mxu0 0.0
  %1377 = vmatprep.subr.mxu0 0.0
  %1378 = vmatpush1.xpose.msra.mxu0 0.0
  %1379 = vmatprep.subr.mxu0 0.0
  %1380 = vmatpush1.xpose.msra.mxu0 0.0
  %1381 = vmatprep.mubr.f32.mxu0 0.0
  %1382 = vmatmul.mubr.f32.gmra.mrb[0].mxu0 %v1313
  %v1383 = vpop.f32.mrb[0].mxu0
  %v1384 = vadd.f32 0.0, %v1383
  %v1385 = vpop.f32.mrb[0].mxu0
  %1386 = vdwg.mxu0
  %v1387 = vmul.f32 %v1306, 0.35355338
  %v1388 = vmul.f32 %v1384, 0.35355338
  %v1389 = vsel %vm136, %v1387, -1e+09
  %v1390 = vsel %vm137, %v1388, -1e+09
  %v1391 = vsel %vm233, %v1389, -inf
  %1392 = vmax.xlane.f32.xlu0 %v1391
  %v1393 = vpop.xlane.xlu0 %1392
  %v1394 = vsel %vm233, %v1390, -inf
  %1395 = vmax.xlane.f32.xlu0 %v1394
  %v1396 = vpop.xlane.xlu0 %1395
  %v1397 = vsub.f32 %v1389, %v1393
  %v1398 = vsub.f32 %v1390, %v1396
  %v1399 = vmul.f32 %v1397, 1.442695
  %v1400 = vpow.pop %v1399
  %v1401 = vmul.f32 %v1398, 1.442695
  %v1402 = vpow.pop %v1401
  %v1403 = vsel %vm233, %v1400, 0.0
  %1404 = vadd.xlane.f32.xlu0 %v1403
  %v1405 = vpop.xlane.xlu0 %1404
  %v1406 = vsel %vm233, %v1402, 0.0
  %1407 = vadd.xlane.f32.xlu0 %v1406
  %v1408 = vpop.xlane.xlu0 %1407
  %v1409 = vrcp.pop %v1405
  %v1410 = vrcp.pop %v1408
  %v1411 = vmul.f32 %v1400, %v1409
  %v1412 = vmul.f32 %v1402, %v1410
  %1413 = vrot.lane.b32.xlu0 %v222, 40
  %v1414 = vpop.permute.xlu0 %1413
  %v1417 = vsel %vm233, %v1411, 0
  %1419 = vmatprep.subr.mxu0 0.0
  %1420 = vmatpush1.msra.mxu0 %v1414
  %1421 = vmatprep.subr.mxu0 0.0
  %1422 = vmatpush1.msra.mxu0 0.0
  %1423 = vmatprep.subr.mxu0 0.0
  %1424 = vmatpush1.msra.mxu0 0.0
  %1425 = vmatprep.subr.mxu0 0.0
  %1426 = vmatpush1.msra.mxu0 0.0
  %1427 = vmatprep.subr.mxu0 0.0
  %1428 = vmatpush1.msra.mxu0 0.0
  %1429 = vmatprep.subr.mxu0 0.0
  %1430 = vmatpush1.msra.mxu0 0.0
  %1431 = vmatprep.subr.mxu0 0.0
  %1432 = vmatpush1.msra.mxu0 0.0
  %1433 = vmatprep.subr.mxu0 0.0
  %1434 = vmatpush1.msra.mxu0 0.0
  %1435 = vmatprep.subr.mxu0 0.0
  %1436 = vmatpush1.msra.mxu0 0.0
  %1437 = vmatprep.subr.mxu0 0.0
  %1438 = vmatpush1.msra.mxu0 0.0
  %1439 = vmatprep.subr.mxu0 0.0
  %1440 = vmatpush1.msra.mxu0 0.0
  %1441 = vmatprep.subr.mxu0 0.0
  %1442 = vmatpush1.msra.mxu0 0.0
  %1443 = vmatprep.subr.mxu0 0.0
  %1444 = vmatpush1.msra.mxu0 0.0
  %1445 = vmatprep.subr.mxu0 0.0
  %1446 = vmatpush1.msra.mxu0 0.0
  %1447 = vmatprep.subr.mxu0 0.0
  %1448 = vmatpush1.msra.mxu0 0.0
  %1449 = vmatprep.subr.mxu0 0.0
  %1450 = vmatpush1.msra.mxu0 0.0
  %1451 = vmatprep.subr.mxu0 0.0
  %1452 = vmatpush1.msra.mxu0 0.0
  %1453 = vmatprep.subr.mxu0 0.0
  %1454 = vmatpush1.msra.mxu0 0.0
  %1455 = vmatprep.subr.mxu0 0.0
  %1456 = vmatpush1.msra.mxu0 0.0
  %1457 = vmatprep.subr.mxu0 0.0
  %1458 = vmatpush1.msra.mxu0 0.0
  %1459 = vmatprep.subr.mxu0 0.0
  %1460 = vmatpush1.msra.mxu0 0.0
  %1461 = vmatprep.subr.mxu0 0.0
  %1462 = vmatpush1.msra.mxu0 0.0
  %1463 = vmatprep.subr.mxu0 0.0
  %1464 = vmatpush1.msra.mxu0 0.0
  %1465 = vmatprep.subr.mxu0 0.0
  %1466 = vmatpush1.msra.mxu0 0.0
  %1467 = vmatprep.subr.mxu0 0.0
  %1468 = vmatpush1.msra.mxu0 0.0
  %1469 = vmatprep.subr.mxu0 0.0
  %1470 = vmatpush1.msra.mxu0 0.0
  %1471 = vmatprep.subr.mxu0 0.0
  %1472 = vmatpush1.msra.mxu0 0.0
  %1473 = vmatprep.subr.mxu0 0.0
  %1474 = vmatpush1.msra.mxu0 0.0
  %1475 = vmatprep.subr.mxu0 0.0
  %1476 = vmatpush1.msra.mxu0 0.0
  %1477 = vmatprep.subr.mxu0 0.0
  %1478 = vmatpush1.msra.mxu0 0.0
  %1479 = vmatprep.subr.mxu0 0.0
  %1480 = vmatpush1.msra.mxu0 0.0
  %1481 = vmatprep.subr.mxu0 0.0
  %1482 = vmatpush1.msra.mxu0 0.0
  %1483 = vmatprep.mubr.f32.mxu0 0.0
  %1484 = vmatmul.mubr.f32.gmra.mrb[0].mxu0 %v1417
  %v1485 = vpop.f32.mrb[0].mxu0
  %v1486 = vadd.f32 0.0, %v1485
  %v1487 = vpop.f32.mrb[0].mxu0
  %1488 = vdwg.mxu0
  %1489 = vrot.lane.b32.xlu0 %v227, 40
  %v1490 = vpop.permute.xlu0 %1489
  %v1493 = vsel %vm233, %v1412, 0
  %1495 = vmatprep.subr.mxu0 0.0
  %1496 = vmatpush1.msra.mxu0 %v1490
  %1497 = vmatprep.subr.mxu0 0.0
  %1498 = vmatpush1.msra.mxu0 0.0
  %1499 = vmatprep.subr.mxu0 0.0
  %1500 = vmatpush1.msra.mxu0 0.0
  %1501 = vmatprep.subr.mxu0 0.0
  %1502 = vmatpush1.msra.mxu0 0.0
  %1503 = vmatprep.subr.mxu0 0.0
  %1504 = vmatpush1.msra.mxu0 0.0
  %1505 = vmatprep.subr.mxu0 0.0
  %1506 = vmatpush1.msra.mxu0 0.0
  %1507 = vmatprep.subr.mxu0 0.0
  %1508 = vmatpush1.msra.mxu0 0.0
  %1509 = vmatprep.subr.mxu0 0.0
  %1510 = vmatpush1.msra.mxu0 0.0
  %1511 = vmatprep.subr.mxu0 0.0
  %1512 = vmatpush1.msra.mxu0 0.0
  %1513 = vmatprep.subr.mxu0 0.0
  %1514 = vmatpush1.msra.mxu0 0.0
  %1515 = vmatprep.subr.mxu0 0.0
  %1516 = vmatpush1.msra.mxu0 0.0
  %1517 = vmatprep.subr.mxu0 0.0
  %1518 = vmatpush1.msra.mxu0 0.0
  %1519 = vmatprep.subr.mxu0 0.0
  %1520 = vmatpush1.msra.mxu0 0.0
  %1521 = vmatprep.subr.mxu0 0.0
  %1522 = vmatpush1.msra.mxu0 0.0
  %1523 = vmatprep.subr.mxu0 0.0
  %1524 = vmatpush1.msra.mxu0 0.0
  %1525 = vmatprep.subr.mxu0 0.0
  %1526 = vmatpush1.msra.mxu0 0.0
  %1527 = vmatprep.subr.mxu0 0.0
  %1528 = vmatpush1.msra.mxu0 0.0
  %1529 = vmatprep.subr.mxu0 0.0
  %1530 = vmatpush1.msra.mxu0 0.0
  %1531 = vmatprep.subr.mxu0 0.0
  %1532 = vmatpush1.msra.mxu0 0.0
  %1533 = vmatprep.subr.mxu0 0.0
  %1534 = vmatpush1.msra.mxu0 0.0
  %1535 = vmatprep.subr.mxu0 0.0
  %1536 = vmatpush1.msra.mxu0 0.0
  %1537 = vmatprep.subr.mxu0 0.0
  %1538 = vmatpush1.msra.mxu0 0.0
  %1539 = vmatprep.subr.mxu0 0.0
  %1540 = vmatpush1.msra.mxu0 0.0
  %1541 = vmatprep.subr.mxu0 0.0
  %1542 = vmatpush1.msra.mxu0 0.0
  %1543 = vmatprep.subr.mxu0 0.0
  %1544 = vmatpush1.msra.mxu0 0.0
  %1545 = vmatprep.subr.mxu0 0.0
  %1546 = vmatpush1.msra.mxu0 0.0
  %1547 = vmatprep.subr.mxu0 0.0
  %1548 = vmatpush1.msra.mxu0 0.0
  %1549 = vmatprep.subr.mxu0 0.0
  %1550 = vmatpush1.msra.mxu0 0.0
  %1551 = vmatprep.subr.mxu0 0.0
  %1552 = vmatpush1.msra.mxu0 0.0
  %1553 = vmatprep.subr.mxu0 0.0
  %1554 = vmatpush1.msra.mxu0 0.0
  %1555 = vmatprep.subr.mxu0 0.0
  %1556 = vmatpush1.msra.mxu0 0.0
  %1557 = vmatprep.subr.mxu0 0.0
  %1558 = vmatpush1.msra.mxu0 0.0
  %1559 = vmatprep.mubr.f32.mxu0 0.0
  %1560 = vmatmul.mubr.f32.gmra.mrb[0].mxu0 %v1493
  %v1561 = vpop.f32.mrb[0].mxu0
  %v1562 = vadd.f32 0.0, %v1561
  %v1563 = vpop.f32.mrb[0].mxu0
  %1564 = vdwg.mxu0
  %1567 = vrot.lane.b32.xlu0 %v818, 8
  %v1568 = vpop.permute.xlu0 %1567
  %1569 = vrot.lane.b32.xlu0 %v894, 8
  %v1570 = vpop.permute.xlu0 %1569
  %1575 = vrot.lane.b32.xlu0 %v1152, 16
  %v1576 = vpop.permute.xlu0 %1575
  %1577 = vrot.lane.b32.xlu0 %v1228, 16
  %v1578 = vpop.permute.xlu0 %1577
  %1583 = vrot.lane.b32.xlu0 %v1486, 24
  %v1584 = vpop.permute.xlu0 %1583
  %1585 = vrot.lane.b32.xlu0 %v1562, 24
  %v1586 = vpop.permute.xlu0 %1585
  %v1589 = vsel %vm233, %v484, %v1568
  %v1590 = vsel %vm233, %v560, %v1570
  %vm1591 = vcmask 130048
  %v1592 = vsel %vm1591, %v1589, %v1576
  %v1593 = vsel %vm1591, %v1590, %v1578
  %vm1594 = vcmask 195584
  %v1595 = vsel %vm1594, %v1592, %v1584
  %v1596 = vsel %vm1594, %v1593, %v1586
  %v1597 = vld [vmem:[%s7] sm:$0xff]
  %v1598 = vld [vmem:[%s7 + $0x8] sm:$0xff]
  %v1599 = vld [vmem:[%s7 + $0x10] sm:$0xff]
  %v1600 = vld [vmem:[%s7 + $0x18] sm:$0xff]
  %v1601 = vld [vmem:[%s8] sm:$0x1]
  %v1603 = vlaneseq
  %v1604 = vshrl.u32 %v1603, 7
  %v1605 = vsub.s32 0, %v1604
  %v1606 = vrot.slane %v1601, %v1605
  %v1609 = vsel %vm78, %v1595, 0
  %v1612 = vsel %vm78, %v1596, 0
  %1614 = vmatprep.subr.mxu0 0.0
  %1615 = vmatpush1.msra.mxu0 %v1597
  %1616 = vmatprep.subr.mxu0 0.0
  %1617 = vmatpush1.msra.mxu0 %v1598
  %1618 = vmatprep.subr.mxu0 0.0
  %1619 = vmatpush1.msra.mxu0 %v1599
  %1620 = vmatprep.subr.mxu0 0.0
  %1621 = vmatpush1.msra.mxu0 %v1600
  %1622 = vmatprep.subr.mxu0 0.0
  %1623 = vmatpush1.msra.mxu0 0.0
  %1624 = vmatprep.subr.mxu0 0.0
  %1625 = vmatpush1.msra.mxu0 0.0
  %1626 = vmatprep.subr.mxu0 0.0
  %1627 = vmatpush1.msra.mxu0 0.0
  %1628 = vmatprep.subr.mxu0 0.0
  %1629 = vmatpush1.msra.mxu0 0.0
  %1630 = vmatprep.subr.mxu0 0.0
  %1631 = vmatpush1.msra.mxu0 0.0
  %1632 = vmatprep.subr.mxu0 0.0
  %1633 = vmatpush1.msra.mxu0 0.0
  %1634 = vmatprep.subr.mxu0 0.0
  %1635 = vmatpush1.msra.mxu0 0.0
  %1636 = vmatprep.subr.mxu0 0.0
  %1637 = vmatpush1.msra.mxu0 0.0
  %1638 = vmatprep.subr.mxu0 0.0
  %1639 = vmatpush1.msra.mxu0 0.0
  %1640 = vmatprep.subr.mxu0 0.0
  %1641 = vmatpush1.msra.mxu0 0.0
  %1642 = vmatprep.subr.mxu0 0.0
  %1643 = vmatpush1.msra.mxu0 0.0
  %1644 = vmatprep.subr.mxu0 0.0
  %1645 = vmatpush1.msra.mxu0 0.0
  %1646 = vmatprep.subr.mxu0 0.0
  %1647 = vmatpush1.msra.mxu0 0.0
  %1648 = vmatprep.subr.mxu0 0.0
  %1649 = vmatpush1.msra.mxu0 0.0
  %1650 = vmatprep.subr.mxu0 0.0
  %1651 = vmatpush1.msra.mxu0 0.0
  %1652 = vmatprep.subr.mxu0 0.0
  %1653 = vmatpush1.msra.mxu0 0.0
  %1654 = vmatprep.subr.mxu0 0.0
  %1655 = vmatpush1.msra.mxu0 0.0
  %1656 = vmatprep.subr.mxu0 0.0
  %1657 = vmatpush1.msra.mxu0 0.0
  %1658 = vmatprep.subr.mxu0 0.0
  %1659 = vmatpush1.msra.mxu0 0.0
  %1660 = vmatprep.subr.mxu0 0.0
  %1661 = vmatpush1.msra.mxu0 0.0
  %1662 = vmatprep.subr.mxu0 0.0
  %1663 = vmatpush1.msra.mxu0 0.0
  %1664 = vmatprep.subr.mxu0 0.0
  %1665 = vmatpush1.msra.mxu0 0.0
  %1666 = vmatprep.subr.mxu0 0.0
  %1667 = vmatpush1.msra.mxu0 0.0
  %1668 = vmatprep.subr.mxu0 0.0
  %1669 = vmatpush1.msra.mxu0 0.0
  %1670 = vmatprep.subr.mxu0 0.0
  %1671 = vmatpush1.msra.mxu0 0.0
  %1672 = vmatprep.subr.mxu0 0.0
  %1673 = vmatpush1.msra.mxu0 0.0
  %1674 = vmatprep.subr.mxu0 0.0
  %1675 = vmatpush1.msra.mxu0 0.0
  %1676 = vmatprep.subr.mxu0 0.0
  %1677 = vmatpush1.msra.mxu0 0.0
  %1678 = vmatprep.mubr.f32.mxu0 0.0
  %1679 = vmatmul.mubr.f32.gmra.mrb[0].mxu0 %v1609
  %v1680 = vpop.f32.mrb[0].mxu0
  %v1681 = vadd.f32 %v1606, %v1680
  %v1682 = vpop.f32.mrb[0].mxu0
  %1683 = vmatprep.mubr.f32.mxu0 0.0
  %1684 = vmatmul.mubr.f32.gmra.mrb[0].mxu0 %v1612
  %v1685 = vpop.f32.mrb[0].mxu0
  %v1686 = vadd.f32 %v1606, %v1685
  %v1687 = vpop.f32.mrb[0].mxu0
  %1688 = vdwg.mxu0
  %v1689 = vadd.f32 %v120, %v1681
  %v1690 = vadd.f32 %v121, %v1686
  %v1691 = vld [vmem:[%s9] sm:$0x1]
  %v1692 = vld [vmem:[%s10] sm:$0x1]
  %v1693 = vsel %vm78, %v1689, 0.0
  %1694 = vadd.xlane.f32.xlu0 %v1693
  %v1695 = vpop.xlane.xlu0 %1694
  %v1696 = vsel %vm78, %v1690, 0.0
  %1697 = vadd.xlane.f32.xlu0 %v1696
  %v1698 = vpop.xlane.xlu0 %1697
  %v1699 = vmul.f32 %v1695, %v85
  %v1700 = vmul.f32 %v1698, %v85
  %v1701 = vsub.f32 %v1689, %v1699
  %v1702 = vsub.f32 %v1690, %v1700
  %v1703 = vmul.f32 %v1701, %v1701
  %v1704 = vmul.f32 %v1702, %v1702
  %v1705 = vsel %vm78, %v1703, 0.0
  %1706 = vadd.xlane.f32.xlu0 %v1705
  %v1707 = vpop.xlane.xlu0 %1706
  %v1708 = vsel %vm78, %v1704, 0.0
  %1709 = vadd.xlane.f32.xlu0 %v1708
  %v1710 = vpop.xlane.xlu0 %1709
  %v1711 = vmul.f32 %v1707, %v85
  %v1712 = vmul.f32 %v1710, %v85
  %v1713 = vadd.f32 %v1711, 1e-12
  %v1714 = vadd.f32 %v1712, 1e-12
  %v1715 = vrsqrt.pop %v1713
  %v1716 = vrsqrt.pop %v1714
  %v1717 = vmul.f32 %v1701, %v1715
  %v1718 = vmul.f32 %v1702, %v1716
  %v1720 = vlaneseq
  %v1721 = vshrl.u32 %v1720, 7
  %v1722 = vsub.s32 0, %v1721
  %v1723 = vrot.slane %v1691, %v1722
  %v1725 = vmul.f32 %v1717, %v1723
  %v1726 = vmul.f32 %v1718, %v1723
  %v1728 = vlaneseq
  %v1729 = vshrl.u32 %v1728, 7
  %v1730 = vsub.s32 0, %v1729
  %v1731 = vrot.slane %v1692, %v1730
  %v1733 = vadd.f32 %v1725, %v1731
  %v1734 = vadd.f32 %v1726, %v1731
  %v1735 = vld [vmem:[%s11] sm:$0xff]
  %v1736 = vld [vmem:[%s11 + $0x8] sm:$0xff]
  %v1737 = vld [vmem:[%s11 + $0x10] sm:$0xff]
  %v1738 = vld [vmem:[%s11 + $0x18] sm:$0xff]
  %v1739 = vld [vmem:[%s12] sm:$0x1]
  %v1741 = vlaneseq
  %v1742 = vshrl.u32 %v1741, 7
  %v1743 = vsub.s32 0, %v1742
  %v1744 = vrot.slane %v1739, %v1743
  %v1747 = vsel %vm78, %v1733, 0
  %v1750 = vsel %vm78, %v1734, 0
  %1752 = vmatprep.subr.mxu0 0.0
  %1753 = vmatpush1.msra.mxu0 %v1735
  %1754 = vmatprep.subr.mxu0 0.0
  %1755 = vmatpush1.msra.mxu0 %v1736
  %1756 = vmatprep.subr.mxu0 0.0
  %1757 = vmatpush1.msra.mxu0 %v1737
  %1758 = vmatprep.subr.mxu0 0.0
  %1759 = vmatpush1.msra.mxu0 %v1738
  %1760 = vmatprep.subr.mxu0 0.0
  %1761 = vmatpush1.msra.mxu0 0.0
  %1762 = vmatprep.subr.mxu0 0.0
  %1763 = vmatpush1.msra.mxu0 0.0
  %1764 = vmatprep.subr.mxu0 0.0
  %1765 = vmatpush1.msra.mxu0 0.0
  %1766 = vmatprep.subr.mxu0 0.0
  %1767 = vmatpush1.msra.mxu0 0.0
  %1768 = vmatprep.subr.mxu0 0.0
  %1769 = vmatpush1.msra.mxu0 0.0
  %1770 = vmatprep.subr.mxu0 0.0
  %1771 = vmatpush1.msra.mxu0 0.0
  %1772 = vmatprep.subr.mxu0 0.0
  %1773 = vmatpush1.msra.mxu0 0.0
  %1774 = vmatprep.subr.mxu0 0.0
  %1775 = vmatpush1.msra.mxu0 0.0
  %1776 = vmatprep.subr.mxu0 0.0
  %1777 = vmatpush1.msra.mxu0 0.0
  %1778 = vmatprep.subr.mxu0 0.0
  %1779 = vmatpush1.msra.mxu0 0.0
  %1780 = vmatprep.subr.mxu0 0.0
  %1781 = vmatpush1.msra.mxu0 0.0
  %1782 = vmatprep.subr.mxu0 0.0
  %1783 = vmatpush1.msra.mxu0 0.0
  %1784 = vmatprep.subr.mxu0 0.0
  %1785 = vmatpush1.msra.mxu0 0.0
  %1786 = vmatprep.subr.mxu0 0.0
  %1787 = vmatpush1.msra.mxu0 0.0
  %1788 = vmatprep.subr.mxu0 0.0
  %1789 = vmatpush1.msra.mxu0 0.0
  %1790 = vmatprep.subr.mxu0 0.0
  %1791 = vmatpush1.msra.mxu0 0.0
  %1792 = vmatprep.subr.mxu0 0.0
  %1793 = vmatpush1.msra.mxu0 0.0
  %1794 = vmatprep.subr.mxu0 0.0
  %1795 = vmatpush1.msra.mxu0 0.0
  %1796 = vmatprep.subr.mxu0 0.0
  %1797 = vmatpush1.msra.mxu0 0.0
  %1798 = vmatprep.subr.mxu0 0.0
  %1799 = vmatpush1.msra.mxu0 0.0
  %1800 = vmatprep.subr.mxu0 0.0
  %1801 = vmatpush1.msra.mxu0 0.0
  %1802 = vmatprep.subr.mxu0 0.0
  %1803 = vmatpush1.msra.mxu0 0.0
  %1804 = vmatprep.subr.mxu0 0.0
  %1805 = vmatpush1.msra.mxu0 0.0
  %1806 = vmatprep.subr.mxu0 0.0
  %1807 = vmatpush1.msra.mxu0 0.0
  %1808 = vmatprep.subr.mxu0 0.0
  %1809 = vmatpush1.msra.mxu0 0.0
  %1810 = vmatprep.subr.mxu0 0.0
  %1811 = vmatpush1.msra.mxu0 0.0
  %1812 = vmatprep.subr.mxu0 0.0
  %1813 = vmatpush1.msra.mxu0 0.0
  %1814 = vmatprep.subr.mxu0 0.0
  %1815 = vmatpush1.msra.mxu0 0.0
  %1816 = vmatprep.mubr.f32.mxu0 0.0
  %1817 = vmatmul.mubr.f32.gmra.mrb[0].mxu0 %v1747
  %v1818 = vpop.f32.mrb[0].mxu0
  %v1819 = vadd.f32 %v1744, %v1818
  %v1820 = vpop.f32.mrb[0].mxu0
  %1821 = vmatprep.mubr.f32.mxu0 0.0
  %1822 = vmatmul.mubr.f32.gmra.mrb[0].mxu0 %v1750
  %v1823 = vpop.f32.mrb[0].mxu0
  %v1824 = vadd.f32 %v1744, %v1823
  %v1825 = vpop.f32.mrb[0].mxu0
  %1826 = vdwg.mxu0
  %v1827 = vmul.f32 %v1819, 0.5
  %v1828 = vmul.f32 %v1824, 0.5
  %v1829 = vmul.f32 %v1819, 0.70710677
  %v1830 = vmul.f32 %v1824, 0.70710677
  %v1831 = verf.f32.pop %v1829
  %v1832 = verf.f32.pop %v1830
  %v1833 = vadd.f32 %v1831, 1.0
  %v1834 = vadd.f32 %v1832, 1.0
  %v1835 = vmul.f32 %v1827, %v1833
  %v1836 = vmul.f32 %v1828, %v1834
  %v1837 = vld [vmem:[%s13] sm:$0xff]
  %v1838 = vld [vmem:[%s13 + $0x8] sm:$0xff]
  %v1839 = vld [vmem:[%s13 + $0x10] sm:$0xff]
  %v1840 = vld [vmem:[%s13 + $0x18] sm:$0xff]
  %v1841 = vld [vmem:[%s13 + $0x20] sm:$0xff]
  %v1842 = vld [vmem:[%s13 + $0x28] sm:$0xff]
  %v1843 = vld [vmem:[%s13 + $0x30] sm:$0xff]
  %v1844 = vld [vmem:[%s13 + $0x38] sm:$0xff]
  %v1845 = vld [vmem:[%s14] sm:$0x1]
  %v1847 = vlaneseq
  %v1848 = vshrl.u32 %v1847, 7
  %v1849 = vsub.s32 0, %v1848
  %v1850 = vrot.slane %v1845, %v1849
  %vm1852 = vcmask 523264
  %v1854 = vsel %vm1852, %v1835, 0
  %v1857 = vsel %vm1852, %v1836, 0
  %1859 = vmatprep.subr.mxu0 0.0
  %1860 = vmatpush1.msra.mxu0 %v1837
  %1861 = vmatprep.subr.mxu0 0.0
  %1862 = vmatpush1.msra.mxu0 %v1838
  %1863 = vmatprep.subr.mxu0 0.0
  %1864 = vmatpush1.msra.mxu0 %v1839
  %1865 = vmatprep.subr.mxu0 0.0
  %1866 = vmatpush1.msra.mxu0 %v1840
  %1867 = vmatprep.subr.mxu0 0.0
  %1868 = vmatpush1.msra.mxu0 %v1841
  %1869 = vmatprep.subr.mxu0 0.0
  %1870 = vmatpush1.msra.mxu0 %v1842
  %1871 = vmatprep.subr.mxu0 0.0
  %1872 = vmatpush1.msra.mxu0 %v1843
  %1873 = vmatprep.subr.mxu0 0.0
  %1874 = vmatpush1.msra.mxu0 %v1844
  %1875 = vmatprep.subr.mxu0 0.0
  %1876 = vmatpush1.msra.mxu0 0.0
  %1877 = vmatprep.subr.mxu0 0.0
  %1878 = vmatpush1.msra.mxu0 0.0
  %1879 = vmatprep.subr.mxu0 0.0
  %1880 = vmatpush1.msra.mxu0 0.0
  %1881 = vmatprep.subr.mxu0 0.0
  %1882 = vmatpush1.msra.mxu0 0.0
  %1883 = vmatprep.subr.mxu0 0.0
  %1884 = vmatpush1.msra.mxu0 0.0
  %1885 = vmatprep.subr.mxu0 0.0
  %1886 = vmatpush1.msra.mxu0 0.0
  %1887 = vmatprep.subr.mxu0 0.0
  %1888 = vmatpush1.msra.mxu0 0.0
  %1889 = vmatprep.subr.mxu0 0.0
  %1890 = vmatpush1.msra.mxu0 0.0
  %1891 = vmatprep.subr.mxu0 0.0
  %1892 = vmatpush1.msra.mxu0 0.0
  %1893 = vmatprep.subr.mxu0 0.0
  %1894 = vmatpush1.msra.mxu0 0.0
  %1895 = vmatprep.subr.mxu0 0.0
  %1896 = vmatpush1.msra.mxu0 0.0
  %1897 = vmatprep.subr.mxu0 0.0
  %1898 = vmatpush1.msra.mxu0 0.0
  %1899 = vmatprep.subr.mxu0 0.0
  %1900 = vmatpush1.msra.mxu0 0.0
  %1901 = vmatprep.subr.mxu0 0.0
  %1902 = vmatpush1.msra.mxu0 0.0
  %1903 = vmatprep.subr.mxu0 0.0
  %1904 = vmatpush1.msra.mxu0 0.0
  %1905 = vmatprep.subr.mxu0 0.0
  %1906 = vmatpush1.msra.mxu0 0.0
  %1907 = vmatprep.subr.mxu0 0.0
  %1908 = vmatpush1.msra.mxu0 0.0
  %1909 = vmatprep.subr.mxu0 0.0
  %1910 = vmatpush1.msra.mxu0 0.0
  %1911 = vmatprep.subr.mxu0 0.0
  %1912 = vmatpush1.msra.mxu0 0.0
  %1913 = vmatprep.subr.mxu0 0.0
  %1914 = vmatpush1.msra.mxu0 0.0
  %1915 = vmatprep.subr.mxu0 0.0
  %1916 = vmatpush1.msra.mxu0 0.0
  %1917 = vmatprep.subr.mxu0 0.0
  %1918 = vmatpush1.msra.mxu0 0.0
  %1919 = vmatprep.subr.mxu0 0.0
  %1920 = vmatpush1.msra.mxu0 0.0
  %1921 = vmatprep.subr.mxu0 0.0
  %1922 = vmatpush1.msra.mxu0 0.0
  %1923 = vmatprep.mubr.f32.mxu0 0.0
  %1924 = vmatmul.mubr.f32.gmra.mrb[0].mxu0 %v1854
  %v1925 = vpop.f32.mrb[0].mxu0
  %v1926 = vadd.f32 %v1850, %v1925
  %v1927 = vpop.f32.mrb[0].mxu0
  %1928 = vmatprep.mubr.f32.mxu0 0.0
  %1929 = vmatmul.mubr.f32.gmra.mrb[0].mxu0 %v1857
  %v1930 = vpop.f32.mrb[0].mxu0
  %v1931 = vadd.f32 %v1850, %v1930
  %v1932 = vpop.f32.mrb[0].mxu0
  %1933 = vdwg.mxu0
  %v1934 = vadd.f32 %v1733, %v1926
  %v1935 = vadd.f32 %v1734, %v1931
  %v1936 = vld [vmem:[%s15] sm:$0x1]
  %v1937 = vld [vmem:[%s16] sm:$0x1]
  %v1938 = vsel %vm78, %v1934, 0.0
  %1939 = vadd.xlane.f32.xlu0 %v1938
  %v1940 = vpop.xlane.xlu0 %1939
  %v1941 = vsel %vm78, %v1935, 0.0
  %1942 = vadd.xlane.f32.xlu0 %v1941
  %v1943 = vpop.xlane.xlu0 %1942
  %v1944 = vmul.f32 %v1940, %v85
  %v1945 = vmul.f32 %v1943, %v85
  %v1946 = vsub.f32 %v1934, %v1944
  %v1947 = vsub.f32 %v1935, %v1945
  %v1948 = vmul.f32 %v1946, %v1946
  %v1949 = vmul.f32 %v1947, %v1947
  %v1950 = vsel %vm78, %v1948, 0.0
  %1951 = vadd.xlane.f32.xlu0 %v1950
  %v1952 = vpop.xlane.xlu0 %1951
  %v1953 = vsel %vm78, %v1949, 0.0
  %1954 = vadd.xlane.f32.xlu0 %v1953
  %v1955 = vpop.xlane.xlu0 %1954
  %v1956 = vmul.f32 %v1952, %v85
  %v1957 = vmul.f32 %v1955, %v85
  %v1958 = vadd.f32 %v1956, 1e-12
  %v1959 = vadd.f32 %v1957, 1e-12
  %v1960 = vrsqrt.pop %v1958
  %v1961 = vrsqrt.pop %v1959
  %v1962 = vmul.f32 %v1946, %v1960
  %v1963 = vmul.f32 %v1947, %v1961
  %v1965 = vlaneseq
  %v1966 = vshrl.u32 %v1965, 7
  %v1967 = vsub.s32 0, %v1966
  %v1968 = vrot.slane %v1936, %v1967
  %v1970 = vmul.f32 %v1962, %v1968
  %v1971 = vmul.f32 %v1963, %v1968
  %v1973 = vlaneseq
  %v1974 = vshrl.u32 %v1973, 7
  %v1975 = vsub.s32 0, %v1974
  %v1976 = vrot.slane %v1937, %v1975
  %v1978 = vadd.f32 %v1970, %v1976
  %v1979 = vadd.f32 %v1971, %v1976
  %s1980 = scalar_lea.vmem %s5, 32
  %v1981 = vld [vmem:[%s1980] sm:$0xff]
  %v1982 = vld [vmem:[%s1980 + $0x8] sm:$0xff]
  %v1983 = vld [vmem:[%s1980 + $0x10] sm:$0xff]
  %v1984 = vld [vmem:[%s1980 + $0x18] sm:$0xff]
  %s1985 = scalar_lea.vmem %s6, 1
  %v1986 = vld [vmem:[%s1985] sm:$0x1]
  %v1988 = vlaneseq
  %v1989 = vshrl.u32 %v1988, 7
  %v1990 = vsub.s32 0, %v1989
  %v1991 = vrot.slane %v1986, %v1990
  %v1994 = vsel %vm78, %v1978, 0
  %v1997 = vsel %vm78, %v1979, 0
  %1999 = vmatprep.subr.mxu0 0.0
  %2000 = vmatpush1.msra.mxu0 %v1981
  %2001 = vmatprep.subr.mxu0 0.0
  %2002 = vmatpush1.msra.mxu0 %v1982
  %2003 = vmatprep.subr.mxu0 0.0
  %2004 = vmatpush1.msra.mxu0 %v1983
  %2005 = vmatprep.subr.mxu0 0.0
  %2006 = vmatpush1.msra.mxu0 %v1984
  %2007 = vmatprep.subr.mxu0 0.0
  %2008 = vmatpush1.msra.mxu0 0.0
  %2009 = vmatprep.subr.mxu0 0.0
  %2010 = vmatpush1.msra.mxu0 0.0
  %2011 = vmatprep.subr.mxu0 0.0
  %2012 = vmatpush1.msra.mxu0 0.0
  %2013 = vmatprep.subr.mxu0 0.0
  %2014 = vmatpush1.msra.mxu0 0.0
  %2015 = vmatprep.subr.mxu0 0.0
  %2016 = vmatpush1.msra.mxu0 0.0
  %2017 = vmatprep.subr.mxu0 0.0
  %2018 = vmatpush1.msra.mxu0 0.0
  %2019 = vmatprep.subr.mxu0 0.0
  %2020 = vmatpush1.msra.mxu0 0.0
  %2021 = vmatprep.subr.mxu0 0.0
  %2022 = vmatpush1.msra.mxu0 0.0
  %2023 = vmatprep.subr.mxu0 0.0
  %2024 = vmatpush1.msra.mxu0 0.0
  %2025 = vmatprep.subr.mxu0 0.0
  %2026 = vmatpush1.msra.mxu0 0.0
  %2027 = vmatprep.subr.mxu0 0.0
  %2028 = vmatpush1.msra.mxu0 0.0
  %2029 = vmatprep.subr.mxu0 0.0
  %2030 = vmatpush1.msra.mxu0 0.0
  %2031 = vmatprep.subr.mxu0 0.0
  %2032 = vmatpush1.msra.mxu0 0.0
  %2033 = vmatprep.subr.mxu0 0.0
  %2034 = vmatpush1.msra.mxu0 0.0
  %2035 = vmatprep.subr.mxu0 0.0
  %2036 = vmatpush1.msra.mxu0 0.0
  %2037 = vmatprep.subr.mxu0 0.0
  %2038 = vmatpush1.msra.mxu0 0.0
  %2039 = vmatprep.subr.mxu0 0.0
  %2040 = vmatpush1.msra.mxu0 0.0
  %2041 = vmatprep.subr.mxu0 0.0
  %2042 = vmatpush1.msra.mxu0 0.0
  %2043 = vmatprep.subr.mxu0 0.0
  %2044 = vmatpush1.msra.mxu0 0.0
  %2045 = vmatprep.subr.mxu0 0.0
  %2046 = vmatpush1.msra.mxu0 0.0
  %2047 = vmatprep.subr.mxu0 0.0
  %2048 = vmatpush1.msra.mxu0 0.0
  %2049 = vmatprep.subr.mxu0 0.0
  %2050 = vmatpush1.msra.mxu0 0.0
  %2051 = vmatprep.subr.mxu0 0.0
  %2052 = vmatpush1.msra.mxu0 0.0
  %2053 = vmatprep.subr.mxu0 0.0
  %2054 = vmatpush1.msra.mxu0 0.0
  %2055 = vmatprep.subr.mxu0 0.0
  %2056 = vmatpush1.msra.mxu0 0.0
  %2057 = vmatprep.subr.mxu0 0.0
  %2058 = vmatpush1.msra.mxu0 0.0
  %2059 = vmatprep.subr.mxu0 0.0
  %2060 = vmatpush1.msra.mxu0 0.0
  %2061 = vmatprep.subr.mxu0 0.0
  %2062 = vmatpush1.msra.mxu0 0.0
  %2063 = vmatprep.mubr.f32.mxu0 0.0
  %2064 = vmatmul.mubr.f32.gmra.mrb[0].mxu0 %v1994
  %v2065 = vpop.f32.mrb[0].mxu0
  %v2066 = vadd.f32 %v1991, %v2065
  %v2067 = vpop.f32.mrb[0].mxu0
  %2068 = vmatprep.mubr.f32.mxu0 0.0
  %2069 = vmatmul.mubr.f32.gmra.mrb[0].mxu0 %v1997
  %v2070 = vpop.f32.mrb[0].mxu0
  %v2071 = vadd.f32 %v1991, %v2070
  %v2072 = vpop.f32.mrb[0].mxu0
  %2073 = vdwg.mxu0
  %2075 = vrot.lane.b32.xlu0 %v2066, 96
  %v2076 = vpop.permute.xlu0 %2075
  %v2077 = vsel %vm233, %v2066, 0
  %v2079 = vsel %vm233, %v2076, 0
  %2081 = vmatprep.subr.mxu0 0.0
  %2082 = vmatpush1.xpose.msra.mxu0 %v2079
  %2083 = vmatprep.subr.mxu0 0.0
  %2084 = vmatpush1.xpose.msra.mxu0 0.0
  %2085 = vmatprep.subr.mxu0 0.0
  %2086 = vmatpush1.xpose.msra.mxu0 0.0
  %2087 = vmatprep.subr.mxu0 0.0
  %2088 = vmatpush1.xpose.msra.mxu0 0.0
  %2089 = vmatprep.subr.mxu0 0.0
  %2090 = vmatpush1.xpose.msra.mxu0 0.0
  %2091 = vmatprep.subr.mxu0 0.0
  %2092 = vmatpush1.xpose.msra.mxu0 0.0
  %2093 = vmatprep.subr.mxu0 0.0
  %2094 = vmatpush1.xpose.msra.mxu0 0.0
  %2095 = vmatprep.subr.mxu0 0.0
  %2096 = vmatpush1.xpose.msra.mxu0 0.0
  %2097 = vmatprep.subr.mxu0 0.0
  %2098 = vmatpush1.xpose.msra.mxu0 0.0
  %2099 = vmatprep.subr.mxu0 0.0
  %2100 = vmatpush1.xpose.msra.mxu0 0.0
  %2101 = vmatprep.subr.mxu0 0.0
  %2102 = vmatpush1.xpose.msra.mxu0 0.0
  %2103 = vmatprep.subr.mxu0 0.0
  %2104 = vmatpush1.xpose.msra.mxu0 0.0
  %2105 = vmatprep.subr.mxu0 0.0
  %2106 = vmatpush1.xpose.msra.mxu0 0.0
  %2107 = vmatprep.subr.mxu0 0.0
  %2108 = vmatpush1.xpose.msra.mxu0 0.0
  %2109 = vmatprep.subr.mxu0 0.0
  %2110 = vmatpush1.xpose.msra.mxu0 0.0
  %2111 = vmatprep.subr.mxu0 0.0
  %2112 = vmatpush1.xpose.msra.mxu0 0.0
  %2113 = vmatprep.subr.mxu0 0.0
  %2114 = vmatpush1.xpose.msra.mxu0 0.0
  %2115 = vmatprep.subr.mxu0 0.0
  %2116 = vmatpush1.xpose.msra.mxu0 0.0
  %2117 = vmatprep.subr.mxu0 0.0
  %2118 = vmatpush1.xpose.msra.mxu0 0.0
  %2119 = vmatprep.subr.mxu0 0.0
  %2120 = vmatpush1.xpose.msra.mxu0 0.0
  %2121 = vmatprep.subr.mxu0 0.0
  %2122 = vmatpush1.xpose.msra.mxu0 0.0
  %2123 = vmatprep.subr.mxu0 0.0
  %2124 = vmatpush1.xpose.msra.mxu0 0.0
  %2125 = vmatprep.subr.mxu0 0.0
  %2126 = vmatpush1.xpose.msra.mxu0 0.0
  %2127 = vmatprep.subr.mxu0 0.0
  %2128 = vmatpush1.xpose.msra.mxu0 0.0
  %2129 = vmatprep.subr.mxu0 0.0
  %2130 = vmatpush1.xpose.msra.mxu0 0.0
  %2131 = vmatprep.subr.mxu0 0.0
  %2132 = vmatpush1.xpose.msra.mxu0 0.0
  %2133 = vmatprep.subr.mxu0 0.0
  %2134 = vmatpush1.xpose.msra.mxu0 0.0
  %2135 = vmatprep.subr.mxu0 0.0
  %2136 = vmatpush1.xpose.msra.mxu0 0.0
  %2137 = vmatprep.subr.mxu0 0.0
  %2138 = vmatpush1.xpose.msra.mxu0 0.0
  %2139 = vmatprep.subr.mxu0 0.0
  %2140 = vmatpush1.xpose.msra.mxu0 0.0
  %2141 = vmatprep.subr.mxu0 0.0
  %2142 = vmatpush1.xpose.msra.mxu0 0.0
  %2143 = vmatprep.subr.mxu0 0.0
  %2144 = vmatpush1.xpose.msra.mxu0 0.0
  %2145 = vmatprep.mubr.f32.mxu0 0.0
  %2146 = vmatmul.mubr.f32.gmra.mrb[0].mxu0 %v2077
  %v2147 = vpop.f32.mrb[0].mxu0
  %v2148 = vadd.f32 0.0, %v2147
  %v2149 = vpop.f32.mrb[0].mxu0
  %2150 = vdwg.mxu0
  %2152 = vrot.lane.b32.xlu0 %v2071, 96
  %v2153 = vpop.permute.xlu0 %2152
  %v2154 = vsel %vm233, %v2071, 0
  %v2156 = vsel %vm233, %v2153, 0
  %2158 = vmatprep.subr.mxu0 0.0
  %2159 = vmatpush1.xpose.msra.mxu0 %v2156
  %2160 = vmatprep.subr.mxu0 0.0
  %2161 = vmatpush1.xpose.msra.mxu0 0.0
  %2162 = vmatprep.subr.mxu0 0.0
  %2163 = vmatpush1.xpose.msra.mxu0 0.0
  %2164 = vmatprep.subr.mxu0 0.0
  %2165 = vmatpush1.xpose.msra.mxu0 0.0
  %2166 = vmatprep.subr.mxu0 0.0
  %2167 = vmatpush1.xpose.msra.mxu0 0.0
  %2168 = vmatprep.subr.mxu0 0.0
  %2169 = vmatpush1.xpose.msra.mxu0 0.0
  %2170 = vmatprep.subr.mxu0 0.0
  %2171 = vmatpush1.xpose.msra.mxu0 0.0
  %2172 = vmatprep.subr.mxu0 0.0
  %2173 = vmatpush1.xpose.msra.mxu0 0.0
  %2174 = vmatprep.subr.mxu0 0.0
  %2175 = vmatpush1.xpose.msra.mxu0 0.0
  %2176 = vmatprep.subr.mxu0 0.0
  %2177 = vmatpush1.xpose.msra.mxu0 0.0
  %2178 = vmatprep.subr.mxu0 0.0
  %2179 = vmatpush1.xpose.msra.mxu0 0.0
  %2180 = vmatprep.subr.mxu0 0.0
  %2181 = vmatpush1.xpose.msra.mxu0 0.0
  %2182 = vmatprep.subr.mxu0 0.0
  %2183 = vmatpush1.xpose.msra.mxu0 0.0
  %2184 = vmatprep.subr.mxu0 0.0
  %2185 = vmatpush1.xpose.msra.mxu0 0.0
  %2186 = vmatprep.subr.mxu0 0.0
  %2187 = vmatpush1.xpose.msra.mxu0 0.0
  %2188 = vmatprep.subr.mxu0 0.0
  %2189 = vmatpush1.xpose.msra.mxu0 0.0
  %2190 = vmatprep.subr.mxu0 0.0
  %2191 = vmatpush1.xpose.msra.mxu0 0.0
  %2192 = vmatprep.subr.mxu0 0.0
  %2193 = vmatpush1.xpose.msra.mxu0 0.0
  %2194 = vmatprep.subr.mxu0 0.0
  %2195 = vmatpush1.xpose.msra.mxu0 0.0
  %2196 = vmatprep.subr.mxu0 0.0
  %2197 = vmatpush1.xpose.msra.mxu0 0.0
  %2198 = vmatprep.subr.mxu0 0.0
  %2199 = vmatpush1.xpose.msra.mxu0 0.0
  %2200 = vmatprep.subr.mxu0 0.0
  %2201 = vmatpush1.xpose.msra.mxu0 0.0
  %2202 = vmatprep.subr.mxu0 0.0
  %2203 = vmatpush1.xpose.msra.mxu0 0.0
  %2204 = vmatprep.subr.mxu0 0.0
  %2205 = vmatpush1.xpose.msra.mxu0 0.0
  %2206 = vmatprep.subr.mxu0 0.0
  %2207 = vmatpush1.xpose.msra.mxu0 0.0
  %2208 = vmatprep.subr.mxu0 0.0
  %2209 = vmatpush1.xpose.msra.mxu0 0.0
  %2210 = vmatprep.subr.mxu0 0.0
  %2211 = vmatpush1.xpose.msra.mxu0 0.0
  %2212 = vmatprep.subr.mxu0 0.0
  %2213 = vmatpush1.xpose.msra.mxu0 0.0
  %2214 = vmatprep.subr.mxu0 0.0
  %2215 = vmatpush1.xpose.msra.mxu0 0.0
  %2216 = vmatprep.subr.mxu0 0.0
  %2217 = vmatpush1.xpose.msra.mxu0 0.0
  %2218 = vmatprep.subr.mxu0 0.0
  %2219 = vmatpush1.xpose.msra.mxu0 0.0
  %2220 = vmatprep.subr.mxu0 0.0
  %2221 = vmatpush1.xpose.msra.mxu0 0.0
  %2222 = vmatprep.mubr.f32.mxu0 0.0
  %2223 = vmatmul.mubr.f32.gmra.mrb[0].mxu0 %v2154
  %v2224 = vpop.f32.mrb[0].mxu0
  %v2225 = vadd.f32 0.0, %v2224
  %v2226 = vpop.f32.mrb[0].mxu0
  %2227 = vdwg.mxu0
  %v2228 = vmul.f32 %v2148, 0.35355338
  %v2229 = vmul.f32 %v2225, 0.35355338
  %v2230 = vsel %vm136, %v2228, -1e+09
  %v2231 = vsel %vm137, %v2229, -1e+09
  %v2232 = vsel %vm233, %v2230, -inf
  %2233 = vmax.xlane.f32.xlu0 %v2232
  %v2234 = vpop.xlane.xlu0 %2233
  %v2235 = vsel %vm233, %v2231, -inf
  %2236 = vmax.xlane.f32.xlu0 %v2235
  %v2237 = vpop.xlane.xlu0 %2236
  %v2238 = vsub.f32 %v2230, %v2234
  %v2239 = vsub.f32 %v2231, %v2237
  %v2240 = vmul.f32 %v2238, 1.442695
  %v2241 = vpow.pop %v2240
  %v2242 = vmul.f32 %v2239, 1.442695
  %v2243 = vpow.pop %v2242
  %v2244 = vsel %vm233, %v2241, 0.0
  %2245 = vadd.xlane.f32.xlu0 %v2244
  %v2246 = vpop.xlane.xlu0 %2245
  %v2247 = vsel %vm233, %v2243, 0.0
  %2248 = vadd.xlane.f32.xlu0 %v2247
  %v2249 = vpop.xlane.xlu0 %2248
  %v2250 = vrcp.pop %v2246
  %v2251 = vrcp.pop %v2249
  %v2252 = vmul.f32 %v2241, %v2250
  %v2253 = vmul.f32 %v2243, %v2251
  %2254 = vrot.lane.b32.xlu0 %v2066, 64
  %v2255 = vpop.permute.xlu0 %2254
  %v2258 = vsel %vm233, %v2252, 0
  %2260 = vmatprep.subr.mxu0 0.0
  %2261 = vmatpush1.msra.mxu0 %v2255
  %2262 = vmatprep.subr.mxu0 0.0
  %2263 = vmatpush1.msra.mxu0 0.0
  %2264 = vmatprep.subr.mxu0 0.0
  %2265 = vmatpush1.msra.mxu0 0.0
  %2266 = vmatprep.subr.mxu0 0.0
  %2267 = vmatpush1.msra.mxu0 0.0
  %2268 = vmatprep.subr.mxu0 0.0
  %2269 = vmatpush1.msra.mxu0 0.0
  %2270 = vmatprep.subr.mxu0 0.0
  %2271 = vmatpush1.msra.mxu0 0.0
  %2272 = vmatprep.subr.mxu0 0.0
  %2273 = vmatpush1.msra.mxu0 0.0
  %2274 = vmatprep.subr.mxu0 0.0
  %2275 = vmatpush1.msra.mxu0 0.0
  %2276 = vmatprep.subr.mxu0 0.0
  %2277 = vmatpush1.msra.mxu0 0.0
  %2278 = vmatprep.subr.mxu0 0.0
  %2279 = vmatpush1.msra.mxu0 0.0
  %2280 = vmatprep.subr.mxu0 0.0
  %2281 = vmatpush1.msra.mxu0 0.0
  %2282 = vmatprep.subr.mxu0 0.0
  %2283 = vmatpush1.msra.mxu0 0.0
  %2284 = vmatprep.subr.mxu0 0.0
  %2285 = vmatpush1.msra.mxu0 0.0
  %2286 = vmatprep.subr.mxu0 0.0
  %2287 = vmatpush1.msra.mxu0 0.0
  %2288 = vmatprep.subr.mxu0 0.0
  %2289 = vmatpush1.msra.mxu0 0.0
  %2290 = vmatprep.subr.mxu0 0.0
  %2291 = vmatpush1.msra.mxu0 0.0
  %2292 = vmatprep.subr.mxu0 0.0
  %2293 = vmatpush1.msra.mxu0 0.0
  %2294 = vmatprep.subr.mxu0 0.0
  %2295 = vmatpush1.msra.mxu0 0.0
  %2296 = vmatprep.subr.mxu0 0.0
  %2297 = vmatpush1.msra.mxu0 0.0
  %2298 = vmatprep.subr.mxu0 0.0
  %2299 = vmatpush1.msra.mxu0 0.0
  %2300 = vmatprep.subr.mxu0 0.0
  %2301 = vmatpush1.msra.mxu0 0.0
  %2302 = vmatprep.subr.mxu0 0.0
  %2303 = vmatpush1.msra.mxu0 0.0
  %2304 = vmatprep.subr.mxu0 0.0
  %2305 = vmatpush1.msra.mxu0 0.0
  %2306 = vmatprep.subr.mxu0 0.0
  %2307 = vmatpush1.msra.mxu0 0.0
  %2308 = vmatprep.subr.mxu0 0.0
  %2309 = vmatpush1.msra.mxu0 0.0
  %2310 = vmatprep.subr.mxu0 0.0
  %2311 = vmatpush1.msra.mxu0 0.0
  %2312 = vmatprep.subr.mxu0 0.0
  %2313 = vmatpush1.msra.mxu0 0.0
  %2314 = vmatprep.subr.mxu0 0.0
  %2315 = vmatpush1.msra.mxu0 0.0
  %2316 = vmatprep.subr.mxu0 0.0
  %2317 = vmatpush1.msra.mxu0 0.0
  %2318 = vmatprep.subr.mxu0 0.0
  %2319 = vmatpush1.msra.mxu0 0.0
  %2320 = vmatprep.subr.mxu0 0.0
  %2321 = vmatpush1.msra.mxu0 0.0
  %2322 = vmatprep.subr.mxu0 0.0
  %2323 = vmatpush1.msra.mxu0 0.0
  %2324 = vmatprep.mubr.f32.mxu0 0.0
  %2325 = vmatmul.mubr.f32.gmra.mrb[0].mxu0 %v2258
  %v2326 = vpop.f32.mrb[0].mxu0
  %v2327 = vadd.f32 0.0, %v2326
  %v2328 = vpop.f32.mrb[0].mxu0
  %2329 = vdwg.mxu0
  %2330 = vrot.lane.b32.xlu0 %v2071, 64
  %v2331 = vpop.permute.xlu0 %2330
  %v2334 = vsel %vm233, %v2253, 0
  %2336 = vmatprep.subr.mxu0 0.0
  %2337 = vmatpush1.msra.mxu0 %v2331
  %2338 = vmatprep.subr.mxu0 0.0
  %2339 = vmatpush1.msra.mxu0 0.0
  %2340 = vmatprep.subr.mxu0 0.0
  %2341 = vmatpush1.msra.mxu0 0.0
  %2342 = vmatprep.subr.mxu0 0.0
  %2343 = vmatpush1.msra.mxu0 0.0
  %2344 = vmatprep.subr.mxu0 0.0
  %2345 = vmatpush1.msra.mxu0 0.0
  %2346 = vmatprep.subr.mxu0 0.0
  %2347 = vmatpush1.msra.mxu0 0.0
  %2348 = vmatprep.subr.mxu0 0.0
  %2349 = vmatpush1.msra.mxu0 0.0
  %2350 = vmatprep.subr.mxu0 0.0
  %2351 = vmatpush1.msra.mxu0 0.0
  %2352 = vmatprep.subr.mxu0 0.0
  %2353 = vmatpush1.msra.mxu0 0.0
  %2354 = vmatprep.subr.mxu0 0.0
  %2355 = vmatpush1.msra.mxu0 0.0
  %2356 = vmatprep.subr.mxu0 0.0
  %2357 = vmatpush1.msra.mxu0 0.0
  %2358 = vmatprep.subr.mxu0 0.0
  %2359 = vmatpush1.msra.mxu0 0.0
  %2360 = vmatprep.subr.mxu0 0.0
  %2361 = vmatpush1.msra.mxu0 0.0
  %2362 = vmatprep.subr.mxu0 0.0
  %2363 = vmatpush1.msra.mxu0 0.0
  %2364 = vmatprep.subr.mxu0 0.0
  %2365 = vmatpush1.msra.mxu0 0.0
  %2366 = vmatprep.subr.mxu0 0.0
  %2367 = vmatpush1.msra.mxu0 0.0
  %2368 = vmatprep.subr.mxu0 0.0
  %2369 = vmatpush1.msra.mxu0 0.0
  %2370 = vmatprep.subr.mxu0 0.0
  %2371 = vmatpush1.msra.mxu0 0.0
  %2372 = vmatprep.subr.mxu0 0.0
  %2373 = vmatpush1.msra.mxu0 0.0
  %2374 = vmatprep.subr.mxu0 0.0
  %2375 = vmatpush1.msra.mxu0 0.0
  %2376 = vmatprep.subr.mxu0 0.0
  %2377 = vmatpush1.msra.mxu0 0.0
  %2378 = vmatprep.subr.mxu0 0.0
  %2379 = vmatpush1.msra.mxu0 0.0
  %2380 = vmatprep.subr.mxu0 0.0
  %2381 = vmatpush1.msra.mxu0 0.0
  %2382 = vmatprep.subr.mxu0 0.0
  %2383 = vmatpush1.msra.mxu0 0.0
  %2384 = vmatprep.subr.mxu0 0.0
  %2385 = vmatpush1.msra.mxu0 0.0
  %2386 = vmatprep.subr.mxu0 0.0
  %2387 = vmatpush1.msra.mxu0 0.0
  %2388 = vmatprep.subr.mxu0 0.0
  %2389 = vmatpush1.msra.mxu0 0.0
  %2390 = vmatprep.subr.mxu0 0.0
  %2391 = vmatpush1.msra.mxu0 0.0
  %2392 = vmatprep.subr.mxu0 0.0
  %2393 = vmatpush1.msra.mxu0 0.0
  %2394 = vmatprep.subr.mxu0 0.0
  %2395 = vmatpush1.msra.mxu0 0.0
  %2396 = vmatprep.subr.mxu0 0.0
  %2397 = vmatpush1.msra.mxu0 0.0
  %2398 = vmatprep.subr.mxu0 0.0
  %2399 = vmatpush1.msra.mxu0 0.0
  %2400 = vmatprep.mubr.f32.mxu0 0.0
  %2401 = vmatmul.mubr.f32.gmra.mrb[0].mxu0 %v2334
  %v2402 = vpop.f32.mrb[0].mxu0
  %v2403 = vadd.f32 0.0, %v2402
  %v2404 = vpop.f32.mrb[0].mxu0
  %2405 = vdwg.mxu0
  %2406 = vrot.lane.b32.xlu0 %v2066, 120
  %v2407 = vpop.permute.xlu0 %2406
  %2408 = vrot.lane.b32.xlu0 %v2066, 88
  %v2409 = vpop.permute.xlu0 %2408
  %v2410 = vsel %vm233, %v2407, 0
  %v2412 = vsel %vm233, %v2409, 0
  %2414 = vmatprep.subr.mxu0 0.0
  %2415 = vmatpush1.xpose.msra.mxu0 %v2412
  %2416 = vmatprep.subr.mxu0 0.0
  %2417 = vmatpush1.xpose.msra.mxu0 0.0
  %2418 = vmatprep.subr.mxu0 0.0
  %2419 = vmatpush1.xpose.msra.mxu0 0.0
  %2420 = vmatprep.subr.mxu0 0.0
  %2421 = vmatpush1.xpose.msra.mxu0 0.0
  %2422 = vmatprep.subr.mxu0 0.0
  %2423 = vmatpush1.xpose.msra.mxu0 0.0
  %2424 = vmatprep.subr.mxu0 0.0
  %2425 = vmatpush1.xpose.msra.mxu0 0.0
  %2426 = vmatprep.subr.mxu0 0.0
  %2427 = vmatpush1.xpose.msra.mxu0 0.0
  %2428 = vmatprep.subr.mxu0 0.0
  %2429 = vmatpush1.xpose.msra.mxu0 0.0
  %2430 = vmatprep.subr.mxu0 0.0
  %2431 = vmatpush1.xpose.msra.mxu0 0.0
  %2432 = vmatprep.subr.mxu0 0.0
  %2433 = vmatpush1.xpose.msra.mxu0 0.0
  %2434 = vmatprep.subr.mxu0 0.0
  %2435 = vmatpush1.xpose.msra.mxu0 0.0
  %2436 = vmatprep.subr.mxu0 0.0
  %2437 = vmatpush1.xpose.msra.mxu0 0.0
  %2438 = vmatprep.subr.mxu0 0.0
  %2439 = vmatpush1.xpose.msra.mxu0 0.0
  %2440 = vmatprep.subr.mxu0 0.0
  %2441 = vmatpush1.xpose.msra.mxu0 0.0
  %2442 = vmatprep.subr.mxu0 0.0
  %2443 = vmatpush1.xpose.msra.mxu0 0.0
  %2444 = vmatprep.subr.mxu0 0.0
  %2445 = vmatpush1.xpose.msra.mxu0 0.0
  %2446 = vmatprep.subr.mxu0 0.0
  %2447 = vmatpush1.xpose.msra.mxu0 0.0
  %2448 = vmatprep.subr.mxu0 0.0
  %2449 = vmatpush1.xpose.msra.mxu0 0.0
  %2450 = vmatprep.subr.mxu0 0.0
  %2451 = vmatpush1.xpose.msra.mxu0 0.0
  %2452 = vmatprep.subr.mxu0 0.0
  %2453 = vmatpush1.xpose.msra.mxu0 0.0
  %2454 = vmatprep.subr.mxu0 0.0
  %2455 = vmatpush1.xpose.msra.mxu0 0.0
  %2456 = vmatprep.subr.mxu0 0.0
  %2457 = vmatpush1.xpose.msra.mxu0 0.0
  %2458 = vmatprep.subr.mxu0 0.0
  %2459 = vmatpush1.xpose.msra.mxu0 0.0
  %2460 = vmatprep.subr.mxu0 0.0
  %2461 = vmatpush1.xpose.msra.mxu0 0.0
  %2462 = vmatprep.subr.mxu0 0.0
  %2463 = vmatpush1.xpose.msra.mxu0 0.0
  %2464 = vmatprep.subr.mxu0 0.0
  %2465 = vmatpush1.xpose.msra.mxu0 0.0
  %2466 = vmatprep.subr.mxu0 0.0
  %2467 = vmatpush1.xpose.msra.mxu0 0.0
  %2468 = vmatprep.subr.mxu0 0.0
  %2469 = vmatpush1.xpose.msra.mxu0 0.0
  %2470 = vmatprep.subr.mxu0 0.0
  %2471 = vmatpush1.xpose.msra.mxu0 0.0
  %2472 = vmatprep.subr.mxu0 0.0
  %2473 = vmatpush1.xpose.msra.mxu0 0.0
  %2474 = vmatprep.subr.mxu0 0.0
  %2475 = vmatpush1.xpose.msra.mxu0 0.0
  %2476 = vmatprep.subr.mxu0 0.0
  %2477 = vmatpush1.xpose.msra.mxu0 0.0
  %2478 = vmatprep.mubr.f32.mxu0 0.0
  %2479 = vmatmul.mubr.f32.gmra.mrb[0].mxu0 %v2410
  %v2480 = vpop.f32.mrb[0].mxu0
  %v2481 = vadd.f32 0.0, %v2480
  %v2482 = vpop.f32.mrb[0].mxu0
  %2483 = vdwg.mxu0
  %2484 = vrot.lane.b32.xlu0 %v2071, 120
  %v2485 = vpop.permute.xlu0 %2484
  %2486 = vrot.lane.b32.xlu0 %v2071, 88
  %v2487 = vpop.permute.xlu0 %2486
  %v2488 = vsel %vm233, %v2485, 0
  %v2490 = vsel %vm233, %v2487, 0
  %2492 = vmatprep.subr.mxu0 0.0
  %2493 = vmatpush1.xpose.msra.mxu0 %v2490
  %2494 = vmatprep.subr.mxu0 0.0
  %2495 = vmatpush1.xpose.msra.mxu0 0.0
  %2496 = vmatprep.subr.mxu0 0.0
  %2497 = vmatpush1.xpose.msra.mxu0 0.0
  %2498 = vmatprep.subr.mxu0 0.0
  %2499 = vmatpush1.xpose.msra.mxu0 0.0
  %2500 = vmatprep.subr.mxu0 0.0
  %2501 = vmatpush1.xpose.msra.mxu0 0.0
  %2502 = vmatprep.subr.mxu0 0.0
  %2503 = vmatpush1.xpose.msra.mxu0 0.0
  %2504 = vmatprep.subr.mxu0 0.0
  %2505 = vmatpush1.xpose.msra.mxu0 0.0
  %2506 = vmatprep.subr.mxu0 0.0
  %2507 = vmatpush1.xpose.msra.mxu0 0.0
  %2508 = vmatprep.subr.mxu0 0.0
  %2509 = vmatpush1.xpose.msra.mxu0 0.0
  %2510 = vmatprep.subr.mxu0 0.0
  %2511 = vmatpush1.xpose.msra.mxu0 0.0
  %2512 = vmatprep.subr.mxu0 0.0
  %2513 = vmatpush1.xpose.msra.mxu0 0.0
  %2514 = vmatprep.subr.mxu0 0.0
  %2515 = vmatpush1.xpose.msra.mxu0 0.0
  %2516 = vmatprep.subr.mxu0 0.0
  %2517 = vmatpush1.xpose.msra.mxu0 0.0
  %2518 = vmatprep.subr.mxu0 0.0
  %2519 = vmatpush1.xpose.msra.mxu0 0.0
  %2520 = vmatprep.subr.mxu0 0.0
  %2521 = vmatpush1.xpose.msra.mxu0 0.0
  %2522 = vmatprep.subr.mxu0 0.0
  %2523 = vmatpush1.xpose.msra.mxu0 0.0
  %2524 = vmatprep.subr.mxu0 0.0
  %2525 = vmatpush1.xpose.msra.mxu0 0.0
  %2526 = vmatprep.subr.mxu0 0.0
  %2527 = vmatpush1.xpose.msra.mxu0 0.0
  %2528 = vmatprep.subr.mxu0 0.0
  %2529 = vmatpush1.xpose.msra.mxu0 0.0
  %2530 = vmatprep.subr.mxu0 0.0
  %2531 = vmatpush1.xpose.msra.mxu0 0.0
  %2532 = vmatprep.subr.mxu0 0.0
  %2533 = vmatpush1.xpose.msra.mxu0 0.0
  %2534 = vmatprep.subr.mxu0 0.0
  %2535 = vmatpush1.xpose.msra.mxu0 0.0
  %2536 = vmatprep.subr.mxu0 0.0
  %2537 = vmatpush1.xpose.msra.mxu0 0.0
  %2538 = vmatprep.subr.mxu0 0.0
  %2539 = vmatpush1.xpose.msra.mxu0 0.0
  %2540 = vmatprep.subr.mxu0 0.0
  %2541 = vmatpush1.xpose.msra.mxu0 0.0
  %2542 = vmatprep.subr.mxu0 0.0
  %2543 = vmatpush1.xpose.msra.mxu0 0.0
  %2544 = vmatprep.subr.mxu0 0.0
  %2545 = vmatpush1.xpose.msra.mxu0 0.0
  %2546 = vmatprep.subr.mxu0 0.0
  %2547 = vmatpush1.xpose.msra.mxu0 0.0
  %2548 = vmatprep.subr.mxu0 0.0
  %2549 = vmatpush1.xpose.msra.mxu0 0.0
  %2550 = vmatprep.subr.mxu0 0.0
  %2551 = vmatpush1.xpose.msra.mxu0 0.0
  %2552 = vmatprep.subr.mxu0 0.0
  %2553 = vmatpush1.xpose.msra.mxu0 0.0
  %2554 = vmatprep.subr.mxu0 0.0
  %2555 = vmatpush1.xpose.msra.mxu0 0.0
  %2556 = vmatprep.mubr.f32.mxu0 0.0
  %2557 = vmatmul.mubr.f32.gmra.mrb[0].mxu0 %v2488
  %v2558 = vpop.f32.mrb[0].mxu0
  %v2559 = vadd.f32 0.0, %v2558
  %v2560 = vpop.f32.mrb[0].mxu0
  %2561 = vdwg.mxu0
  %v2562 = vmul.f32 %v2481, 0.35355338
  %v2563 = vmul.f32 %v2559, 0.35355338
  %v2564 = vsel %vm136, %v2562, -1e+09
  %v2565 = vsel %vm137, %v2563, -1e+09
  %v2566 = vsel %vm233, %v2564, -inf
  %2567 = vmax.xlane.f32.xlu0 %v2566
  %v2568 = vpop.xlane.xlu0 %2567
  %v2569 = vsel %vm233, %v2565, -inf
  %2570 = vmax.xlane.f32.xlu0 %v2569
  %v2571 = vpop.xlane.xlu0 %2570
  %v2572 = vsub.f32 %v2564, %v2568
  %v2573 = vsub.f32 %v2565, %v2571
  %v2574 = vmul.f32 %v2572, 1.442695
  %v2575 = vpow.pop %v2574
  %v2576 = vmul.f32 %v2573, 1.442695
  %v2577 = vpow.pop %v2576
  %v2578 = vsel %vm233, %v2575, 0.0
  %2579 = vadd.xlane.f32.xlu0 %v2578
  %v2580 = vpop.xlane.xlu0 %2579
  %v2581 = vsel %vm233, %v2577, 0.0
  %2582 = vadd.xlane.f32.xlu0 %v2581
  %v2583 = vpop.xlane.xlu0 %2582
  %v2584 = vrcp.pop %v2580
  %v2585 = vrcp.pop %v2583
  %v2586 = vmul.f32 %v2575, %v2584
  %v2587 = vmul.f32 %v2577, %v2585
  %2588 = vrot.lane.b32.xlu0 %v2066, 56
  %v2589 = vpop.permute.xlu0 %2588
  %v2592 = vsel %vm233, %v2586, 0
  %2594 = vmatprep.subr.mxu0 0.0
  %2595 = vmatpush1.msra.mxu0 %v2589
  %2596 = vmatprep.subr.mxu0 0.0
  %2597 = vmatpush1.msra.mxu0 0.0
  %2598 = vmatprep.subr.mxu0 0.0
  %2599 = vmatpush1.msra.mxu0 0.0
  %2600 = vmatprep.subr.mxu0 0.0
  %2601 = vmatpush1.msra.mxu0 0.0
  %2602 = vmatprep.subr.mxu0 0.0
  %2603 = vmatpush1.msra.mxu0 0.0
  %2604 = vmatprep.subr.mxu0 0.0
  %2605 = vmatpush1.msra.mxu0 0.0
  %2606 = vmatprep.subr.mxu0 0.0
  %2607 = vmatpush1.msra.mxu0 0.0
  %2608 = vmatprep.subr.mxu0 0.0
  %2609 = vmatpush1.msra.mxu0 0.0
  %2610 = vmatprep.subr.mxu0 0.0
  %2611 = vmatpush1.msra.mxu0 0.0
  %2612 = vmatprep.subr.mxu0 0.0
  %2613 = vmatpush1.msra.mxu0 0.0
  %2614 = vmatprep.subr.mxu0 0.0
  %2615 = vmatpush1.msra.mxu0 0.0
  %2616 = vmatprep.subr.mxu0 0.0
  %2617 = vmatpush1.msra.mxu0 0.0
  %2618 = vmatprep.subr.mxu0 0.0
  %2619 = vmatpush1.msra.mxu0 0.0
  %2620 = vmatprep.subr.mxu0 0.0
  %2621 = vmatpush1.msra.mxu0 0.0
  %2622 = vmatprep.subr.mxu0 0.0
  %2623 = vmatpush1.msra.mxu0 0.0
  %2624 = vmatprep.subr.mxu0 0.0
  %2625 = vmatpush1.msra.mxu0 0.0
  %2626 = vmatprep.subr.mxu0 0.0
  %2627 = vmatpush1.msra.mxu0 0.0
  %2628 = vmatprep.subr.mxu0 0.0
  %2629 = vmatpush1.msra.mxu0 0.0
  %2630 = vmatprep.subr.mxu0 0.0
  %2631 = vmatpush1.msra.mxu0 0.0
  %2632 = vmatprep.subr.mxu0 0.0
  %2633 = vmatpush1.msra.mxu0 0.0
  %2634 = vmatprep.subr.mxu0 0.0
  %2635 = vmatpush1.msra.mxu0 0.0
  %2636 = vmatprep.subr.mxu0 0.0
  %2637 = vmatpush1.msra.mxu0 0.0
  %2638 = vmatprep.subr.mxu0 0.0
  %2639 = vmatpush1.msra.mxu0 0.0
  %2640 = vmatprep.subr.mxu0 0.0
  %2641 = vmatpush1.msra.mxu0 0.0
  %2642 = vmatprep.subr.mxu0 0.0
  %2643 = vmatpush1.msra.mxu0 0.0
  %2644 = vmatprep.subr.mxu0 0.0
  %2645 = vmatpush1.msra.mxu0 0.0
  %2646 = vmatprep.subr.mxu0 0.0
  %2647 = vmatpush1.msra.mxu0 0.0
  %2648 = vmatprep.subr.mxu0 0.0
  %2649 = vmatpush1.msra.mxu0 0.0
  %2650 = vmatprep.subr.mxu0 0.0
  %2651 = vmatpush1.msra.mxu0 0.0
  %2652 = vmatprep.subr.mxu0 0.0
  %2653 = vmatpush1.msra.mxu0 0.0
  %2654 = vmatprep.subr.mxu0 0.0
  %2655 = vmatpush1.msra.mxu0 0.0
  %2656 = vmatprep.subr.mxu0 0.0
  %2657 = vmatpush1.msra.mxu0 0.0
  %2658 = vmatprep.mubr.f32.mxu0 0.0
  %2659 = vmatmul.mubr.f32.gmra.mrb[0].mxu0 %v2592
  %v2660 = vpop.f32.mrb[0].mxu0
  %v2661 = vadd.f32 0.0, %v2660
  %v2662 = vpop.f32.mrb[0].mxu0
  %2663 = vdwg.mxu0
  %2664 = vrot.lane.b32.xlu0 %v2071, 56
  %v2665 = vpop.permute.xlu0 %2664
  %v2668 = vsel %vm233, %v2587, 0
  %2670 = vmatprep.subr.mxu0 0.0
  %2671 = vmatpush1.msra.mxu0 %v2665
  %2672 = vmatprep.subr.mxu0 0.0
  %2673 = vmatpush1.msra.mxu0 0.0
  %2674 = vmatprep.subr.mxu0 0.0
  %2675 = vmatpush1.msra.mxu0 0.0
  %2676 = vmatprep.subr.mxu0 0.0
  %2677 = vmatpush1.msra.mxu0 0.0
  %2678 = vmatprep.subr.mxu0 0.0
  %2679 = vmatpush1.msra.mxu0 0.0
  %2680 = vmatprep.subr.mxu0 0.0
  %2681 = vmatpush1.msra.mxu0 0.0
  %2682 = vmatprep.subr.mxu0 0.0
  %2683 = vmatpush1.msra.mxu0 0.0
  %2684 = vmatprep.subr.mxu0 0.0
  %2685 = vmatpush1.msra.mxu0 0.0
  %2686 = vmatprep.subr.mxu0 0.0
  %2687 = vmatpush1.msra.mxu0 0.0
  %2688 = vmatprep.subr.mxu0 0.0
  %2689 = vmatpush1.msra.mxu0 0.0
  %2690 = vmatprep.subr.mxu0 0.0
  %2691 = vmatpush1.msra.mxu0 0.0
  %2692 = vmatprep.subr.mxu0 0.0
  %2693 = vmatpush1.msra.mxu0 0.0
  %2694 = vmatprep.subr.mxu0 0.0
  %2695 = vmatpush1.msra.mxu0 0.0
  %2696 = vmatprep.subr.mxu0 0.0
  %2697 = vmatpush1.msra.mxu0 0.0
  %2698 = vmatprep.subr.mxu0 0.0
  %2699 = vmatpush1.msra.mxu0 0.0
  %2700 = vmatprep.subr.mxu0 0.0
  %2701 = vmatpush1.msra.mxu0 0.0
  %2702 = vmatprep.subr.mxu0 0.0
  %2703 = vmatpush1.msra.mxu0 0.0
  %2704 = vmatprep.subr.mxu0 0.0
  %2705 = vmatpush1.msra.mxu0 0.0
  %2706 = vmatprep.subr.mxu0 0.0
  %2707 = vmatpush1.msra.mxu0 0.0
  %2708 = vmatprep.subr.mxu0 0.0
  %2709 = vmatpush1.msra.mxu0 0.0
  %2710 = vmatprep.subr.mxu0 0.0
  %2711 = vmatpush1.msra.mxu0 0.0
  %2712 = vmatprep.subr.mxu0 0.0
  %2713 = vmatpush1.msra.mxu0 0.0
  %2714 = vmatprep.subr.mxu0 0.0
  %2715 = vmatpush1.msra.mxu0 0.0
  %2716 = vmatprep.subr.mxu0 0.0
  %2717 = vmatpush1.msra.mxu0 0.0
  %2718 = vmatprep.subr.mxu0 0.0
  %2719 = vmatpush1.msra.mxu0 0.0
  %2720 = vmatprep.subr.mxu0 0.0
  %2721 = vmatpush1.msra.mxu0 0.0
  %2722 = vmatprep.subr.mxu0 0.0
  %2723 = vmatpush1.msra.mxu0 0.0
  %2724 = vmatprep.subr.mxu0 0.0
  %2725 = vmatpush1.msra.mxu0 0.0
  %2726 = vmatprep.subr.mxu0 0.0
  %2727 = vmatpush1.msra.mxu0 0.0
  %2728 = vmatprep.subr.mxu0 0.0
  %2729 = vmatpush1.msra.mxu0 0.0
  %2730 = vmatprep.subr.mxu0 0.0
  %2731 = vmatpush1.msra.mxu0 0.0
  %2732 = vmatprep.subr.mxu0 0.0
  %2733 = vmatpush1.msra.mxu0 0.0
  %2734 = vmatprep.mubr.f32.mxu0 0.0
  %2735 = vmatmul.mubr.f32.gmra.mrb[0].mxu0 %v2668
  %v2736 = vpop.f32.mrb[0].mxu0
  %v2737 = vadd.f32 0.0, %v2736
  %v2738 = vpop.f32.mrb[0].mxu0
  %2739 = vdwg.mxu0
  %2740 = vrot.lane.b32.xlu0 %v2066, 112
  %v2741 = vpop.permute.xlu0 %2740
  %2742 = vrot.lane.b32.xlu0 %v2066, 80
  %v2743 = vpop.permute.xlu0 %2742
  %v2744 = vsel %vm233, %v2741, 0
  %v2746 = vsel %vm233, %v2743, 0
  %2748 = vmatprep.subr.mxu0 0.0
  %2749 = vmatpush1.xpose.msra.mxu0 %v2746
  %2750 = vmatprep.subr.mxu0 0.0
  %2751 = vmatpush1.xpose.msra.mxu0 0.0
  %2752 = vmatprep.subr.mxu0 0.0
  %2753 = vmatpush1.xpose.msra.mxu0 0.0
  %2754 = vmatprep.subr.mxu0 0.0
  %2755 = vmatpush1.xpose.msra.mxu0 0.0
  %2756 = vmatprep.subr.mxu0 0.0
  %2757 = vmatpush1.xpose.msra.mxu0 0.0
  %2758 = vmatprep.subr.mxu0 0.0
  %2759 = vmatpush1.xpose.msra.mxu0 0.0
  %2760 = vmatprep.subr.mxu0 0.0
  %2761 = vmatpush1.xpose.msra.mxu0 0.0
  %2762 = vmatprep.subr.mxu0 0.0
  %2763 = vmatpush1.xpose.msra.mxu0 0.0
  %2764 = vmatprep.subr.mxu0 0.0
  %2765 = vmatpush1.xpose.msra.mxu0 0.0
  %2766 = vmatprep.subr.mxu0 0.0
  %2767 = vmatpush1.xpose.msra.mxu0 0.0
  %2768 = vmatprep.subr.mxu0 0.0
  %2769 = vmatpush1.xpose.msra.mxu0 0.0
  %2770 = vmatprep.subr.mxu0 0.0
  %2771 = vmatpush1.xpose.msra.mxu0 0.0
  %2772 = vmatprep.subr.mxu0 0.0
  %2773 = vmatpush1.xpose.msra.mxu0 0.0
  %2774 = vmatprep.subr.mxu0 0.0
  %2775 = vmatpush1.xpose.msra.mxu0 0.0
  %2776 = vmatprep.subr.mxu0 0.0
  %2777 = vmatpush1.xpose.msra.mxu0 0.0
  %2778 = vmatprep.subr.mxu0 0.0
  %2779 = vmatpush1.xpose.msra.mxu0 0.0
  %2780 = vmatprep.subr.mxu0 0.0
  %2781 = vmatpush1.xpose.msra.mxu0 0.0
  %2782 = vmatprep.subr.mxu0 0.0
  %2783 = vmatpush1.xpose.msra.mxu0 0.0
  %2784 = vmatprep.subr.mxu0 0.0
  %2785 = vmatpush1.xpose.msra.mxu0 0.0
  %2786 = vmatprep.subr.mxu0 0.0
  %2787 = vmatpush1.xpose.msra.mxu0 0.0
  %2788 = vmatprep.subr.mxu0 0.0
  %2789 = vmatpush1.xpose.msra.mxu0 0.0
  %2790 = vmatprep.subr.mxu0 0.0
  %2791 = vmatpush1.xpose.msra.mxu0 0.0
  %2792 = vmatprep.subr.mxu0 0.0
  %2793 = vmatpush1.xpose.msra.mxu0 0.0
  %2794 = vmatprep.subr.mxu0 0.0
  %2795 = vmatpush1.xpose.msra.mxu0 0.0
  %2796 = vmatprep.subr.mxu0 0.0
  %2797 = vmatpush1.xpose.msra.mxu0 0.0
  %2798 = vmatprep.subr.mxu0 0.0
  %2799 = vmatpush1.xpose.msra.mxu0 0.0
  %2800 = vmatprep.subr.mxu0 0.0
  %2801 = vmatpush1.xpose.msra.mxu0 0.0
  %2802 = vmatprep.subr.mxu0 0.0
  %2803 = vmatpush1.xpose.msra.mxu0 0.0
  %2804 = vmatprep.subr.mxu0 0.0
  %2805 = vmatpush1.xpose.msra.mxu0 0.0
  %2806 = vmatprep.subr.mxu0 0.0
  %2807 = vmatpush1.xpose.msra.mxu0 0.0
  %2808 = vmatprep.subr.mxu0 0.0
  %2809 = vmatpush1.xpose.msra.mxu0 0.0
  %2810 = vmatprep.subr.mxu0 0.0
  %2811 = vmatpush1.xpose.msra.mxu0 0.0
  %2812 = vmatprep.mubr.f32.mxu0 0.0
  %2813 = vmatmul.mubr.f32.gmra.mrb[0].mxu0 %v2744
  %v2814 = vpop.f32.mrb[0].mxu0
  %v2815 = vadd.f32 0.0, %v2814
  %v2816 = vpop.f32.mrb[0].mxu0
  %2817 = vdwg.mxu0
  %2818 = vrot.lane.b32.xlu0 %v2071, 112
  %v2819 = vpop.permute.xlu0 %2818
  %2820 = vrot.lane.b32.xlu0 %v2071, 80
  %v2821 = vpop.permute.xlu0 %2820
  %v2822 = vsel %vm233, %v2819, 0
  %v2824 = vsel %vm233, %v2821, 0
  %2826 = vmatprep.subr.mxu0 0.0
  %2827 = vmatpush1.xpose.msra.mxu0 %v2824
  %2828 = vmatprep.subr.mxu0 0.0
  %2829 = vmatpush1.xpose.msra.mxu0 0.0
  %2830 = vmatprep.subr.mxu0 0.0
  %2831 = vmatpush1.xpose.msra.mxu0 0.0
  %2832 = vmatprep.subr.mxu0 0.0
  %2833 = vmatpush1.xpose.msra.mxu0 0.0
  %2834 = vmatprep.subr.mxu0 0.0
  %2835 = vmatpush1.xpose.msra.mxu0 0.0
  %2836 = vmatprep.subr.mxu0 0.0
  %2837 = vmatpush1.xpose.msra.mxu0 0.0
  %2838 = vmatprep.subr.mxu0 0.0
  %2839 = vmatpush1.xpose.msra.mxu0 0.0
  %2840 = vmatprep.subr.mxu0 0.0
  %2841 = vmatpush1.xpose.msra.mxu0 0.0
  %2842 = vmatprep.subr.mxu0 0.0
  %2843 = vmatpush1.xpose.msra.mxu0 0.0
  %2844 = vmatprep.subr.mxu0 0.0
  %2845 = vmatpush1.xpose.msra.mxu0 0.0
  %2846 = vmatprep.subr.mxu0 0.0
  %2847 = vmatpush1.xpose.msra.mxu0 0.0
  %2848 = vmatprep.subr.mxu0 0.0
  %2849 = vmatpush1.xpose.msra.mxu0 0.0
  %2850 = vmatprep.subr.mxu0 0.0
  %2851 = vmatpush1.xpose.msra.mxu0 0.0
  %2852 = vmatprep.subr.mxu0 0.0
  %2853 = vmatpush1.xpose.msra.mxu0 0.0
  %2854 = vmatprep.subr.mxu0 0.0
  %2855 = vmatpush1.xpose.msra.mxu0 0.0
  %2856 = vmatprep.subr.mxu0 0.0
  %2857 = vmatpush1.xpose.msra.mxu0 0.0
  %2858 = vmatprep.subr.mxu0 0.0
  %2859 = vmatpush1.xpose.msra.mxu0 0.0
  %2860 = vmatprep.subr.mxu0 0.0
  %2861 = vmatpush1.xpose.msra.mxu0 0.0
  %2862 = vmatprep.subr.mxu0 0.0
  %2863 = vmatpush1.xpose.msra.mxu0 0.0
  %2864 = vmatprep.subr.mxu0 0.0
  %2865 = vmatpush1.xpose.msra.mxu0 0.0
  %2866 = vmatprep.subr.mxu0 0.0
  %2867 = vmatpush1.xpose.msra.mxu0 0.0
  %2868 = vmatprep.subr.mxu0 0.0
  %2869 = vmatpush1.xpose.msra.mxu0 0.0
  %2870 = vmatprep.subr.mxu0 0.0
  %2871 = vmatpush1.xpose.msra.mxu0 0.0
  %2872 = vmatprep.subr.mxu0 0.0
  %2873 = vmatpush1.xpose.msra.mxu0 0.0
  %2874 = vmatprep.subr.mxu0 0.0
  %2875 = vmatpush1.xpose.msra.mxu0 0.0
  %2876 = vmatprep.subr.mxu0 0.0
  %2877 = vmatpush1.xpose.msra.mxu0 0.0
  %2878 = vmatprep.subr.mxu0 0.0
  %2879 = vmatpush1.xpose.msra.mxu0 0.0
  %2880 = vmatprep.subr.mxu0 0.0
  %2881 = vmatpush1.xpose.msra.mxu0 0.0
  %2882 = vmatprep.subr.mxu0 0.0
  %2883 = vmatpush1.xpose.msra.mxu0 0.0
  %2884 = vmatprep.subr.mxu0 0.0
  %2885 = vmatpush1.xpose.msra.mxu0 0.0
  %2886 = vmatprep.subr.mxu0 0.0
  %2887 = vmatpush1.xpose.msra.mxu0 0.0
  %2888 = vmatprep.subr.mxu0 0.0
  %2889 = vmatpush1.xpose.msra.mxu0 0.0
  %2890 = vmatprep.mubr.f32.mxu0 0.0
  %2891 = vmatmul.mubr.f32.gmra.mrb[0].mxu0 %v2822
  %v2892 = vpop.f32.mrb[0].mxu0
  %v2893 = vadd.f32 0.0, %v2892
  %v2894 = vpop.f32.mrb[0].mxu0
  %2895 = vdwg.mxu0
  %v2896 = vmul.f32 %v2815, 0.35355338
  %v2897 = vmul.f32 %v2893, 0.35355338
  %v2898 = vsel %vm136, %v2896, -1e+09
  %v2899 = vsel %vm137, %v2897, -1e+09
  %v2900 = vsel %vm233, %v2898, -inf
  %2901 = vmax.xlane.f32.xlu0 %v2900
  %v2902 = vpop.xlane.xlu0 %2901
  %v2903 = vsel %vm233, %v2899, -inf
  %2904 = vmax.xlane.f32.xlu0 %v2903
  %v2905 = vpop.xlane.xlu0 %2904
  %v2906 = vsub.f32 %v2898, %v2902
  %v2907 = vsub.f32 %v2899, %v2905
  %v2908 = vmul.f32 %v2906, 1.442695
  %v2909 = vpow.pop %v2908
  %v2910 = vmul.f32 %v2907, 1.442695
  %v2911 = vpow.pop %v2910
  %v2912 = vsel %vm233, %v2909, 0.0
  %2913 = vadd.xlane.f32.xlu0 %v2912
  %v2914 = vpop.xlane.xlu0 %2913
  %v2915 = vsel %vm233, %v2911, 0.0
  %2916 = vadd.xlane.f32.xlu0 %v2915
  %v2917 = vpop.xlane.xlu0 %2916
  %v2918 = vrcp.pop %v2914
  %v2919 = vrcp.pop %v2917
  %v2920 = vmul.f32 %v2909, %v2918
  %v2921 = vmul.f32 %v2911, %v2919
  %2922 = vrot.lane.b32.xlu0 %v2066, 48
  %v2923 = vpop.permute.xlu0 %2922
  %v2926 = vsel %vm233, %v2920, 0
  %2928 = vmatprep.subr.mxu0 0.0
  %2929 = vmatpush1.msra.mxu0 %v2923
  %2930 = vmatprep.subr.mxu0 0.0
  %2931 = vmatpush1.msra.mxu0 0.0
  %2932 = vmatprep.subr.mxu0 0.0
  %2933 = vmatpush1.msra.mxu0 0.0
  %2934 = vmatprep.subr.mxu0 0.0
  %2935 = vmatpush1.msra.mxu0 0.0
  %2936 = vmatprep.subr.mxu0 0.0
  %2937 = vmatpush1.msra.mxu0 0.0
  %2938 = vmatprep.subr.mxu0 0.0
  %2939 = vmatpush1.msra.mxu0 0.0
  %2940 = vmatprep.subr.mxu0 0.0
  %2941 = vmatpush1.msra.mxu0 0.0
  %2942 = vmatprep.subr.mxu0 0.0
  %2943 = vmatpush1.msra.mxu0 0.0
  %2944 = vmatprep.subr.mxu0 0.0
  %2945 = vmatpush1.msra.mxu0 0.0
  %2946 = vmatprep.subr.mxu0 0.0
  %2947 = vmatpush1.msra.mxu0 0.0
  %2948 = vmatprep.subr.mxu0 0.0
  %2949 = vmatpush1.msra.mxu0 0.0
  %2950 = vmatprep.subr.mxu0 0.0
  %2951 = vmatpush1.msra.mxu0 0.0
  %2952 = vmatprep.subr.mxu0 0.0
  %2953 = vmatpush1.msra.mxu0 0.0
  %2954 = vmatprep.subr.mxu0 0.0
  %2955 = vmatpush1.msra.mxu0 0.0
  %2956 = vmatprep.subr.mxu0 0.0
  %2957 = vmatpush1.msra.mxu0 0.0
  %2958 = vmatprep.subr.mxu0 0.0
  %2959 = vmatpush1.msra.mxu0 0.0
  %2960 = vmatprep.subr.mxu0 0.0
  %2961 = vmatpush1.msra.mxu0 0.0
  %2962 = vmatprep.subr.mxu0 0.0
  %2963 = vmatpush1.msra.mxu0 0.0
  %2964 = vmatprep.subr.mxu0 0.0
  %2965 = vmatpush1.msra.mxu0 0.0
  %2966 = vmatprep.subr.mxu0 0.0
  %2967 = vmatpush1.msra.mxu0 0.0
  %2968 = vmatprep.subr.mxu0 0.0
  %2969 = vmatpush1.msra.mxu0 0.0
  %2970 = vmatprep.subr.mxu0 0.0
  %2971 = vmatpush1.msra.mxu0 0.0
  %2972 = vmatprep.subr.mxu0 0.0
  %2973 = vmatpush1.msra.mxu0 0.0
  %2974 = vmatprep.subr.mxu0 0.0
  %2975 = vmatpush1.msra.mxu0 0.0
  %2976 = vmatprep.subr.mxu0 0.0
  %2977 = vmatpush1.msra.mxu0 0.0
  %2978 = vmatprep.subr.mxu0 0.0
  %2979 = vmatpush1.msra.mxu0 0.0
  %2980 = vmatprep.subr.mxu0 0.0
  %2981 = vmatpush1.msra.mxu0 0.0
  %2982 = vmatprep.subr.mxu0 0.0
  %2983 = vmatpush1.msra.mxu0 0.0
  %2984 = vmatprep.subr.mxu0 0.0
  %2985 = vmatpush1.msra.mxu0 0.0
  %2986 = vmatprep.subr.mxu0 0.0
  %2987 = vmatpush1.msra.mxu0 0.0
  %2988 = vmatprep.subr.mxu0 0.0
  %2989 = vmatpush1.msra.mxu0 0.0
  %2990 = vmatprep.subr.mxu0 0.0
  %2991 = vmatpush1.msra.mxu0 0.0
  %2992 = vmatprep.mubr.f32.mxu0 0.0
  %2993 = vmatmul.mubr.f32.gmra.mrb[0].mxu0 %v2926
  %v2994 = vpop.f32.mrb[0].mxu0
  %v2995 = vadd.f32 0.0, %v2994
  %v2996 = vpop.f32.mrb[0].mxu0
  %2997 = vdwg.mxu0
  %2998 = vrot.lane.b32.xlu0 %v2071, 48
  %v2999 = vpop.permute.xlu0 %2998
  %v3002 = vsel %vm233, %v2921, 0
  %3004 = vmatprep.subr.mxu0 0.0
  %3005 = vmatpush1.msra.mxu0 %v2999
  %3006 = vmatprep.subr.mxu0 0.0
  %3007 = vmatpush1.msra.mxu0 0.0
  %3008 = vmatprep.subr.mxu0 0.0
  %3009 = vmatpush1.msra.mxu0 0.0
  %3010 = vmatprep.subr.mxu0 0.0
  %3011 = vmatpush1.msra.mxu0 0.0
  %3012 = vmatprep.subr.mxu0 0.0
  %3013 = vmatpush1.msra.mxu0 0.0
  %3014 = vmatprep.subr.mxu0 0.0
  %3015 = vmatpush1.msra.mxu0 0.0
  %3016 = vmatprep.subr.mxu0 0.0
  %3017 = vmatpush1.msra.mxu0 0.0
  %3018 = vmatprep.subr.mxu0 0.0
  %3019 = vmatpush1.msra.mxu0 0.0
  %3020 = vmatprep.subr.mxu0 0.0
  %3021 = vmatpush1.msra.mxu0 0.0
  %3022 = vmatprep.subr.mxu0 0.0
  %3023 = vmatpush1.msra.mxu0 0.0
  %3024 = vmatprep.subr.mxu0 0.0
  %3025 = vmatpush1.msra.mxu0 0.0
  %3026 = vmatprep.subr.mxu0 0.0
  %3027 = vmatpush1.msra.mxu0 0.0
  %3028 = vmatprep.subr.mxu0 0.0
  %3029 = vmatpush1.msra.mxu0 0.0
  %3030 = vmatprep.subr.mxu0 0.0
  %3031 = vmatpush1.msra.mxu0 0.0
  %3032 = vmatprep.subr.mxu0 0.0
  %3033 = vmatpush1.msra.mxu0 0.0
  %3034 = vmatprep.subr.mxu0 0.0
  %3035 = vmatpush1.msra.mxu0 0.0
  %3036 = vmatprep.subr.mxu0 0.0
  %3037 = vmatpush1.msra.mxu0 0.0
  %3038 = vmatprep.subr.mxu0 0.0
  %3039 = vmatpush1.msra.mxu0 0.0
  %3040 = vmatprep.subr.mxu0 0.0
  %3041 = vmatpush1.msra.mxu0 0.0
  %3042 = vmatprep.subr.mxu0 0.0
  %3043 = vmatpush1.msra.mxu0 0.0
  %3044 = vmatprep.subr.mxu0 0.0
  %3045 = vmatpush1.msra.mxu0 0.0
  %3046 = vmatprep.subr.mxu0 0.0
  %3047 = vmatpush1.msra.mxu0 0.0
  %3048 = vmatprep.subr.mxu0 0.0
  %3049 = vmatpush1.msra.mxu0 0.0
  %3050 = vmatprep.subr.mxu0 0.0
  %3051 = vmatpush1.msra.mxu0 0.0
  %3052 = vmatprep.subr.mxu0 0.0
  %3053 = vmatpush1.msra.mxu0 0.0
  %3054 = vmatprep.subr.mxu0 0.0
  %3055 = vmatpush1.msra.mxu0 0.0
  %3056 = vmatprep.subr.mxu0 0.0
  %3057 = vmatpush1.msra.mxu0 0.0
  %3058 = vmatprep.subr.mxu0 0.0
  %3059 = vmatpush1.msra.mxu0 0.0
  %3060 = vmatprep.subr.mxu0 0.0
  %3061 = vmatpush1.msra.mxu0 0.0
  %3062 = vmatprep.subr.mxu0 0.0
  %3063 = vmatpush1.msra.mxu0 0.0
  %3064 = vmatprep.subr.mxu0 0.0
  %3065 = vmatpush1.msra.mxu0 0.0
  %3066 = vmatprep.subr.mxu0 0.0
  %3067 = vmatpush1.msra.mxu0 0.0
  %3068 = vmatprep.mubr.f32.mxu0 0.0
  %3069 = vmatmul.mubr.f32.gmra.mrb[0].mxu0 %v3002
  %v3070 = vpop.f32.mrb[0].mxu0
  %v3071 = vadd.f32 0.0, %v3070
  %v3072 = vpop.f32.mrb[0].mxu0
  %3073 = vdwg.mxu0
  %3074 = vrot.lane.b32.xlu0 %v2066, 104
  %v3075 = vpop.permute.xlu0 %3074
  %3076 = vrot.lane.b32.xlu0 %v2066, 72
  %v3077 = vpop.permute.xlu0 %3076
  %v3078 = vsel %vm233, %v3075, 0
  %v3080 = vsel %vm233, %v3077, 0
  %3082 = vmatprep.subr.mxu0 0.0
  %3083 = vmatpush1.xpose.msra.mxu0 %v3080
  %3084 = vmatprep.subr.mxu0 0.0
  %3085 = vmatpush1.xpose.msra.mxu0 0.0
  %3086 = vmatprep.subr.mxu0 0.0
  %3087 = vmatpush1.xpose.msra.mxu0 0.0
  %3088 = vmatprep.subr.mxu0 0.0
  %3089 = vmatpush1.xpose.msra.mxu0 0.0
  %3090 = vmatprep.subr.mxu0 0.0
  %3091 = vmatpush1.xpose.msra.mxu0 0.0
  %3092 = vmatprep.subr.mxu0 0.0
  %3093 = vmatpush1.xpose.msra.mxu0 0.0
  %3094 = vmatprep.subr.mxu0 0.0
  %3095 = vmatpush1.xpose.msra.mxu0 0.0
  %3096 = vmatprep.subr.mxu0 0.0
  %3097 = vmatpush1.xpose.msra.mxu0 0.0
  %3098 = vmatprep.subr.mxu0 0.0
  %3099 = vmatpush1.xpose.msra.mxu0 0.0
  %3100 = vmatprep.subr.mxu0 0.0
  %3101 = vmatpush1.xpose.msra.mxu0 0.0
  %3102 = vmatprep.subr.mxu0 0.0
  %3103 = vmatpush1.xpose.msra.mxu0 0.0
  %3104 = vmatprep.subr.mxu0 0.0
  %3105 = vmatpush1.xpose.msra.mxu0 0.0
  %3106 = vmatprep.subr.mxu0 0.0
  %3107 = vmatpush1.xpose.msra.mxu0 0.0
  %3108 = vmatprep.subr.mxu0 0.0
  %3109 = vmatpush1.xpose.msra.mxu0 0.0
  %3110 = vmatprep.subr.mxu0 0.0
  %3111 = vmatpush1.xpose.msra.mxu0 0.0
  %3112 = vmatprep.subr.mxu0 0.0
  %3113 = vmatpush1.xpose.msra.mxu0 0.0
  %3114 = vmatprep.subr.mxu0 0.0
  %3115 = vmatpush1.xpose.msra.mxu0 0.0
  %3116 = vmatprep.subr.mxu0 0.0
  %3117 = vmatpush1.xpose.msra.mxu0 0.0
  %3118 = vmatprep.subr.mxu0 0.0
  %3119 = vmatpush1.xpose.msra.mxu0 0.0
  %3120 = vmatprep.subr.mxu0 0.0
  %3121 = vmatpush1.xpose.msra.mxu0 0.0
  %3122 = vmatprep.subr.mxu0 0.0
  %3123 = vmatpush1.xpose.msra.mxu0 0.0
  %3124 = vmatprep.subr.mxu0 0.0
  %3125 = vmatpush1.xpose.msra.mxu0 0.0
  %3126 = vmatprep.subr.mxu0 0.0
  %3127 = vmatpush1.xpose.msra.mxu0 0.0
  %3128 = vmatprep.subr.mxu0 0.0
  %3129 = vmatpush1.xpose.msra.mxu0 0.0
  %3130 = vmatprep.subr.mxu0 0.0
  %3131 = vmatpush1.xpose.msra.mxu0 0.0
  %3132 = vmatprep.subr.mxu0 0.0
  %3133 = vmatpush1.xpose.msra.mxu0 0.0
  %3134 = vmatprep.subr.mxu0 0.0
  %3135 = vmatpush1.xpose.msra.mxu0 0.0
  %3136 = vmatprep.subr.mxu0 0.0
  %3137 = vmatpush1.xpose.msra.mxu0 0.0
  %3138 = vmatprep.subr.mxu0 0.0
  %3139 = vmatpush1.xpose.msra.mxu0 0.0
  %3140 = vmatprep.subr.mxu0 0.0
  %3141 = vmatpush1.xpose.msra.mxu0 0.0
  %3142 = vmatprep.subr.mxu0 0.0
  %3143 = vmatpush1.xpose.msra.mxu0 0.0
  %3144 = vmatprep.subr.mxu0 0.0
  %3145 = vmatpush1.xpose.msra.mxu0 0.0
  %3146 = vmatprep.mubr.f32.mxu0 0.0
  %3147 = vmatmul.mubr.f32.gmra.mrb[0].mxu0 %v3078
  %v3148 = vpop.f32.mrb[0].mxu0
  %v3149 = vadd.f32 0.0, %v3148
  %v3150 = vpop.f32.mrb[0].mxu0
  %3151 = vdwg.mxu0
  %3152 = vrot.lane.b32.xlu0 %v2071, 104
  %v3153 = vpop.permute.xlu0 %3152
  %3154 = vrot.lane.b32.xlu0 %v2071, 72
  %v3155 = vpop.permute.xlu0 %3154
  %v3156 = vsel %vm233, %v3153, 0
  %v3158 = vsel %vm233, %v3155, 0
  %3160 = vmatprep.subr.mxu0 0.0
  %3161 = vmatpush1.xpose.msra.mxu0 %v3158
  %3162 = vmatprep.subr.mxu0 0.0
  %3163 = vmatpush1.xpose.msra.mxu0 0.0
  %3164 = vmatprep.subr.mxu0 0.0
  %3165 = vmatpush1.xpose.msra.mxu0 0.0
  %3166 = vmatprep.subr.mxu0 0.0
  %3167 = vmatpush1.xpose.msra.mxu0 0.0
  %3168 = vmatprep.subr.mxu0 0.0
  %3169 = vmatpush1.xpose.msra.mxu0 0.0
  %3170 = vmatprep.subr.mxu0 0.0
  %3171 = vmatpush1.xpose.msra.mxu0 0.0
  %3172 = vmatprep.subr.mxu0 0.0
  %3173 = vmatpush1.xpose.msra.mxu0 0.0
  %3174 = vmatprep.subr.mxu0 0.0
  %3175 = vmatpush1.xpose.msra.mxu0 0.0
  %3176 = vmatprep.subr.mxu0 0.0
  %3177 = vmatpush1.xpose.msra.mxu0 0.0
  %3178 = vmatprep.subr.mxu0 0.0
  %3179 = vmatpush1.xpose.msra.mxu0 0.0
  %3180 = vmatprep.subr.mxu0 0.0
  %3181 = vmatpush1.xpose.msra.mxu0 0.0
  %3182 = vmatprep.subr.mxu0 0.0
  %3183 = vmatpush1.xpose.msra.mxu0 0.0
  %3184 = vmatprep.subr.mxu0 0.0
  %3185 = vmatpush1.xpose.msra.mxu0 0.0
  %3186 = vmatprep.subr.mxu0 0.0
  %3187 = vmatpush1.xpose.msra.mxu0 0.0
  %3188 = vmatprep.subr.mxu0 0.0
  %3189 = vmatpush1.xpose.msra.mxu0 0.0
  %3190 = vmatprep.subr.mxu0 0.0
  %3191 = vmatpush1.xpose.msra.mxu0 0.0
  %3192 = vmatprep.subr.mxu0 0.0
  %3193 = vmatpush1.xpose.msra.mxu0 0.0
  %3194 = vmatprep.subr.mxu0 0.0
  %3195 = vmatpush1.xpose.msra.mxu0 0.0
  %3196 = vmatprep.subr.mxu0 0.0
  %3197 = vmatpush1.xpose.msra.mxu0 0.0
  %3198 = vmatprep.subr.mxu0 0.0
  %3199 = vmatpush1.xpose.msra.mxu0 0.0
  %3200 = vmatprep.subr.mxu0 0.0
  %3201 = vmatpush1.xpose.msra.mxu0 0.0
  %3202 = vmatprep.subr.mxu0 0.0
  %3203 = vmatpush1.xpose.msra.mxu0 0.0
  %3204 = vmatprep.subr.mxu0 0.0
  %3205 = vmatpush1.xpose.msra.mxu0 0.0
  %3206 = vmatprep.subr.mxu0 0.0
  %3207 = vmatpush1.xpose.msra.mxu0 0.0
  %3208 = vmatprep.subr.mxu0 0.0
  %3209 = vmatpush1.xpose.msra.mxu0 0.0
  %3210 = vmatprep.subr.mxu0 0.0
  %3211 = vmatpush1.xpose.msra.mxu0 0.0
  %3212 = vmatprep.subr.mxu0 0.0
  %3213 = vmatpush1.xpose.msra.mxu0 0.0
  %3214 = vmatprep.subr.mxu0 0.0
  %3215 = vmatpush1.xpose.msra.mxu0 0.0
  %3216 = vmatprep.subr.mxu0 0.0
  %3217 = vmatpush1.xpose.msra.mxu0 0.0
  %3218 = vmatprep.subr.mxu0 0.0
  %3219 = vmatpush1.xpose.msra.mxu0 0.0
  %3220 = vmatprep.subr.mxu0 0.0
  %3221 = vmatpush1.xpose.msra.mxu0 0.0
  %3222 = vmatprep.subr.mxu0 0.0
  %3223 = vmatpush1.xpose.msra.mxu0 0.0
  %3224 = vmatprep.mubr.f32.mxu0 0.0
  %3225 = vmatmul.mubr.f32.gmra.mrb[0].mxu0 %v3156
  %v3226 = vpop.f32.mrb[0].mxu0
  %v3227 = vadd.f32 0.0, %v3226
  %v3228 = vpop.f32.mrb[0].mxu0
  %3229 = vdwg.mxu0
  %v3230 = vmul.f32 %v3149, 0.35355338
  %v3231 = vmul.f32 %v3227, 0.35355338
  %v3232 = vsel %vm136, %v3230, -1e+09
  %v3233 = vsel %vm137, %v3231, -1e+09
  %v3234 = vsel %vm233, %v3232, -inf
  %3235 = vmax.xlane.f32.xlu0 %v3234
  %v3236 = vpop.xlane.xlu0 %3235
  %v3237 = vsel %vm233, %v3233, -inf
  %3238 = vmax.xlane.f32.xlu0 %v3237
  %v3239 = vpop.xlane.xlu0 %3238
  %v3240 = vsub.f32 %v3232, %v3236
  %v3241 = vsub.f32 %v3233, %v3239
  %v3242 = vmul.f32 %v3240, 1.442695
  %v3243 = vpow.pop %v3242
  %v3244 = vmul.f32 %v3241, 1.442695
  %v3245 = vpow.pop %v3244
  %v3246 = vsel %vm233, %v3243, 0.0
  %3247 = vadd.xlane.f32.xlu0 %v3246
  %v3248 = vpop.xlane.xlu0 %3247
  %v3249 = vsel %vm233, %v3245, 0.0
  %3250 = vadd.xlane.f32.xlu0 %v3249
  %v3251 = vpop.xlane.xlu0 %3250
  %v3252 = vrcp.pop %v3248
  %v3253 = vrcp.pop %v3251
  %v3254 = vmul.f32 %v3243, %v3252
  %v3255 = vmul.f32 %v3245, %v3253
  %3256 = vrot.lane.b32.xlu0 %v2066, 40
  %v3257 = vpop.permute.xlu0 %3256
  %v3260 = vsel %vm233, %v3254, 0
  %3262 = vmatprep.subr.mxu0 0.0
  %3263 = vmatpush1.msra.mxu0 %v3257
  %3264 = vmatprep.subr.mxu0 0.0
  %3265 = vmatpush1.msra.mxu0 0.0
  %3266 = vmatprep.subr.mxu0 0.0
  %3267 = vmatpush1.msra.mxu0 0.0
  %3268 = vmatprep.subr.mxu0 0.0
  %3269 = vmatpush1.msra.mxu0 0.0
  %3270 = vmatprep.subr.mxu0 0.0
  %3271 = vmatpush1.msra.mxu0 0.0
  %3272 = vmatprep.subr.mxu0 0.0
  %3273 = vmatpush1.msra.mxu0 0.0
  %3274 = vmatprep.subr.mxu0 0.0
  %3275 = vmatpush1.msra.mxu0 0.0
  %3276 = vmatprep.subr.mxu0 0.0
  %3277 = vmatpush1.msra.mxu0 0.0
  %3278 = vmatprep.subr.mxu0 0.0
  %3279 = vmatpush1.msra.mxu0 0.0
  %3280 = vmatprep.subr.mxu0 0.0
  %3281 = vmatpush1.msra.mxu0 0.0
  %3282 = vmatprep.subr.mxu0 0.0
  %3283 = vmatpush1.msra.mxu0 0.0
  %3284 = vmatprep.subr.mxu0 0.0
  %3285 = vmatpush1.msra.mxu0 0.0
  %3286 = vmatprep.subr.mxu0 0.0
  %3287 = vmatpush1.msra.mxu0 0.0
  %3288 = vmatprep.subr.mxu0 0.0
  %3289 = vmatpush1.msra.mxu0 0.0
  %3290 = vmatprep.subr.mxu0 0.0
  %3291 = vmatpush1.msra.mxu0 0.0
  %3292 = vmatprep.subr.mxu0 0.0
  %3293 = vmatpush1.msra.mxu0 0.0
  %3294 = vmatprep.subr.mxu0 0.0
  %3295 = vmatpush1.msra.mxu0 0.0
  %3296 = vmatprep.subr.mxu0 0.0
  %3297 = vmatpush1.msra.mxu0 0.0
  %3298 = vmatprep.subr.mxu0 0.0
  %3299 = vmatpush1.msra.mxu0 0.0
  %3300 = vmatprep.subr.mxu0 0.0
  %3301 = vmatpush1.msra.mxu0 0.0
  %3302 = vmatprep.subr.mxu0 0.0
  %3303 = vmatpush1.msra.mxu0 0.0
  %3304 = vmatprep.subr.mxu0 0.0
  %3305 = vmatpush1.msra.mxu0 0.0
  %3306 = vmatprep.subr.mxu0 0.0
  %3307 = vmatpush1.msra.mxu0 0.0
  %3308 = vmatprep.subr.mxu0 0.0
  %3309 = vmatpush1.msra.mxu0 0.0
  %3310 = vmatprep.subr.mxu0 0.0
  %3311 = vmatpush1.msra.mxu0 0.0
  %3312 = vmatprep.subr.mxu0 0.0
  %3313 = vmatpush1.msra.mxu0 0.0
  %3314 = vmatprep.subr.mxu0 0.0
  %3315 = vmatpush1.msra.mxu0 0.0
  %3316 = vmatprep.subr.mxu0 0.0
  %3317 = vmatpush1.msra.mxu0 0.0
  %3318 = vmatprep.subr.mxu0 0.0
  %3319 = vmatpush1.msra.mxu0 0.0
  %3320 = vmatprep.subr.mxu0 0.0
  %3321 = vmatpush1.msra.mxu0 0.0
  %3322 = vmatprep.subr.mxu0 0.0
  %3323 = vmatpush1.msra.mxu0 0.0
  %3324 = vmatprep.subr.mxu0 0.0
  %3325 = vmatpush1.msra.mxu0 0.0
  %3326 = vmatprep.mubr.f32.mxu0 0.0
  %3327 = vmatmul.mubr.f32.gmra.mrb[0].mxu0 %v3260
  %v3328 = vpop.f32.mrb[0].mxu0
  %v3329 = vadd.f32 0.0, %v3328
  %v3330 = vpop.f32.mrb[0].mxu0
  %3331 = vdwg.mxu0
  %3332 = vrot.lane.b32.xlu0 %v2071, 40
  %v3333 = vpop.permute.xlu0 %3332
  %v3336 = vsel %vm233, %v3255, 0
  %3338 = vmatprep.subr.mxu0 0.0
  %3339 = vmatpush1.msra.mxu0 %v3333
  %3340 = vmatprep.subr.mxu0 0.0
  %3341 = vmatpush1.msra.mxu0 0.0
  %3342 = vmatprep.subr.mxu0 0.0
  %3343 = vmatpush1.msra.mxu0 0.0
  %3344 = vmatprep.subr.mxu0 0.0
  %3345 = vmatpush1.msra.mxu0 0.0
  %3346 = vmatprep.subr.mxu0 0.0
  %3347 = vmatpush1.msra.mxu0 0.0
  %3348 = vmatprep.subr.mxu0 0.0
  %3349 = vmatpush1.msra.mxu0 0.0
  %3350 = vmatprep.subr.mxu0 0.0
  %3351 = vmatpush1.msra.mxu0 0.0
  %3352 = vmatprep.subr.mxu0 0.0
  %3353 = vmatpush1.msra.mxu0 0.0
  %3354 = vmatprep.subr.mxu0 0.0
  %3355 = vmatpush1.msra.mxu0 0.0
  %3356 = vmatprep.subr.mxu0 0.0
  %3357 = vmatpush1.msra.mxu0 0.0
  %3358 = vmatprep.subr.mxu0 0.0
  %3359 = vmatpush1.msra.mxu0 0.0
  %3360 = vmatprep.subr.mxu0 0.0
  %3361 = vmatpush1.msra.mxu0 0.0
  %3362 = vmatprep.subr.mxu0 0.0
  %3363 = vmatpush1.msra.mxu0 0.0
  %3364 = vmatprep.subr.mxu0 0.0
  %3365 = vmatpush1.msra.mxu0 0.0
  %3366 = vmatprep.subr.mxu0 0.0
  %3367 = vmatpush1.msra.mxu0 0.0
  %3368 = vmatprep.subr.mxu0 0.0
  %3369 = vmatpush1.msra.mxu0 0.0
  %3370 = vmatprep.subr.mxu0 0.0
  %3371 = vmatpush1.msra.mxu0 0.0
  %3372 = vmatprep.subr.mxu0 0.0
  %3373 = vmatpush1.msra.mxu0 0.0
  %3374 = vmatprep.subr.mxu0 0.0
  %3375 = vmatpush1.msra.mxu0 0.0
  %3376 = vmatprep.subr.mxu0 0.0
  %3377 = vmatpush1.msra.mxu0 0.0
  %3378 = vmatprep.subr.mxu0 0.0
  %3379 = vmatpush1.msra.mxu0 0.0
  %3380 = vmatprep.subr.mxu0 0.0
  %3381 = vmatpush1.msra.mxu0 0.0
  %3382 = vmatprep.subr.mxu0 0.0
  %3383 = vmatpush1.msra.mxu0 0.0
  %3384 = vmatprep.subr.mxu0 0.0
  %3385 = vmatpush1.msra.mxu0 0.0
  %3386 = vmatprep.subr.mxu0 0.0
  %3387 = vmatpush1.msra.mxu0 0.0
  %3388 = vmatprep.subr.mxu0 0.0
  %3389 = vmatpush1.msra.mxu0 0.0
  %3390 = vmatprep.subr.mxu0 0.0
  %3391 = vmatpush1.msra.mxu0 0.0
  %3392 = vmatprep.subr.mxu0 0.0
  %3393 = vmatpush1.msra.mxu0 0.0
  %3394 = vmatprep.subr.mxu0 0.0
  %3395 = vmatpush1.msra.mxu0 0.0
  %3396 = vmatprep.subr.mxu0 0.0
  %3397 = vmatpush1.msra.mxu0 0.0
  %3398 = vmatprep.subr.mxu0 0.0
  %3399 = vmatpush1.msra.mxu0 0.0
  %3400 = vmatprep.subr.mxu0 0.0
  %3401 = vmatpush1.msra.mxu0 0.0
  %3402 = vmatprep.mubr.f32.mxu0 0.0
  %3403 = vmatmul.mubr.f32.gmra.mrb[0].mxu0 %v3336
  %v3404 = vpop.f32.mrb[0].mxu0
  %v3405 = vadd.f32 0.0, %v3404
  %v3406 = vpop.f32.mrb[0].mxu0
  %3407 = vdwg.mxu0
  %3410 = vrot.lane.b32.xlu0 %v2661, 8
  %v3411 = vpop.permute.xlu0 %3410
  %3412 = vrot.lane.b32.xlu0 %v2737, 8
  %v3413 = vpop.permute.xlu0 %3412
  %3418 = vrot.lane.b32.xlu0 %v2995, 16
  %v3419 = vpop.permute.xlu0 %3418
  %3420 = vrot.lane.b32.xlu0 %v3071, 16
  %v3421 = vpop.permute.xlu0 %3420
  %3426 = vrot.lane.b32.xlu0 %v3329, 24
  %v3427 = vpop.permute.xlu0 %3426
  %3428 = vrot.lane.b32.xlu0 %v3405, 24
  %v3429 = vpop.permute.xlu0 %3428
  %v3432 = vsel %vm233, %v2327, %v3411
  %v3433 = vsel %vm233, %v2403, %v3413
  %v3434 = vsel %vm1591, %v3432, %v3419
  %v3435 = vsel %vm1591, %v3433, %v3421
  %v3436 = vsel %vm1594, %v3434, %v3427
  %v3437 = vsel %vm1594, %v3435, %v3429
  %s3438 = scalar_lea.vmem %s7, 32
  %v3439 = vld [vmem:[%s3438] sm:$0xff]
  %v3440 = vld [vmem:[%s3438 + $0x8] sm:$0xff]
  %v3441 = vld [vmem:[%s3438 + $0x10] sm:$0xff]
  %v3442 = vld [vmem:[%s3438 + $0x18] sm:$0xff]
  %s3443 = scalar_lea.vmem %s8, 1
  %v3444 = vld [vmem:[%s3443] sm:$0x1]
  %v3446 = vlaneseq
  %v3447 = vshrl.u32 %v3446, 7
  %v3448 = vsub.s32 0, %v3447
  %v3449 = vrot.slane %v3444, %v3448
  %v3452 = vsel %vm78, %v3436, 0
  %v3455 = vsel %vm78, %v3437, 0
  %3457 = vmatprep.subr.mxu0 0.0
  %3458 = vmatpush1.msra.mxu0 %v3439
  %3459 = vmatprep.subr.mxu0 0.0
  %3460 = vmatpush1.msra.mxu0 %v3440
  %3461 = vmatprep.subr.mxu0 0.0
  %3462 = vmatpush1.msra.mxu0 %v3441
  %3463 = vmatprep.subr.mxu0 0.0
  %3464 = vmatpush1.msra.mxu0 %v3442
  %3465 = vmatprep.subr.mxu0 0.0
  %3466 = vmatpush1.msra.mxu0 0.0
  %3467 = vmatprep.subr.mxu0 0.0
  %3468 = vmatpush1.msra.mxu0 0.0
  %3469 = vmatprep.subr.mxu0 0.0
  %3470 = vmatpush1.msra.mxu0 0.0
  %3471 = vmatprep.subr.mxu0 0.0
  %3472 = vmatpush1.msra.mxu0 0.0
  %3473 = vmatprep.subr.mxu0 0.0
  %3474 = vmatpush1.msra.mxu0 0.0
  %3475 = vmatprep.subr.mxu0 0.0
  %3476 = vmatpush1.msra.mxu0 0.0
  %3477 = vmatprep.subr.mxu0 0.0
  %3478 = vmatpush1.msra.mxu0 0.0
  %3479 = vmatprep.subr.mxu0 0.0
  %3480 = vmatpush1.msra.mxu0 0.0
  %3481 = vmatprep.subr.mxu0 0.0
  %3482 = vmatpush1.msra.mxu0 0.0
  %3483 = vmatprep.subr.mxu0 0.0
  %3484 = vmatpush1.msra.mxu0 0.0
  %3485 = vmatprep.subr.mxu0 0.0
  %3486 = vmatpush1.msra.mxu0 0.0
  %3487 = vmatprep.subr.mxu0 0.0
  %3488 = vmatpush1.msra.mxu0 0.0
  %3489 = vmatprep.subr.mxu0 0.0
  %3490 = vmatpush1.msra.mxu0 0.0
  %3491 = vmatprep.subr.mxu0 0.0
  %3492 = vmatpush1.msra.mxu0 0.0
  %3493 = vmatprep.subr.mxu0 0.0
  %3494 = vmatpush1.msra.mxu0 0.0
  %3495 = vmatprep.subr.mxu0 0.0
  %3496 = vmatpush1.msra.mxu0 0.0
  %3497 = vmatprep.subr.mxu0 0.0
  %3498 = vmatpush1.msra.mxu0 0.0
  %3499 = vmatprep.subr.mxu0 0.0
  %3500 = vmatpush1.msra.mxu0 0.0
  %3501 = vmatprep.subr.mxu0 0.0
  %3502 = vmatpush1.msra.mxu0 0.0
  %3503 = vmatprep.subr.mxu0 0.0
  %3504 = vmatpush1.msra.mxu0 0.0
  %3505 = vmatprep.subr.mxu0 0.0
  %3506 = vmatpush1.msra.mxu0 0.0
  %3507 = vmatprep.subr.mxu0 0.0
  %3508 = vmatpush1.msra.mxu0 0.0
  %3509 = vmatprep.subr.mxu0 0.0
  %3510 = vmatpush1.msra.mxu0 0.0
  %3511 = vmatprep.subr.mxu0 0.0
  %3512 = vmatpush1.msra.mxu0 0.0
  %3513 = vmatprep.subr.mxu0 0.0
  %3514 = vmatpush1.msra.mxu0 0.0
  %3515 = vmatprep.subr.mxu0 0.0
  %3516 = vmatpush1.msra.mxu0 0.0
  %3517 = vmatprep.subr.mxu0 0.0
  %3518 = vmatpush1.msra.mxu0 0.0
  %3519 = vmatprep.subr.mxu0 0.0
  %3520 = vmatpush1.msra.mxu0 0.0
  %3521 = vmatprep.mubr.f32.mxu0 0.0
  %3522 = vmatmul.mubr.f32.gmra.mrb[0].mxu0 %v3452
  %v3523 = vpop.f32.mrb[0].mxu0
  %v3524 = vadd.f32 %v3449, %v3523
  %v3525 = vpop.f32.mrb[0].mxu0
  %3526 = vmatprep.mubr.f32.mxu0 0.0
  %3527 = vmatmul.mubr.f32.gmra.mrb[0].mxu0 %v3455
  %v3528 = vpop.f32.mrb[0].mxu0
  %v3529 = vadd.f32 %v3449, %v3528
  %v3530 = vpop.f32.mrb[0].mxu0
  %3531 = vdwg.mxu0
  %v3532 = vadd.f32 %v1978, %v3524
  %v3533 = vadd.f32 %v1979, %v3529
  %s3534 = scalar_lea.vmem %s9, 1
  %v3535 = vld [vmem:[%s3534] sm:$0x1]
  %s3536 = scalar_lea.vmem %s10, 1
  %v3537 = vld [vmem:[%s3536] sm:$0x1]
  %v3538 = vsel %vm78, %v3532, 0.0
  %3539 = vadd.xlane.f32.xlu0 %v3538
  %v3540 = vpop.xlane.xlu0 %3539
  %v3541 = vsel %vm78, %v3533, 0.0
  %3542 = vadd.xlane.f32.xlu0 %v3541
  %v3543 = vpop.xlane.xlu0 %3542
  %v3544 = vmul.f32 %v3540, %v85
  %v3545 = vmul.f32 %v3543, %v85
  %v3546 = vsub.f32 %v3532, %v3544
  %v3547 = vsub.f32 %v3533, %v3545
  %v3548 = vmul.f32 %v3546, %v3546
  %v3549 = vmul.f32 %v3547, %v3547
  %v3550 = vsel %vm78, %v3548, 0.0
  %3551 = vadd.xlane.f32.xlu0 %v3550
  %v3552 = vpop.xlane.xlu0 %3551
  %v3553 = vsel %vm78, %v3549, 0.0
  %3554 = vadd.xlane.f32.xlu0 %v3553
  %v3555 = vpop.xlane.xlu0 %3554
  %v3556 = vmul.f32 %v3552, %v85
  %v3557 = vmul.f32 %v3555, %v85
  %v3558 = vadd.f32 %v3556, 1e-12
  %v3559 = vadd.f32 %v3557, 1e-12
  %v3560 = vrsqrt.pop %v3558
  %v3561 = vrsqrt.pop %v3559
  %v3562 = vmul.f32 %v3546, %v3560
  %v3563 = vmul.f32 %v3547, %v3561
  %v3565 = vlaneseq
  %v3566 = vshrl.u32 %v3565, 7
  %v3567 = vsub.s32 0, %v3566
  %v3568 = vrot.slane %v3535, %v3567
  %v3570 = vmul.f32 %v3562, %v3568
  %v3571 = vmul.f32 %v3563, %v3568
  %v3573 = vlaneseq
  %v3574 = vshrl.u32 %v3573, 7
  %v3575 = vsub.s32 0, %v3574
  %v3576 = vrot.slane %v3537, %v3575
  %v3578 = vadd.f32 %v3570, %v3576
  %v3579 = vadd.f32 %v3571, %v3576
  %s3580 = scalar_lea.vmem %s11, 32
  %v3581 = vld [vmem:[%s3580] sm:$0xff]
  %v3582 = vld [vmem:[%s3580 + $0x8] sm:$0xff]
  %v3583 = vld [vmem:[%s3580 + $0x10] sm:$0xff]
  %v3584 = vld [vmem:[%s3580 + $0x18] sm:$0xff]
  %s3585 = scalar_lea.vmem %s12, 1
  %v3586 = vld [vmem:[%s3585] sm:$0x1]
  %v3588 = vlaneseq
  %v3589 = vshrl.u32 %v3588, 7
  %v3590 = vsub.s32 0, %v3589
  %v3591 = vrot.slane %v3586, %v3590
  %v3594 = vsel %vm78, %v3578, 0
  %v3597 = vsel %vm78, %v3579, 0
  %3599 = vmatprep.subr.mxu0 0.0
  %3600 = vmatpush1.msra.mxu0 %v3581
  %3601 = vmatprep.subr.mxu0 0.0
  %3602 = vmatpush1.msra.mxu0 %v3582
  %3603 = vmatprep.subr.mxu0 0.0
  %3604 = vmatpush1.msra.mxu0 %v3583
  %3605 = vmatprep.subr.mxu0 0.0
  %3606 = vmatpush1.msra.mxu0 %v3584
  %3607 = vmatprep.subr.mxu0 0.0
  %3608 = vmatpush1.msra.mxu0 0.0
  %3609 = vmatprep.subr.mxu0 0.0
  %3610 = vmatpush1.msra.mxu0 0.0
  %3611 = vmatprep.subr.mxu0 0.0
  %3612 = vmatpush1.msra.mxu0 0.0
  %3613 = vmatprep.subr.mxu0 0.0
  %3614 = vmatpush1.msra.mxu0 0.0
  %3615 = vmatprep.subr.mxu0 0.0
  %3616 = vmatpush1.msra.mxu0 0.0
  %3617 = vmatprep.subr.mxu0 0.0
  %3618 = vmatpush1.msra.mxu0 0.0
  %3619 = vmatprep.subr.mxu0 0.0
  %3620 = vmatpush1.msra.mxu0 0.0
  %3621 = vmatprep.subr.mxu0 0.0
  %3622 = vmatpush1.msra.mxu0 0.0
  %3623 = vmatprep.subr.mxu0 0.0
  %3624 = vmatpush1.msra.mxu0 0.0
  %3625 = vmatprep.subr.mxu0 0.0
  %3626 = vmatpush1.msra.mxu0 0.0
  %3627 = vmatprep.subr.mxu0 0.0
  %3628 = vmatpush1.msra.mxu0 0.0
  %3629 = vmatprep.subr.mxu0 0.0
  %3630 = vmatpush1.msra.mxu0 0.0
  %3631 = vmatprep.subr.mxu0 0.0
  %3632 = vmatpush1.msra.mxu0 0.0
  %3633 = vmatprep.subr.mxu0 0.0
  %3634 = vmatpush1.msra.mxu0 0.0
  %3635 = vmatprep.subr.mxu0 0.0
  %3636 = vmatpush1.msra.mxu0 0.0
  %3637 = vmatprep.subr.mxu0 0.0
  %3638 = vmatpush1.msra.mxu0 0.0
  %3639 = vmatprep.subr.mxu0 0.0
  %3640 = vmatpush1.msra.mxu0 0.0
  %3641 = vmatprep.subr.mxu0 0.0
  %3642 = vmatpush1.msra.mxu0 0.0
  %3643 = vmatprep.subr.mxu0 0.0
  %3644 = vmatpush1.msra.mxu0 0.0
  %3645 = vmatprep.subr.mxu0 0.0
  %3646 = vmatpush1.msra.mxu0 0.0
  %3647 = vmatprep.subr.mxu0 0.0
  %3648 = vmatpush1.msra.mxu0 0.0
  %3649 = vmatprep.subr.mxu0 0.0
  %3650 = vmatpush1.msra.mxu0 0.0
  %3651 = vmatprep.subr.mxu0 0.0
  %3652 = vmatpush1.msra.mxu0 0.0
  %3653 = vmatprep.subr.mxu0 0.0
  %3654 = vmatpush1.msra.mxu0 0.0
  %3655 = vmatprep.subr.mxu0 0.0
  %3656 = vmatpush1.msra.mxu0 0.0
  %3657 = vmatprep.subr.mxu0 0.0
  %3658 = vmatpush1.msra.mxu0 0.0
  %3659 = vmatprep.subr.mxu0 0.0
  %3660 = vmatpush1.msra.mxu0 0.0
  %3661 = vmatprep.subr.mxu0 0.0
  %3662 = vmatpush1.msra.mxu0 0.0
  %3663 = vmatprep.mubr.f32.mxu0 0.0
  %3664 = vmatmul.mubr.f32.gmra.mrb[0].mxu0 %v3594
  %v3665 = vpop.f32.mrb[0].mxu0
  %v3666 = vadd.f32 %v3591, %v3665
  %v3667 = vpop.f32.mrb[0].mxu0
  %3668 = vmatprep.mubr.f32.mxu0 0.0
  %3669 = vmatmul.mubr.f32.gmra.mrb[0].mxu0 %v3597
  %v3670 = vpop.f32.mrb[0].mxu0
  %v3671 = vadd.f32 %v3591, %v3670
  %v3672 = vpop.f32.mrb[0].mxu0
  %3673 = vdwg.mxu0
  %v3674 = vmul.f32 %v3666, 0.5
  %v3675 = vmul.f32 %v3671, 0.5
  %v3676 = vmul.f32 %v3666, 0.70710677
  %v3677 = vmul.f32 %v3671, 0.70710677
  %v3678 = verf.f32.pop %v3676
  %v3679 = verf.f32.pop %v3677
  %v3680 = vadd.f32 %v3678, 1.0
  %v3681 = vadd.f32 %v3679, 1.0
  %v3682 = vmul.f32 %v3674, %v3680
  %v3683 = vmul.f32 %v3675, %v3681
  %s3684 = scalar_lea.vmem %s13, 64
  %v3685 = vld [vmem:[%s3684] sm:$0xff]
  %v3686 = vld [vmem:[%s3684 + $0x8] sm:$0xff]
  %v3687 = vld [vmem:[%s3684 + $0x10] sm:$0xff]
  %v3688 = vld [vmem:[%s3684 + $0x18] sm:$0xff]
  %v3689 = vld [vmem:[%s3684 + $0x20] sm:$0xff]
  %v3690 = vld [vmem:[%s3684 + $0x28] sm:$0xff]
  %v3691 = vld [vmem:[%s3684 + $0x30] sm:$0xff]
  %v3692 = vld [vmem:[%s3684 + $0x38] sm:$0xff]
  %s3693 = scalar_lea.vmem %s14, 1
  %v3694 = vld [vmem:[%s3693] sm:$0x1]
  %v3696 = vlaneseq
  %v3697 = vshrl.u32 %v3696, 7
  %v3698 = vsub.s32 0, %v3697
  %v3699 = vrot.slane %v3694, %v3698
  %v3702 = vsel %vm1852, %v3682, 0
  %v3705 = vsel %vm1852, %v3683, 0
  %3707 = vmatprep.subr.mxu0 0.0
  %3708 = vmatpush1.msra.mxu0 %v3685
  %3709 = vmatprep.subr.mxu0 0.0
  %3710 = vmatpush1.msra.mxu0 %v3686
  %3711 = vmatprep.subr.mxu0 0.0
  %3712 = vmatpush1.msra.mxu0 %v3687
  %3713 = vmatprep.subr.mxu0 0.0
  %3714 = vmatpush1.msra.mxu0 %v3688
  %3715 = vmatprep.subr.mxu0 0.0
  %3716 = vmatpush1.msra.mxu0 %v3689
  %3717 = vmatprep.subr.mxu0 0.0
  %3718 = vmatpush1.msra.mxu0 %v3690
  %3719 = vmatprep.subr.mxu0 0.0
  %3720 = vmatpush1.msra.mxu0 %v3691
  %3721 = vmatprep.subr.mxu0 0.0
  %3722 = vmatpush1.msra.mxu0 %v3692
  %3723 = vmatprep.subr.mxu0 0.0
  %3724 = vmatpush1.msra.mxu0 0.0
  %3725 = vmatprep.subr.mxu0 0.0
  %3726 = vmatpush1.msra.mxu0 0.0
  %3727 = vmatprep.subr.mxu0 0.0
  %3728 = vmatpush1.msra.mxu0 0.0
  %3729 = vmatprep.subr.mxu0 0.0
  %3730 = vmatpush1.msra.mxu0 0.0
  %3731 = vmatprep.subr.mxu0 0.0
  %3732 = vmatpush1.msra.mxu0 0.0
  %3733 = vmatprep.subr.mxu0 0.0
  %3734 = vmatpush1.msra.mxu0 0.0
  %3735 = vmatprep.subr.mxu0 0.0
  %3736 = vmatpush1.msra.mxu0 0.0
  %3737 = vmatprep.subr.mxu0 0.0
  %3738 = vmatpush1.msra.mxu0 0.0
  %3739 = vmatprep.subr.mxu0 0.0
  %3740 = vmatpush1.msra.mxu0 0.0
  %3741 = vmatprep.subr.mxu0 0.0
  %3742 = vmatpush1.msra.mxu0 0.0
  %3743 = vmatprep.subr.mxu0 0.0
  %3744 = vmatpush1.msra.mxu0 0.0
  %3745 = vmatprep.subr.mxu0 0.0
  %3746 = vmatpush1.msra.mxu0 0.0
  %3747 = vmatprep.subr.mxu0 0.0
  %3748 = vmatpush1.msra.mxu0 0.0
  %3749 = vmatprep.subr.mxu0 0.0
  %3750 = vmatpush1.msra.mxu0 0.0
  %3751 = vmatprep.subr.mxu0 0.0
  %3752 = vmatpush1.msra.mxu0 0.0
  %3753 = vmatprep.subr.mxu0 0.0
  %3754 = vmatpush1.msra.mxu0 0.0
  %3755 = vmatprep.subr.mxu0 0.0
  %3756 = vmatpush1.msra.mxu0 0.0
  %3757 = vmatprep.subr.mxu0 0.0
  %3758 = vmatpush1.msra.mxu0 0.0
  %3759 = vmatprep.subr.mxu0 0.0
  %3760 = vmatpush1.msra.mxu0 0.0
  %3761 = vmatprep.subr.mxu0 0.0
  %3762 = vmatpush1.msra.mxu0 0.0
  %3763 = vmatprep.subr.mxu0 0.0
  %3764 = vmatpush1.msra.mxu0 0.0
  %3765 = vmatprep.subr.mxu0 0.0
  %3766 = vmatpush1.msra.mxu0 0.0
  %3767 = vmatprep.subr.mxu0 0.0
  %3768 = vmatpush1.msra.mxu0 0.0
  %3769 = vmatprep.subr.mxu0 0.0
  %3770 = vmatpush1.msra.mxu0 0.0
  %3771 = vmatprep.mubr.f32.mxu0 0.0
  %3772 = vmatmul.mubr.f32.gmra.mrb[0].mxu0 %v3702
  %v3773 = vpop.f32.mrb[0].mxu0
  %v3774 = vadd.f32 %v3699, %v3773
  %v3775 = vpop.f32.mrb[0].mxu0
  %3776 = vmatprep.mubr.f32.mxu0 0.0
  %3777 = vmatmul.mubr.f32.gmra.mrb[0].mxu0 %v3705
  %v3778 = vpop.f32.mrb[0].mxu0
  %v3779 = vadd.f32 %v3699, %v3778
  %v3780 = vpop.f32.mrb[0].mxu0
  %3781 = vdwg.mxu0
  %v3782 = vadd.f32 %v3578, %v3774
  %v3783 = vadd.f32 %v3579, %v3779
  %s3784 = scalar_lea.vmem %s15, 1
  %v3785 = vld [vmem:[%s3784] sm:$0x1]
  %s3786 = scalar_lea.vmem %s16, 1
  %v3787 = vld [vmem:[%s3786] sm:$0x1]
  %v3788 = vsel %vm78, %v3782, 0.0
  %3789 = vadd.xlane.f32.xlu0 %v3788
  %v3790 = vpop.xlane.xlu0 %3789
  %v3791 = vsel %vm78, %v3783, 0.0
  %3792 = vadd.xlane.f32.xlu0 %v3791
  %v3793 = vpop.xlane.xlu0 %3792
  %v3794 = vmul.f32 %v3790, %v85
  %v3795 = vmul.f32 %v3793, %v85
  %v3796 = vsub.f32 %v3782, %v3794
  %v3797 = vsub.f32 %v3783, %v3795
  %v3798 = vmul.f32 %v3796, %v3796
  %v3799 = vmul.f32 %v3797, %v3797
  %v3800 = vsel %vm78, %v3798, 0.0
  %3801 = vadd.xlane.f32.xlu0 %v3800
  %v3802 = vpop.xlane.xlu0 %3801
  %v3803 = vsel %vm78, %v3799, 0.0
  %3804 = vadd.xlane.f32.xlu0 %v3803
  %v3805 = vpop.xlane.xlu0 %3804
  %v3806 = vmul.f32 %v3802, %v85
  %v3807 = vmul.f32 %v3805, %v85
  %v3808 = vadd.f32 %v3806, 1e-12
  %v3809 = vadd.f32 %v3807, 1e-12
  %v3810 = vrsqrt.pop %v3808
  %v3811 = vrsqrt.pop %v3809
  %v3812 = vmul.f32 %v3796, %v3810
  %v3813 = vmul.f32 %v3797, %v3811
  %v3815 = vlaneseq
  %v3816 = vshrl.u32 %v3815, 7
  %v3817 = vsub.s32 0, %v3816
  %v3818 = vrot.slane %v3785, %v3817
  %v3820 = vmul.f32 %v3812, %v3818
  %v3821 = vmul.f32 %v3813, %v3818
  %v3823 = vlaneseq
  %v3824 = vshrl.u32 %v3823, 7
  %v3825 = vsub.s32 0, %v3824
  %v3826 = vrot.slane %v3787, %v3825
  %v3828 = vadd.f32 %v3820, %v3826
  %v3829 = vadd.f32 %v3821, %v3826
  %v3830 = vld [vmem:[%s2] sm:$0x3]
  %v3832 = vsel %vm1591, %v3830, 0
  %3834 = vmatprep.subr.mxu0 0.0
  %3835 = vmatpush1.msra.mxu0 %v3828
  %3836 = vmatprep.subr.mxu0 0.0
  %3837 = vmatpush1.msra.mxu0 %v3829
  %3838 = vmatprep.subr.mxu0 0.0
  %3839 = vmatpush1.msra.mxu0 0.0
  %3840 = vmatprep.subr.mxu0 0.0
  %3841 = vmatpush1.msra.mxu0 0.0
  %3842 = vmatprep.subr.mxu0 0.0
  %3843 = vmatpush1.msra.mxu0 0.0
  %3844 = vmatprep.subr.mxu0 0.0
  %3845 = vmatpush1.msra.mxu0 0.0
  %3846 = vmatprep.subr.mxu0 0.0
  %3847 = vmatpush1.msra.mxu0 0.0
  %3848 = vmatprep.subr.mxu0 0.0
  %3849 = vmatpush1.msra.mxu0 0.0
  %3850 = vmatprep.subr.mxu0 0.0
  %3851 = vmatpush1.msra.mxu0 0.0
  %3852 = vmatprep.subr.mxu0 0.0
  %3853 = vmatpush1.msra.mxu0 0.0
  %3854 = vmatprep.subr.mxu0 0.0
  %3855 = vmatpush1.msra.mxu0 0.0
  %3856 = vmatprep.subr.mxu0 0.0
  %3857 = vmatpush1.msra.mxu0 0.0
  %3858 = vmatprep.subr.mxu0 0.0
  %3859 = vmatpush1.msra.mxu0 0.0
  %3860 = vmatprep.subr.mxu0 0.0
  %3861 = vmatpush1.msra.mxu0 0.0
  %3862 = vmatprep.subr.mxu0 0.0
  %3863 = vmatpush1.msra.mxu0 0.0
  %3864 = vmatprep.subr.mxu0 0.0
  %3865 = vmatpush1.msra.mxu0 0.0
  %3866 = vmatprep.subr.mxu0 0.0
  %3867 = vmatpush1.msra.mxu0 0.0
  %3868 = vmatprep.subr.mxu0 0.0
  %3869 = vmatpush1.msra.mxu0 0.0
  %3870 = vmatprep.subr.mxu0 0.0
  %3871 = vmatpush1.msra.mxu0 0.0
  %3872 = vmatprep.subr.mxu0 0.0
  %3873 = vmatpush1.msra.mxu0 0.0
  %3874 = vmatprep.subr.mxu0 0.0
  %3875 = vmatpush1.msra.mxu0 0.0
  %3876 = vmatprep.subr.mxu0 0.0
  %3877 = vmatpush1.msra.mxu0 0.0
  %3878 = vmatprep.subr.mxu0 0.0
  %3879 = vmatpush1.msra.mxu0 0.0
  %3880 = vmatprep.subr.mxu0 0.0
  %3881 = vmatpush1.msra.mxu0 0.0
  %3882 = vmatprep.subr.mxu0 0.0
  %3883 = vmatpush1.msra.mxu0 0.0
  %3884 = vmatprep.subr.mxu0 0.0
  %3885 = vmatpush1.msra.mxu0 0.0
  %3886 = vmatprep.subr.mxu0 0.0
  %3887 = vmatpush1.msra.mxu0 0.0
  %3888 = vmatprep.subr.mxu0 0.0
  %3889 = vmatpush1.msra.mxu0 0.0
  %3890 = vmatprep.subr.mxu0 0.0
  %3891 = vmatpush1.msra.mxu0 0.0
  %3892 = vmatprep.subr.mxu0 0.0
  %3893 = vmatpush1.msra.mxu0 0.0
  %3894 = vmatprep.subr.mxu0 0.0
  %3895 = vmatpush1.msra.mxu0 0.0
  %3896 = vmatprep.subr.mxu0 0.0
  %3897 = vmatpush1.msra.mxu0 0.0
  %3898 = vmatprep.mubr.f32.mxu0 0.0
  %3899 = vmatmul.mubr.f32.gmra.mrb[0].mxu0 %v3832
  %v3900 = vpop.f32.mrb[0].mxu0
  %v3901 = vadd.f32 0.0, %v3900
  %v3902 = vpop.f32.mrb[0].mxu0
  %3903 = vdwg.mxu0
  %v3904 = vld [vmem:[%s17] sm:$0xff]
  %v3905 = vld [vmem:[%s17 + $0x8] sm:$0xff]
  %v3906 = vld [vmem:[%s17 + $0x10] sm:$0xff]
  %v3907 = vld [vmem:[%s17 + $0x18] sm:$0xff]
  %v3908 = vld [vmem:[%s18] sm:$0x1]
  %v3910 = vlaneseq
  %v3911 = vshrl.u32 %v3910, 7
  %v3912 = vsub.s32 0, %v3911
  %v3913 = vrot.slane %v3908, %v3912
  %v3916 = vsel %vm78, %v3901, 0
  %3918 = vmatprep.subr.mxu0 0.0
  %3919 = vmatpush1.msra.mxu0 %v3904
  %3920 = vmatprep.subr.mxu0 0.0
  %3921 = vmatpush1.msra.mxu0 %v3905
  %3922 = vmatprep.subr.mxu0 0.0
  %3923 = vmatpush1.msra.mxu0 %v3906
  %3924 = vmatprep.subr.mxu0 0.0
  %3925 = vmatpush1.msra.mxu0 %v3907
  %3926 = vmatprep.subr.mxu0 0.0
  %3927 = vmatpush1.msra.mxu0 0.0
  %3928 = vmatprep.subr.mxu0 0.0
  %3929 = vmatpush1.msra.mxu0 0.0
  %3930 = vmatprep.subr.mxu0 0.0
  %3931 = vmatpush1.msra.mxu0 0.0
  %3932 = vmatprep.subr.mxu0 0.0
  %3933 = vmatpush1.msra.mxu0 0.0
  %3934 = vmatprep.subr.mxu0 0.0
  %3935 = vmatpush1.msra.mxu0 0.0
  %3936 = vmatprep.subr.mxu0 0.0
  %3937 = vmatpush1.msra.mxu0 0.0
  %3938 = vmatprep.subr.mxu0 0.0
  %3939 = vmatpush1.msra.mxu0 0.0
  %3940 = vmatprep.subr.mxu0 0.0
  %3941 = vmatpush1.msra.mxu0 0.0
  %3942 = vmatprep.subr.mxu0 0.0
  %3943 = vmatpush1.msra.mxu0 0.0
  %3944 = vmatprep.subr.mxu0 0.0
  %3945 = vmatpush1.msra.mxu0 0.0
  %3946 = vmatprep.subr.mxu0 0.0
  %3947 = vmatpush1.msra.mxu0 0.0
  %3948 = vmatprep.subr.mxu0 0.0
  %3949 = vmatpush1.msra.mxu0 0.0
  %3950 = vmatprep.subr.mxu0 0.0
  %3951 = vmatpush1.msra.mxu0 0.0
  %3952 = vmatprep.subr.mxu0 0.0
  %3953 = vmatpush1.msra.mxu0 0.0
  %3954 = vmatprep.subr.mxu0 0.0
  %3955 = vmatpush1.msra.mxu0 0.0
  %3956 = vmatprep.subr.mxu0 0.0
  %3957 = vmatpush1.msra.mxu0 0.0
  %3958 = vmatprep.subr.mxu0 0.0
  %3959 = vmatpush1.msra.mxu0 0.0
  %3960 = vmatprep.subr.mxu0 0.0
  %3961 = vmatpush1.msra.mxu0 0.0
  %3962 = vmatprep.subr.mxu0 0.0
  %3963 = vmatpush1.msra.mxu0 0.0
  %3964 = vmatprep.subr.mxu0 0.0
  %3965 = vmatpush1.msra.mxu0 0.0
  %3966 = vmatprep.subr.mxu0 0.0
  %3967 = vmatpush1.msra.mxu0 0.0
  %3968 = vmatprep.subr.mxu0 0.0
  %3969 = vmatpush1.msra.mxu0 0.0
  %3970 = vmatprep.subr.mxu0 0.0
  %3971 = vmatpush1.msra.mxu0 0.0
  %3972 = vmatprep.subr.mxu0 0.0
  %3973 = vmatpush1.msra.mxu0 0.0
  %3974 = vmatprep.subr.mxu0 0.0
  %3975 = vmatpush1.msra.mxu0 0.0
  %3976 = vmatprep.subr.mxu0 0.0
  %3977 = vmatpush1.msra.mxu0 0.0
  %3978 = vmatprep.subr.mxu0 0.0
  %3979 = vmatpush1.msra.mxu0 0.0
  %3980 = vmatprep.subr.mxu0 0.0
  %3981 = vmatpush1.msra.mxu0 0.0
  %3982 = vmatprep.mubr.f32.mxu0 0.0
  %3983 = vmatmul.mubr.f32.gmra.mrb[0].mxu0 %v3916
  %v3984 = vpop.f32.mrb[0].mxu0
  %v3985 = vadd.f32 %v3913, %v3984
  %v3986 = vpop.f32.mrb[0].mxu0
  %3987 = vdwg.mxu0
  %v3988 = vtanh.pop %v3985
  %v3989 = vld [vmem:[%s19] sm:$0xff]
  %v3990 = vld [vmem:[%s19 + $0x8] sm:$0xff]
  %v3991 = vld [vmem:[%s19 + $0x10] sm:$0xff]
  %v3992 = vld [vmem:[%s19 + $0x18] sm:$0xff]
  %v3993 = vld [vmem:[%s20] sm:$0x1]
  %v3995 = vlaneseq
  %v3996 = vshrl.u32 %v3995, 7
  %v3997 = vsub.s32 0, %v3996
  %v3998 = vrot.slane %v3993, %v3997
  %v4001 = vsel %vm78, %v3988, 0
  %4003 = vmatprep.subr.mxu0 0.0
  %4004 = vmatpush1.msra.mxu0 %v3989
  %4005 = vmatprep.subr.mxu0 0.0
  %4006 = vmatpush1.msra.mxu0 %v3990
  %4007 = vmatprep.subr.mxu0 0.0
  %4008 = vmatpush1.msra.mxu0 %v3991
  %4009 = vmatprep.subr.mxu0 0.0
  %4010 = vmatpush1.msra.mxu0 %v3992
  %4011 = vmatprep.subr.mxu0 0.0
  %4012 = vmatpush1.msra.mxu0 0.0
  %4013 = vmatprep.subr.mxu0 0.0
  %4014 = vmatpush1.msra.mxu0 0.0
  %4015 = vmatprep.subr.mxu0 0.0
  %4016 = vmatpush1.msra.mxu0 0.0
  %4017 = vmatprep.subr.mxu0 0.0
  %4018 = vmatpush1.msra.mxu0 0.0
  %4019 = vmatprep.subr.mxu0 0.0
  %4020 = vmatpush1.msra.mxu0 0.0
  %4021 = vmatprep.subr.mxu0 0.0
  %4022 = vmatpush1.msra.mxu0 0.0
  %4023 = vmatprep.subr.mxu0 0.0
  %4024 = vmatpush1.msra.mxu0 0.0
  %4025 = vmatprep.subr.mxu0 0.0
  %4026 = vmatpush1.msra.mxu0 0.0
  %4027 = vmatprep.subr.mxu0 0.0
  %4028 = vmatpush1.msra.mxu0 0.0
  %4029 = vmatprep.subr.mxu0 0.0
  %4030 = vmatpush1.msra.mxu0 0.0
  %4031 = vmatprep.subr.mxu0 0.0
  %4032 = vmatpush1.msra.mxu0 0.0
  %4033 = vmatprep.subr.mxu0 0.0
  %4034 = vmatpush1.msra.mxu0 0.0
  %4035 = vmatprep.subr.mxu0 0.0
  %4036 = vmatpush1.msra.mxu0 0.0
  %4037 = vmatprep.subr.mxu0 0.0
  %4038 = vmatpush1.msra.mxu0 0.0
  %4039 = vmatprep.subr.mxu0 0.0
  %4040 = vmatpush1.msra.mxu0 0.0
  %4041 = vmatprep.subr.mxu0 0.0
  %4042 = vmatpush1.msra.mxu0 0.0
  %4043 = vmatprep.subr.mxu0 0.0
  %4044 = vmatpush1.msra.mxu0 0.0
  %4045 = vmatprep.subr.mxu0 0.0
  %4046 = vmatpush1.msra.mxu0 0.0
  %4047 = vmatprep.subr.mxu0 0.0
  %4048 = vmatpush1.msra.mxu0 0.0
  %4049 = vmatprep.subr.mxu0 0.0
  %4050 = vmatpush1.msra.mxu0 0.0
  %4051 = vmatprep.subr.mxu0 0.0
  %4052 = vmatpush1.msra.mxu0 0.0
  %4053 = vmatprep.subr.mxu0 0.0
  %4054 = vmatpush1.msra.mxu0 0.0
  %4055 = vmatprep.subr.mxu0 0.0
  %4056 = vmatpush1.msra.mxu0 0.0
  %4057 = vmatprep.subr.mxu0 0.0
  %4058 = vmatpush1.msra.mxu0 0.0
  %4059 = vmatprep.subr.mxu0 0.0
  %4060 = vmatpush1.msra.mxu0 0.0
  %4061 = vmatprep.subr.mxu0 0.0
  %4062 = vmatpush1.msra.mxu0 0.0
  %4063 = vmatprep.subr.mxu0 0.0
  %4064 = vmatpush1.msra.mxu0 0.0
  %4065 = vmatprep.subr.mxu0 0.0
  %4066 = vmatpush1.msra.mxu0 0.0
  %4067 = vmatprep.mubr.f32.mxu0 0.0
  %4068 = vmatmul.mubr.f32.gmra.mrb[0].mxu0 %v4001
  %v4069 = vpop.f32.mrb[0].mxu0
  %v4070 = vadd.f32 %v3998, %v4069
  %v4071 = vpop.f32.mrb[0].mxu0
  %4072 = vdwg.mxu0
  %v4073 = vtanh.pop %v4070
  %v4074 = vld [vmem:[%s21] sm:$0xff]
  %v4075 = vld [vmem:[%s21 + $0x8] sm:$0xff]
  %v4076 = vld [vmem:[%s21 + $0x10] sm:$0xff]
  %v4077 = vld [vmem:[%s21 + $0x18] sm:$0xff]
  %v4078 = vld [vmem:[%s21 + $0x20] sm:$0xff]
  %v4079 = vld [vmem:[%s21 + $0x28] sm:$0xff]
  %v4080 = vld [vmem:[%s21 + $0x30] sm:$0xff]
  %v4081 = vld [vmem:[%s21 + $0x38] sm:$0xff]
  %v4082 = vld [vmem:[%s22] sm:$0x1]
  %v4084 = vlaneseq
  %v4085 = vshrl.u32 %v4084, 7
  %v4086 = vsub.s32 0, %v4085
  %v4087 = vrot.slane %v4082, %v4086
  %v4090 = vsel %vm1852, %v4073, 0
  %4092 = vmatprep.subr.mxu0 0.0
  %4093 = vmatpush1.msra.mxu0 %v4074
  %4094 = vmatprep.subr.mxu0 0.0
  %4095 = vmatpush1.msra.mxu0 %v4075
  %4096 = vmatprep.subr.mxu0 0.0
  %4097 = vmatpush1.msra.mxu0 %v4076
  %4098 = vmatprep.subr.mxu0 0.0
  %4099 = vmatpush1.msra.mxu0 %v4077
  %4100 = vmatprep.subr.mxu0 0.0
  %4101 = vmatpush1.msra.mxu0 %v4078
  %4102 = vmatprep.subr.mxu0 0.0
  %4103 = vmatpush1.msra.mxu0 %v4079
  %4104 = vmatprep.subr.mxu0 0.0
  %4105 = vmatpush1.msra.mxu0 %v4080
  %4106 = vmatprep.subr.mxu0 0.0
  %4107 = vmatpush1.msra.mxu0 %v4081
  %4108 = vmatprep.subr.mxu0 0.0
  %4109 = vmatpush1.msra.mxu0 0.0
  %4110 = vmatprep.subr.mxu0 0.0
  %4111 = vmatpush1.msra.mxu0 0.0
  %4112 = vmatprep.subr.mxu0 0.0
  %4113 = vmatpush1.msra.mxu0 0.0
  %4114 = vmatprep.subr.mxu0 0.0
  %4115 = vmatpush1.msra.mxu0 0.0
  %4116 = vmatprep.subr.mxu0 0.0
  %4117 = vmatpush1.msra.mxu0 0.0
  %4118 = vmatprep.subr.mxu0 0.0
  %4119 = vmatpush1.msra.mxu0 0.0
  %4120 = vmatprep.subr.mxu0 0.0
  %4121 = vmatpush1.msra.mxu0 0.0
  %4122 = vmatprep.subr.mxu0 0.0
  %4123 = vmatpush1.msra.mxu0 0.0
  %4124 = vmatprep.subr.mxu0 0.0
  %4125 = vmatpush1.msra.mxu0 0.0
  %4126 = vmatprep.subr.mxu0 0.0
  %4127 = vmatpush1.msra.mxu0 0.0
  %4128 = vmatprep.subr.mxu0 0.0
  %4129 = vmatpush1.msra.mxu0 0.0
  %4130 = vmatprep.subr.mxu0 0.0
  %4131 = vmatpush1.msra.mxu0 0.0
  %4132 = vmatprep.subr.mxu0 0.0
  %4133 = vmatpush1.msra.mxu0 0.0
  %4134 = vmatprep.subr.mxu0 0.0
  %4135 = vmatpush1.msra.mxu0 0.0
  %4136 = vmatprep.subr.mxu0 0.0
  %4137 = vmatpush1.msra.mxu0 0.0
  %4138 = vmatprep.subr.mxu0 0.0
  %4139 = vmatpush1.msra.mxu0 0.0
  %4140 = vmatprep.subr.mxu0 0.0
  %4141 = vmatpush1.msra.mxu0 0.0
  %4142 = vmatprep.subr.mxu0 0.0
  %4143 = vmatpush1.msra.mxu0 0.0
  %4144 = vmatprep.subr.mxu0 0.0
  %4145 = vmatpush1.msra.mxu0 0.0
  %4146 = vmatprep.subr.mxu0 0.0
  %4147 = vmatpush1.msra.mxu0 0.0
  %4148 = vmatprep.subr.mxu0 0.0
  %4149 = vmatpush1.msra.mxu0 0.0
  %4150 = vmatprep.subr.mxu0 0.0
  %4151 = vmatpush1.msra.mxu0 0.0
  %4152 = vmatprep.subr.mxu0 0.0
  %4153 = vmatpush1.msra.mxu0 0.0
  %4154 = vmatprep.subr.mxu0 0.0
  %4155 = vmatpush1.msra.mxu0 0.0
  %4156 = vmatprep.mubr.f32.mxu0 0.0
  %4157 = vmatmul.mubr.f32.gmra.mrb[0].mxu0 %v4090
  %v4158 = vpop.f32.mrb[0].mxu0
  %v4159 = vadd.f32 %v4087, %v4158
  %v4160 = vpop.f32.mrb[0].mxu0
  %4161 = vdwg.mxu0
  %vm4162 = vcmask 25600
  %4163 = vst.msk [vmem:[%s23] sm:$0x3] %vm4162, %v4159
  // Predicated region
  $region94: #{attacker_forward.1} parent=0 // pred_check
    _
  $region95: #{attacker_forward.1} parent=0 // pred_check_branch
    %4165 = sbr.rel (0) target = $region97
  $region96: #{attacker_forward.1} parent=0 // pred_region
    _
  $region97: #{attacker_forward.1} parent=0 // pred_fallthru
    _
  // Predicated region
  $region98: #{attacker_forward.1} parent=0 // pred_check
    _
  $region99: #{attacker_forward.1} parent=0 // pred_check_branch
    %4167 = sbr.rel (0) target = $region101
  $region100: #{attacker_forward.1} parent=0 // pred_region
    _
  $region101: #{attacker_forward.1} parent=0 // pred_fallthru
    _

</llo_original>
